<compile_context>
chip_gen: v5e
topology: v5e:2x2
jax: 0.10.0
libtpu: 0.0.40
codegen_flags: <defaults>
</compile_context>

<pallas_src>
import jax
import jax.numpy as jnp
from jax.experimental import pallas as pl
from jax.experimental.pallas import tpu as pltpu

HIDDEN = 64
INPUT_SIZE = 1
NUM_CLASSES = 2
NUM_LAYERS = 3


def _gate_activations(gates, H):
    """Full-width EUP passes (sigmoid & tanh over all 4H lanes), then slice.

    Gate order follows PyTorch: [i, f, g, o]."""
    sg = jax.nn.sigmoid(gates)
    th = jnp.tanh(gates)
    i_g = sg[:, 0 * H:1 * H]
    f_g = sg[:, 1 * H:2 * H]
    g_g = th[:, 2 * H:3 * H]
    o_g = sg[:, 3 * H:4 * H]
    return i_g, f_g, g_g, o_g


def lstm_classifier_kernel(xT_ref, wih0_ref, whh0_ref, wfused_ref, b0_ref,
                           b12_ref, wfc_ref, bfc_ref, out_ref):
    T, B = xT_ref.shape
    H = whh0_ref.shape[0]
    G = 4 * H

    # ---- hoist all weight / bias loads out of the unrolled loops -----------
    whh0 = whh0_ref[...]                                     # (H, 4H)
    wf = [wfused_ref[l] for l in range(NUM_LAYERS - 1)]      # each (2H, 4H)
    bf = [jnp.broadcast_to(b12_ref[l], (B, G))               # pre-broadcast once
          for l in range(NUM_LAYERS - 1)]
    wfc = wfc_ref[...]                                       # (H, C)
    bfc = bfc_ref[...]                                       # (1, C)

    # ---- layer-0 input gates precomputed for all T steps at once -----------
    # (T, B, 1) * (1, 1, 4H) + (1, 1, 4H) -> (T, B, 4H); bias0 folded in.
    xg = (xT_ref[...][:, :, None] * wih0_ref[...][None, :, :]
          + b0_ref[...][None, :, :])

    h = [jnp.zeros((B, H), jnp.float32) for _ in range(NUM_LAYERS)]
    c = [jnp.zeros((B, H), jnp.float32) for _ in range(NUM_LAYERS)]

    # ---- wavefront schedule: at outer step s, layer l processes t = s - l --
    # Each layer-update in a step only reads states from the previous outer
    # step, so the (up to) three matmuls + activations per step are
    # independent and can be in flight simultaneously.
    # TODO(synk): for long sequences switch the outer unroll to lax.fori_loop
    # with stacked (L,B,H) carries to bound code size / vreg live ranges.
    for s in range(T + NUM_LAYERS - 1):
        h_in = list(h)                       # snapshot of previous-step states
        for l in range(NUM_LAYERS):
            t = s - l
            if not (0 <= t < T):
                continue
            if l == 0:
                gates = xg[t] + jnp.dot(h_in[0], whh0,
                                        preferred_element_type=jnp.float32)
            else:
                # fused [W_ih; W_hh]: one (B,2H)@(2H,4H) matmul per layer-step
                inp = jnp.concatenate([h_in[l - 1], h_in[l]], axis=1)
                gates = (jnp.dot(inp, wf[l - 1],
                                 preferred_element_type=jnp.float32)
                         + bf[l - 1])
            i_g, f_g, g_g, o_g = _gate_activations(gates, H)
            c[l] = f_g * c[l] + i_g * g_g
            h[l] = o_g * jnp.tanh(c[l])

    # final FC on the last-timestep hidden state of the top layer
    out_ref[...] = (jnp.dot(h[NUM_LAYERS - 1], wfc,
                            preferred_element_type=jnp.float32) + bfc)


# ---------------------------------------------------------------------------
# parameter handling
# ---------------------------------------------------------------------------
def init_params(key):
    """PyTorch-style uniform(-1/sqrt(H), 1/sqrt(H)) init, raw torch shapes."""
    k = 1.0 / jnp.sqrt(jnp.float32(HIDDEN))
    keys = jax.random.split(key, NUM_LAYERS * 4 + 2)
    ki = iter(keys)

    def u(shape):
        return jax.random.uniform(next(ki), shape, jnp.float32, -k, k)

    layers = []
    for l in range(NUM_LAYERS):
        in_dim = INPUT_SIZE if l == 0 else HIDDEN
        w_ih = u((4 * HIDDEN, in_dim))
        w_hh = u((4 * HIDDEN, HIDDEN))
        b_ih = u((4 * HIDDEN,))
        b_hh = u((4 * HIDDEN,))
        layers.append((w_ih, w_hh, b_ih, b_hh))
    w_fc = u((NUM_CLASSES, HIDDEN))
    b_fc = u((NUM_CLASSES,))
    return layers, w_fc, b_fc


def pack_params(raw):
    """Transpose / fuse raw torch-shaped weights into kernel layout.

    Gate column order [i,f,g,o] is preserved by the transposes/concats."""
    layers, w_fc, b_fc = raw
    w_ih0, w_hh0, b_ih0, b_hh0 = layers[0]
    wih0 = w_ih0.T                                           # (1, 4H)
    whh0 = w_hh0.T                                           # (H, 4H)
    b0 = (b_ih0 + b_hh0)[None, :]                            # (1, 4H)
    # layers 1..2: fused [W_ih^T ; W_hh^T] -> (2H, 4H), input = [prev_h, own_h]
    wfused = jnp.stack([
        jnp.concatenate([layers[l][0].T, layers[l][1].T], axis=0)
        for l in range(1, NUM_LAYERS)])                      # (L-1, 2H, 4H)
    b12 = jnp.stack([(layers[l][2] + layers[l][3])[None, :]
                     for l in range(1, NUM_LAYERS)])         # (L-1, 1, 4H)
    wfc = w_fc.T                                             # (H, C)
    bfc = b_fc[None, :]                                      # (1, C)
    return wih0, whh0, wfused, b0, b12, wfc, bfc


def lstm_classifier_forward(x, raw_params):
    """x: (B, T) float32 -> logits (B, NUM_CLASSES) float32."""
    B, T = x.shape
    wih0, whh0, wfused, b0, b12, wfc, bfc = pack_params(raw_params)

    # batch tiling: single block for small B, 128-row tiles for large B so the
    # MXU sees full row blocks and v7x's second core gets a parallel grid axis.
    B_TILE = B if B <= 128 else 128
    assert B % B_TILE == 0
    grid = (B // B_TILE,)

    xT = x.T  # (T, B): per-timestep slices land on the cheap leading axis
    G = 4 * HIDDEN

    return pl.pallas_call(
        lstm_classifier_kernel,
        out_shape=jax.ShapeDtypeStruct((B, NUM_CLASSES), jnp.float32),
        grid=grid,
        in_specs=[
            pl.BlockSpec((T, B_TILE), lambda b: (0, b)),
            pl.BlockSpec((1, G), lambda b: (0, 0)),
            pl.BlockSpec((HIDDEN, G), lambda b: (0, 0)),
            pl.BlockSpec((NUM_LAYERS - 1, 2 * HIDDEN, G), lambda b: (0, 0, 0)),
            pl.BlockSpec((1, G), lambda b: (0, 0)),
            pl.BlockSpec((NUM_LAYERS - 1, 1, G), lambda b: (0, 0, 0)),
            pl.BlockSpec((HIDDEN, NUM_CLASSES), lambda b: (0, 0)),
            pl.BlockSpec((1, NUM_CLASSES), lambda b: (0, 0)),
        ],
        out_specs=pl.BlockSpec((B_TILE, NUM_CLASSES), lambda b: (b, 0)),
        compiler_params=pltpu.CompilerParams(
            dimension_semantics=("parallel",)),
    )(xT, wih0, whh0, wfused, b0, b12, wfc, bfc)


# ---------------------------------------------------------------------------
# pure-JAX reference (mirrors torch.nn.LSTM(batch_first=True) + Linear)
# ---------------------------------------------------------------------------
def lstm_classifier_ref(x, raw_params):
    layers, w_fc, b_fc = raw_params
    B, T = x.shape
    H = HIDDEN
    h = [jnp.zeros((B, H), jnp.float32) for _ in range(NUM_LAYERS)]
    c = [jnp.zeros((B, H), jnp.float32) for _ in range(NUM_LAYERS)]
    for t in range(T):
        inp = x[:, t:t + 1]
        for l in range(NUM_LAYERS):
            w_ih, w_hh, b_ih, b_hh = layers[l]
            g = inp @ w_ih.T + h[l] @ w_hh.T + b_ih + b_hh
            i_g = jax.nn.sigmoid(g[:, 0 * H:1 * H])
            f_g = jax.nn.sigmoid(g[:, 1 * H:2 * H])
            g_g = jnp.tanh(g[:, 2 * H:3 * H])
            o_g = jax.nn.sigmoid(g[:, 3 * H:4 * H])
            c[l] = f_g * c[l] + i_g * g_g
            h[l] = o_g * jnp.tanh(c[l])
            inp = h[l]
    return h[-1] @ w_fc.T + b_fc


if __name__ == "__main__":
    key = jax.random.PRNGKey(0)
    pkey, xkey = jax.random.split(key)

    raw_params = init_params(pkey)

    B, T = 2, 8
    x = jax.random.normal(xkey, (B, T), jnp.float32)

    logits = jax.block_until_ready(lstm_classifier_forward(x, raw_params))
    ref = lstm_classifier_ref(x, raw_params)

    assert logits.shape == (B, NUM_CLASSES)
    assert jnp.allclose(logits, ref, atol=1e-4, rtol=1e-4), (logits, ref)
    print("KERNEL_OK")
</pallas_src>

<mosaic_0001>
module attributes {stable_mosaic.version = 11 : i64} {
  func.func @lstm_classifier_kernel(%arg0: i32, %arg1: memref<8x2xf32, #tpu.memory_space<vmem>>, %arg2: memref<1x256xf32, #tpu.memory_space<vmem>>, %arg3: memref<64x256xf32, #tpu.memory_space<vmem>>, %arg4: memref<2x128x256xf32, #tpu.memory_space<vmem>>, %arg5: memref<1x256xf32, #tpu.memory_space<vmem>>, %arg6: memref<2x1x256xf32, #tpu.memory_space<vmem>>, %arg7: memref<64x2xf32, #tpu.memory_space<vmem>>, %arg8: memref<1x2xf32, #tpu.memory_space<vmem>>, %arg9: memref<2x2xf32, #tpu.memory_space<vmem>>) attributes {dimension_semantics = [#tpu.dimension_semantics<parallel>], iteration_bounds = array<i64: 1>, scalar_prefetch = 0 : i64, scratch_operands = 0 : i64, tpu.core_type = #tpu.core_type<tc>, window_params = [{transform_indices = @transform_0, window_bounds = array<i64: 8, 2>}, {pipeline_mode = #tpu.pipeline_mode<synchronous>, transform_indices = @transform_1, window_bounds = array<i64: 1, 256>}, {pipeline_mode = #tpu.pipeline_mode<synchronous>, transform_indices = @transform_2, window_bounds = array<i64: 64, 256>}, {pipeline_mode = #tpu.pipeline_mode<synchronous>, transform_indices = @transform_3, window_bounds = array<i64: 2, 128, 256>}, {pipeline_mode = #tpu.pipeline_mode<synchronous>, transform_indices = @transform_4, window_bounds = array<i64: 1, 256>}, {pipeline_mode = #tpu.pipeline_mode<synchronous>, transform_indices = @transform_5, window_bounds = array<i64: 2, 1, 256>}, {pipeline_mode = #tpu.pipeline_mode<synchronous>, transform_indices = @transform_6, window_bounds = array<i64: 64, 2>}, {pipeline_mode = #tpu.pipeline_mode<synchronous>, transform_indices = @transform_7, window_bounds = array<i64: 1, 2>}, {transform_indices = @transform_8, window_bounds = array<i64: 2, 2>}]} {
    %c0 = arith.constant 0 : index
    %c0_0 = arith.constant 0 : index
    %0 = vector.load %arg3[%c0, %c0_0] : memref<64x256xf32, #tpu.memory_space<vmem>>, vector<64x256xf32>
    %c0_1 = arith.constant 0 : index
    %c0_2 = arith.constant 0 : index
    %c0_3 = arith.constant 0 : index
    %1 = vector.load %arg4[%c0_1, %c0_2, %c0_3] : memref<2x128x256xf32, #tpu.memory_space<vmem>>, vector<1x128x256xf32>
    %2 = vector.shape_cast %1 : vector<1x128x256xf32> to vector<128x256xf32>
    %c1 = arith.constant 1 : index
    %c0_4 = arith.constant 0 : index
    %c0_5 = arith.constant 0 : index
    %3 = vector.load %arg4[%c1, %c0_4, %c0_5] : memref<2x128x256xf32, #tpu.memory_space<vmem>>, vector<1x128x256xf32>
    %4 = vector.shape_cast %3 : vector<1x128x256xf32> to vector<128x256xf32>
    %c0_6 = arith.constant 0 : index
    %c0_7 = arith.constant 0 : index
    %c0_8 = arith.constant 0 : index
    %5 = vector.load %arg6[%c0_6, %c0_7, %c0_8] : memref<2x1x256xf32, #tpu.memory_space<vmem>>, vector<1x1x256xf32>
    %6 = vector.shape_cast %5 : vector<1x1x256xf32> to vector<1x256xf32>
    %7 = vector.shape_cast %6 : vector<1x256xf32> to vector<1x256xf32>
    %8 = vector.broadcast %7 : vector<1x256xf32> to vector<2x256xf32>
    %c1_9 = arith.constant 1 : index
    %c0_10 = arith.constant 0 : index
    %c0_11 = arith.constant 0 : index
    %9 = vector.load %arg6[%c1_9, %c0_10, %c0_11] : memref<2x1x256xf32, #tpu.memory_space<vmem>>, vector<1x1x256xf32>
    %10 = vector.shape_cast %9 : vector<1x1x256xf32> to vector<1x256xf32>
    %11 = vector.shape_cast %10 : vector<1x256xf32> to vector<1x256xf32>
    %12 = vector.broadcast %11 : vector<1x256xf32> to vector<2x256xf32>
    %c0_12 = arith.constant 0 : index
    %c0_13 = arith.constant 0 : index
    %13 = vector.load %arg7[%c0_12, %c0_13] : memref<64x2xf32, #tpu.memory_space<vmem>>, vector<64x2xf32>
    %c0_14 = arith.constant 0 : index
    %c0_15 = arith.constant 0 : index
    %14 = vector.load %arg8[%c0_14, %c0_15] : memref<1x2xf32, #tpu.memory_space<vmem>>, vector<1x2xf32>
    %c0_16 = arith.constant 0 : index
    %c0_17 = arith.constant 0 : index
    %15 = vector.load %arg1[%c0_16, %c0_17] : memref<8x2xf32, #tpu.memory_space<vmem>>, vector<8x2xf32>
    %16 = vector.shape_cast %15 : vector<8x2xf32> to vector<8x2x1xf32>
    %c0_18 = arith.constant 0 : index
    %c0_19 = arith.constant 0 : index
    %17 = vector.load %arg2[%c0_18, %c0_19] : memref<1x256xf32, #tpu.memory_space<vmem>>, vector<1x256xf32>
    %18 = vector.shape_cast %17 : vector<1x256xf32> to vector<1x1x256xf32>
    %19 = vector.broadcast %16 : vector<8x2x1xf32> to vector<8x2x256xf32>
    %20 = vector.broadcast %18 : vector<1x1x256xf32> to vector<8x2x256xf32>
    %21 = arith.mulf %19, %20 : vector<8x2x256xf32>
    %c0_20 = arith.constant 0 : index
    %c0_21 = arith.constant 0 : index
    %22 = vector.load %arg5[%c0_20, %c0_21] : memref<1x256xf32, #tpu.memory_space<vmem>>, vector<1x256xf32>
    %23 = vector.shape_cast %22 : vector<1x256xf32> to vector<1x1x256xf32>
    %24 = vector.broadcast %23 : vector<1x1x256xf32> to vector<8x2x256xf32>
    %25 = arith.addf %21, %24 : vector<8x2x256xf32>
    %cst = arith.constant 0.000000e+00 : f32
    %26 = vector.broadcast %cst : f32 to vector<2x64xf32>
    %cst_22 = arith.constant 0.000000e+00 : f32
    %27 = vector.broadcast %cst_22 : f32 to vector<2x64xf32>
    %cst_23 = arith.constant 0.000000e+00 : f32
    %28 = vector.broadcast %cst_23 : f32 to vector<2x64xf32>
    %cst_24 = arith.constant 0.000000e+00 : f32
    %29 = vector.broadcast %cst_24 : f32 to vector<2x64xf32>
    %cst_25 = arith.constant 0.000000e+00 : f32
    %30 = vector.broadcast %cst_25 : f32 to vector<2x64xf32>
    %cst_26 = arith.constant 0.000000e+00 : f32
    %31 = vector.broadcast %cst_26 : f32 to vector<2x64xf32>
    %32 = vector.extract_strided_slice %25 {offsets = [0, 0, 0], sizes = [1, 2, 256], strides = [1, 1, 1]} : vector<8x2x256xf32> to vector<1x2x256xf32>
    %33 = vector.shape_cast %32 : vector<1x2x256xf32> to vector<2x256xf32>
    %cst_27 = arith.constant dense<0.000000e+00> : vector<2x256xf32>
    %34 = tpu.matmul %26, %0, %cst_27 {dimension_numbers = #tpu.dot_dimension_numbers<[1], [0], [0], [1], [0, 0, 1, 1], [], []>} : vector<2x64xf32>, vector<64x256xf32>, vector<2x256xf32> -> vector<2x256xf32>
    %35 = arith.addf %33, %34 : vector<2x256xf32>
    %36 = arith.negf %35 : vector<2x256xf32>
    %37 = math.exp %36 : vector<2x256xf32>
    %cst_28 = arith.constant 1.000000e+00 : f32
    %38 = vector.broadcast %cst_28 : f32 to vector<2x256xf32>
    %39 = arith.addf %38, %37 : vector<2x256xf32>
    %40 = arith.divf %38, %39 : vector<2x256xf32>
    %41 = math.tanh %35 : vector<2x256xf32>
    %42 = vector.extract_strided_slice %40 {offsets = [0, 0], sizes = [2, 64], strides = [1, 1]} : vector<2x256xf32> to vector<2x64xf32>
    %43 = vector.extract_strided_slice %40 {offsets = [0, 64], sizes = [2, 64], strides = [1, 1]} : vector<2x256xf32> to vector<2x64xf32>
    %44 = vector.extract_strided_slice %41 {offsets = [0, 128], sizes = [2, 64], strides = [1, 1]} : vector<2x256xf32> to vector<2x64xf32>
    %45 = vector.extract_strided_slice %40 {offsets = [0, 192], sizes = [2, 64], strides = [1, 1]} : vector<2x256xf32> to vector<2x64xf32>
    %46 = arith.mulf %43, %29 : vector<2x64xf32>
    %47 = arith.mulf %42, %44 : vector<2x64xf32>
    %48 = arith.addf %46, %47 : vector<2x64xf32>
    %49 = math.tanh %48 : vector<2x64xf32>
    %50 = arith.mulf %45, %49 : vector<2x64xf32>
    %51 = vector.extract_strided_slice %25 {offsets = [1, 0, 0], sizes = [1, 2, 256], strides = [1, 1, 1]} : vector<8x2x256xf32> to vector<1x2x256xf32>
    %52 = vector.shape_cast %51 : vector<1x2x256xf32> to vector<2x256xf32>
    %cst_29 = arith.constant dense<0.000000e+00> : vector<2x256xf32>
    %53 = tpu.matmul %50, %0, %cst_29 {dimension_numbers = #tpu.dot_dimension_numbers<[1], [0], [0], [1], [0, 0, 1, 1], [], []>} : vector<2x64xf32>, vector<64x256xf32>, vector<2x256xf32> -> vector<2x256xf32>
    %54 = arith.addf %52, %53 : vector<2x256xf32>
    %55 = arith.negf %54 : vector<2x256xf32>
    %56 = math.exp %55 : vector<2x256xf32>
    %cst_30 = arith.constant 1.000000e+00 : f32
    %57 = vector.broadcast %cst_30 : f32 to vector<2x256xf32>
    %58 = arith.addf %57, %56 : vector<2x256xf32>
    %59 = arith.divf %57, %58 : vector<2x256xf32>
    %60 = math.tanh %54 : vector<2x256xf32>
    %61 = vector.extract_strided_slice %59 {offsets = [0, 0], sizes = [2, 64], strides = [1, 1]} : vector<2x256xf32> to vector<2x64xf32>
    %62 = vector.extract_strided_slice %59 {offsets = [0, 64], sizes = [2, 64], strides = [1, 1]} : vector<2x256xf32> to vector<2x64xf32>
    %63 = vector.extract_strided_slice %60 {offsets = [0, 128], sizes = [2, 64], strides = [1, 1]} : vector<2x256xf32> to vector<2x64xf32>
    %64 = vector.extract_strided_slice %59 {offsets = [0, 192], sizes = [2, 64], strides = [1, 1]} : vector<2x256xf32> to vector<2x64xf32>
    %65 = arith.mulf %62, %48 : vector<2x64xf32>
    %66 = arith.mulf %61, %63 : vector<2x64xf32>
    %67 = arith.addf %65, %66 : vector<2x64xf32>
    %68 = math.tanh %67 : vector<2x64xf32>
    %69 = arith.mulf %64, %68 : vector<2x64xf32>
    %70 = tpu.concatenate %50, %27 in 1 : vector<2x64xf32>, vector<2x64xf32> -> vector<2x128xf32>
    %cst_31 = arith.constant dense<0.000000e+00> : vector<2x256xf32>
    %71 = tpu.matmul %70, %2, %cst_31 {dimension_numbers = #tpu.dot_dimension_numbers<[1], [0], [0], [1], [0, 0, 1, 1], [], []>} : vector<2x128xf32>, vector<128x256xf32>, vector<2x256xf32> -> vector<2x256xf32>
    %72 = arith.addf %71, %8 : vector<2x256xf32>
    %73 = arith.negf %72 : vector<2x256xf32>
    %74 = math.exp %73 : vector<2x256xf32>
    %cst_32 = arith.constant 1.000000e+00 : f32
    %75 = vector.broadcast %cst_32 : f32 to vector<2x256xf32>
    %76 = arith.addf %75, %74 : vector<2x256xf32>
    %77 = arith.divf %75, %76 : vector<2x256xf32>
    %78 = math.tanh %72 : vector<2x256xf32>
    %79 = vector.extract_strided_slice %77 {offsets = [0, 0], sizes = [2, 64], strides = [1, 1]} : vector<2x256xf32> to vector<2x64xf32>
    %80 = vector.extract_strided_slice %77 {offsets = [0, 64], sizes = [2, 64], strides = [1, 1]} : vector<2x256xf32> to vector<2x64xf32>
    %81 = vector.extract_strided_slice %78 {offsets = [0, 128], sizes = [2, 64], strides = [1, 1]} : vector<2x256xf32> to vector<2x64xf32>
    %82 = vector.extract_strided_slice %77 {offsets = [0, 192], sizes = [2, 64], strides = [1, 1]} : vector<2x256xf32> to vector<2x64xf32>
    %83 = arith.mulf %80, %30 : vector<2x64xf32>
    %84 = arith.mulf %79, %81 : vector<2x64xf32>
    %85 = arith.addf %83, %84 : vector<2x64xf32>
    %86 = math.tanh %85 : vector<2x64xf32>
    %87 = arith.mulf %82, %86 : vector<2x64xf32>
    %88 = vector.extract_strided_slice %25 {offsets = [2, 0, 0], sizes = [1, 2, 256], strides = [1, 1, 1]} : vector<8x2x256xf32> to vector<1x2x256xf32>
    %89 = vector.shape_cast %88 : vector<1x2x256xf32> to vector<2x256xf32>
    %cst_33 = arith.constant dense<0.000000e+00> : vector<2x256xf32>
    %90 = tpu.matmul %69, %0, %cst_33 {dimension_numbers = #tpu.dot_dimension_numbers<[1], [0], [0], [1], [0, 0, 1, 1], [], []>} : vector<2x64xf32>, vector<64x256xf32>, vector<2x256xf32> -> vector<2x256xf32>
    %91 = arith.addf %89, %90 : vector<2x256xf32>
    %92 = arith.negf %91 : vector<2x256xf32>
    %93 = math.exp %92 : vector<2x256xf32>
    %cst_34 = arith.constant 1.000000e+00 : f32
    %94 = vector.broadcast %cst_34 : f32 to vector<2x256xf32>
    %95 = arith.addf %94, %93 : vector<2x256xf32>
    %96 = arith.divf %94, %95 : vector<2x256xf32>
    %97 = math.tanh %91 : vector<2x256xf32>
    %98 = vector.extract_strided_slice %96 {offsets = [0, 0], sizes = [2, 64], strides = [1, 1]} : vector<2x256xf32> to vector<2x64xf32>
    %99 = vector.extract_strided_slice %96 {offsets = [0, 64], sizes = [2, 64], strides = [1, 1]} : vector<2x256xf32> to vector<2x64xf32>
    %100 = vector.extract_strided_slice %97 {offsets = [0, 128], sizes = [2, 64], strides = [1, 1]} : vector<2x256xf32> to vector<2x64xf32>
    %101 = vector.extract_strided_slice %96 {offsets = [0, 192], sizes = [2, 64], strides = [1, 1]} : vector<2x256xf32> to vector<2x64xf32>
    %102 = arith.mulf %99, %67 : vector<2x64xf32>
    %103 = arith.mulf %98, %100 : vector<2x64xf32>
    %104 = arith.addf %102, %103 : vector<2x64xf32>
    %105 = math.tanh %104 : vector<2x64xf32>
    %106 = arith.mulf %101, %105 : vector<2x64xf32>
    %107 = tpu.concatenate %69, %87 in 1 : vector<2x64xf32>, vector<2x64xf32> -> vector<2x128xf32>
    %cst_35 = arith.constant dense<0.000000e+00> : vector<2x256xf32>
    %108 = tpu.matmul %107, %2, %cst_35 {dimension_numbers = #tpu.dot_dimension_numbers<[1], [0], [0], [1], [0, 0, 1, 1], [], []>} : vector<2x128xf32>, vector<128x256xf32>, vector<2x256xf32> -> vector<2x256xf32>
    %109 = arith.addf %108, %8 : vector<2x256xf32>
    %110 = arith.negf %109 : vector<2x256xf32>
    %111 = math.exp %110 : vector<2x256xf32>
    %cst_36 = arith.constant 1.000000e+00 : f32
    %112 = vector.broadcast %cst_36 : f32 to vector<2x256xf32>
    %113 = arith.addf %112, %111 : vector<2x256xf32>
    %114 = arith.divf %112, %113 : vector<2x256xf32>
    %115 = math.tanh %109 : vector<2x256xf32>
    %116 = vector.extract_strided_slice %114 {offsets = [0, 0], sizes = [2, 64], strides = [1, 1]} : vector<2x256xf32> to vector<2x64xf32>
    %117 = vector.extract_strided_slice %114 {offsets = [0, 64], sizes = [2, 64], strides = [1, 1]} : vector<2x256xf32> to vector<2x64xf32>
    %118 = vector.extract_strided_slice %115 {offsets = [0, 128], sizes = [2, 64], strides = [1, 1]} : vector<2x256xf32> to vector<2x64xf32>
    %119 = vector.extract_strided_slice %114 {offsets = [0, 192], sizes = [2, 64], strides = [1, 1]} : vector<2x256xf32> to vector<2x64xf32>
    %120 = arith.mulf %117, %85 : vector<2x64xf32>
    %121 = arith.mulf %116, %118 : vector<2x64xf32>
    %122 = arith.addf %120, %121 : vector<2x64xf32>
    %123 = math.tanh %122 : vector<2x64xf32>
    %124 = arith.mulf %119, %123 : vector<2x64xf32>
    %125 = tpu.concatenate %87, %28 in 1 : vector<2x64xf32>, vector<2x64xf32> -> vector<2x128xf32>
    %cst_37 = arith.constant dense<0.000000e+00> : vector<2x256xf32>
    %126 = tpu.matmul %125, %4, %cst_37 {dimension_numbers = #tpu.dot_dimension_numbers<[1], [0], [0], [1], [0, 0, 1, 1], [], []>} : vector<2x128xf32>, vector<128x256xf32>, vector<2x256xf32> -> vector<2x256xf32>
    %127 = arith.addf %126, %12 : vector<2x256xf32>
    %128 = arith.negf %127 : vector<2x256xf32>
    %129 = math.exp %128 : vector<2x256xf32>
    %cst_38 = arith.constant 1.000000e+00 : f32
    %130 = vector.broadcast %cst_38 : f32 to vector<2x256xf32>
    %131 = arith.addf %130, %129 : vector<2x256xf32>
    %132 = arith.divf %130, %131 : vector<2x256xf32>
    %133 = math.tanh %127 : vector<2x256xf32>
    %134 = vector.extract_strided_slice %132 {offsets = [0, 0], sizes = [2, 64], strides = [1, 1]} : vector<2x256xf32> to vector<2x64xf32>
    %135 = vector.extract_strided_slice %132 {offsets = [0, 64], sizes = [2, 64], strides = [1, 1]} : vector<2x256xf32> to vector<2x64xf32>
    %136 = vector.extract_strided_slice %133 {offsets = [0, 128], sizes = [2, 64], strides = [1, 1]} : vector<2x256xf32> to vector<2x64xf32>
    %137 = vector.extract_strided_slice %132 {offsets = [0, 192], sizes = [2, 64], strides = [1, 1]} : vector<2x256xf32> to vector<2x64xf32>
    %138 = arith.mulf %135, %31 : vector<2x64xf32>
    %139 = arith.mulf %134, %136 : vector<2x64xf32>
    %140 = arith.addf %138, %139 : vector<2x64xf32>
    %141 = math.tanh %140 : vector<2x64xf32>
    %142 = arith.mulf %137, %141 : vector<2x64xf32>
    %143 = vector.extract_strided_slice %25 {offsets = [3, 0, 0], sizes = [1, 2, 256], strides = [1, 1, 1]} : vector<8x2x256xf32> to vector<1x2x256xf32>
    %144 = vector.shape_cast %143 : vector<1x2x256xf32> to vector<2x256xf32>
    %cst_39 = arith.constant dense<0.000000e+00> : vector<2x256xf32>
    %145 = tpu.matmul %106, %0, %cst_39 {dimension_numbers = #tpu.dot_dimension_numbers<[1], [0], [0], [1], [0, 0, 1, 1], [], []>} : vector<2x64xf32>, vector<64x256xf32>, vector<2x256xf32> -> vector<2x256xf32>
    %146 = arith.addf %144, %145 : vector<2x256xf32>
    %147 = arith.negf %146 : vector<2x256xf32>
    %148 = math.exp %147 : vector<2x256xf32>
    %cst_40 = arith.constant 1.000000e+00 : f32
    %149 = vector.broadcast %cst_40 : f32 to vector<2x256xf32>
    %150 = arith.addf %149, %148 : vector<2x256xf32>
    %151 = arith.divf %149, %150 : vector<2x256xf32>
    %152 = math.tanh %146 : vector<2x256xf32>
    %153 = vector.extract_strided_slice %151 {offsets = [0, 0], sizes = [2, 64], strides = [1, 1]} : vector<2x256xf32> to vector<2x64xf32>
    %154 = vector.extract_strided_slice %151 {offsets = [0, 64], sizes = [2, 64], strides = [1, 1]} : vector<2x256xf32> to vector<2x64xf32>
    %155 = vector.extract_strided_slice %152 {offsets = [0, 128], sizes = [2, 64], strides = [1, 1]} : vector<2x256xf32> to vector<2x64xf32>
    %156 = vector.extract_strided_slice %151 {offsets = [0, 192], sizes = [2, 64], strides = [1, 1]} : vector<2x256xf32> to vector<2x64xf32>
    %157 = arith.mulf %154, %104 : vector<2x64xf32>
    %158 = arith.mulf %153, %155 : vector<2x64xf32>
    %159 = arith.addf %157, %158 : vector<2x64xf32>
    %160 = math.tanh %159 : vector<2x64xf32>
    %161 = arith.mulf %156, %160 : vector<2x64xf32>
    %162 = tpu.concatenate %106, %124 in 1 : vector<2x64xf32>, vector<2x64xf32> -> vector<2x128xf32>
    %cst_41 = arith.constant dense<0.000000e+00> : vector<2x256xf32>
    %163 = tpu.matmul %162, %2, %cst_41 {dimension_numbers = #tpu.dot_dimension_numbers<[1], [0], [0], [1], [0, 0, 1, 1], [], []>} : vector<2x128xf32>, vector<128x256xf32>, vector<2x256xf32> -> vector<2x256xf32>
    %164 = arith.addf %163, %8 : vector<2x256xf32>
    %165 = arith.negf %164 : vector<2x256xf32>
    %166 = math.exp %165 : vector<2x256xf32>
    %cst_42 = arith.constant 1.000000e+00 : f32
    %167 = vector.broadcast %cst_42 : f32 to vector<2x256xf32>
    %168 = arith.addf %167, %166 : vector<2x256xf32>
    %169 = arith.divf %167, %168 : vector<2x256xf32>
    %170 = math.tanh %164 : vector<2x256xf32>
    %171 = vector.extract_strided_slice %169 {offsets = [0, 0], sizes = [2, 64], strides = [1, 1]} : vector<2x256xf32> to vector<2x64xf32>
    %172 = vector.extract_strided_slice %169 {offsets = [0, 64], sizes = [2, 64], strides = [1, 1]} : vector<2x256xf32> to vector<2x64xf32>
    %173 = vector.extract_strided_slice %170 {offsets = [0, 128], sizes = [2, 64], strides = [1, 1]} : vector<2x256xf32> to vector<2x64xf32>
    %174 = vector.extract_strided_slice %169 {offsets = [0, 192], sizes = [2, 64], strides = [1, 1]} : vector<2x256xf32> to vector<2x64xf32>
    %175 = arith.mulf %172, %122 : vector<2x64xf32>
    %176 = arith.mulf %171, %173 : vector<2x64xf32>
    %177 = arith.addf %175, %176 : vector<2x64xf32>
    %178 = math.tanh %177 : vector<2x64xf32>
    %179 = arith.mulf %174, %178 : vector<2x64xf32>
    %180 = tpu.concatenate %124, %142 in 1 : vector<2x64xf32>, vector<2x64xf32> -> vector<2x128xf32>
    %cst_43 = arith.constant dense<0.000000e+00> : vector<2x256xf32>
    %181 = tpu.matmul %180, %4, %cst_43 {dimension_numbers = #tpu.dot_dimension_numbers<[1], [0], [0], [1], [0, 0, 1, 1], [], []>} : vector<2x128xf32>, vector<128x256xf32>, vector<2x256xf32> -> vector<2x256xf32>
    %182 = arith.addf %181, %12 : vector<2x256xf32>
    %183 = arith.negf %182 : vector<2x256xf32>
    %184 = math.exp %183 : vector<2x256xf32>
    %cst_44 = arith.constant 1.000000e+00 : f32
    %185 = vector.broadcast %cst_44 : f32 to vector<2x256xf32>
    %186 = arith.addf %185, %184 : vector<2x256xf32>
    %187 = arith.divf %185, %186 : vector<2x256xf32>
    %188 = math.tanh %182 : vector<2x256xf32>
    %189 = vector.extract_strided_slice %187 {offsets = [0, 0], sizes = [2, 64], strides = [1, 1]} : vector<2x256xf32> to vector<2x64xf32>
    %190 = vector.extract_strided_slice %187 {offsets = [0, 64], sizes = [2, 64], strides = [1, 1]} : vector<2x256xf32> to vector<2x64xf32>
    %191 = vector.extract_strided_slice %188 {offsets = [0, 128], sizes = [2, 64], strides = [1, 1]} : vector<2x256xf32> to vector<2x64xf32>
    %192 = vector.extract_strided_slice %187 {offsets = [0, 192], sizes = [2, 64], strides = [1, 1]} : vector<2x256xf32> to vector<2x64xf32>
    %193 = arith.mulf %190, %140 : vector<2x64xf32>
    %194 = arith.mulf %189, %191 : vector<2x64xf32>
    %195 = arith.addf %193, %194 : vector<2x64xf32>
    %196 = math.tanh %195 : vector<2x64xf32>
    %197 = arith.mulf %192, %196 : vector<2x64xf32>
    %198 = vector.extract_strided_slice %25 {offsets = [4, 0, 0], sizes = [1, 2, 256], strides = [1, 1, 1]} : vector<8x2x256xf32> to vector<1x2x256xf32>
    %199 = vector.shape_cast %198 : vector<1x2x256xf32> to vector<2x256xf32>
    %cst_45 = arith.constant dense<0.000000e+00> : vector<2x256xf32>
    %200 = tpu.matmul %161, %0, %cst_45 {dimension_numbers = #tpu.dot_dimension_numbers<[1], [0], [0], [1], [0, 0, 1, 1], [], []>} : vector<2x64xf32>, vector<64x256xf32>, vector<2x256xf32> -> vector<2x256xf32>
    %201 = arith.addf %199, %200 : vector<2x256xf32>
    %202 = arith.negf %201 : vector<2x256xf32>
    %203 = math.exp %202 : vector<2x256xf32>
    %cst_46 = arith.constant 1.000000e+00 : f32
    %204 = vector.broadcast %cst_46 : f32 to vector<2x256xf32>
    %205 = arith.addf %204, %203 : vector<2x256xf32>
    %206 = arith.divf %204, %205 : vector<2x256xf32>
    %207 = math.tanh %201 : vector<2x256xf32>
    %208 = vector.extract_strided_slice %206 {offsets = [0, 0], sizes = [2, 64], strides = [1, 1]} : vector<2x256xf32> to vector<2x64xf32>
    %209 = vector.extract_strided_slice %206 {offsets = [0, 64], sizes = [2, 64], strides = [1, 1]} : vector<2x256xf32> to vector<2x64xf32>
    %210 = vector.extract_strided_slice %207 {offsets = [0, 128], sizes = [2, 64], strides = [1, 1]} : vector<2x256xf32> to vector<2x64xf32>
    %211 = vector.extract_strided_slice %206 {offsets = [0, 192], sizes = [2, 64], strides = [1, 1]} : vector<2x256xf32> to vector<2x64xf32>
    %212 = arith.mulf %209, %159 : vector<2x64xf32>
    %213 = arith.mulf %208, %210 : vector<2x64xf32>
    %214 = arith.addf %212, %213 : vector<2x64xf32>
    %215 = math.tanh %214 : vector<2x64xf32>
    %216 = arith.mulf %211, %215 : vector<2x64xf32>
    %217 = tpu.concatenate %161, %179 in 1 : vector<2x64xf32>, vector<2x64xf32> -> vector<2x128xf32>
    %cst_47 = arith.constant dense<0.000000e+00> : vector<2x256xf32>
    %218 = tpu.matmul %217, %2, %cst_47 {dimension_numbers = #tpu.dot_dimension_numbers<[1], [0], [0], [1], [0, 0, 1, 1], [], []>} : vector<2x128xf32>, vector<128x256xf32>, vector<2x256xf32> -> vector<2x256xf32>
    %219 = arith.addf %218, %8 : vector<2x256xf32>
    %220 = arith.negf %219 : vector<2x256xf32>
    %221 = math.exp %220 : vector<2x256xf32>
    %cst_48 = arith.constant 1.000000e+00 : f32
    %222 = vector.broadcast %cst_48 : f32 to vector<2x256xf32>
    %223 = arith.addf %222, %221 : vector<2x256xf32>
    %224 = arith.divf %222, %223 : vector<2x256xf32>
    %225 = math.tanh %219 : vector<2x256xf32>
    %226 = vector.extract_strided_slice %224 {offsets = [0, 0], sizes = [2, 64], strides = [1, 1]} : vector<2x256xf32> to vector<2x64xf32>
    %227 = vector.extract_strided_slice %224 {offsets = [0, 64], sizes = [2, 64], strides = [1, 1]} : vector<2x256xf32> to vector<2x64xf32>
    %228 = vector.extract_strided_slice %225 {offsets = [0, 128], sizes = [2, 64], strides = [1, 1]} : vector<2x256xf32> to vector<2x64xf32>
    %229 = vector.extract_strided_slice %224 {offsets = [0, 192], sizes = [2, 64], strides = [1, 1]} : vector<2x256xf32> to vector<2x64xf32>
    %230 = arith.mulf %227, %177 : vector<2x64xf32>
    %231 = arith.mulf %226, %228 : vector<2x64xf32>
    %232 = arith.addf %230, %231 : vector<2x64xf32>
    %233 = math.tanh %232 : vector<2x64xf32>
    %234 = arith.mulf %229, %233 : vector<2x64xf32>
    %235 = tpu.concatenate %179, %197 in 1 : vector<2x64xf32>, vector<2x64xf32> -> vector<2x128xf32>
    %cst_49 = arith.constant dense<0.000000e+00> : vector<2x256xf32>
    %236 = tpu.matmul %235, %4, %cst_49 {dimension_numbers = #tpu.dot_dimension_numbers<[1], [0], [0], [1], [0, 0, 1, 1], [], []>} : vector<2x128xf32>, vector<128x256xf32>, vector<2x256xf32> -> vector<2x256xf32>
    %237 = arith.addf %236, %12 : vector<2x256xf32>
    %238 = arith.negf %237 : vector<2x256xf32>
    %239 = math.exp %238 : vector<2x256xf32>
    %cst_50 = arith.constant 1.000000e+00 : f32
    %240 = vector.broadcast %cst_50 : f32 to vector<2x256xf32>
    %241 = arith.addf %240, %239 : vector<2x256xf32>
    %242 = arith.divf %240, %241 : vector<2x256xf32>
    %243 = math.tanh %237 : vector<2x256xf32>
    %244 = vector.extract_strided_slice %242 {offsets = [0, 0], sizes = [2, 64], strides = [1, 1]} : vector<2x256xf32> to vector<2x64xf32>
    %245 = vector.extract_strided_slice %242 {offsets = [0, 64], sizes = [2, 64], strides = [1, 1]} : vector<2x256xf32> to vector<2x64xf32>
    %246 = vector.extract_strided_slice %243 {offsets = [0, 128], sizes = [2, 64], strides = [1, 1]} : vector<2x256xf32> to vector<2x64xf32>
    %247 = vector.extract_strided_slice %242 {offsets = [0, 192], sizes = [2, 64], strides = [1, 1]} : vector<2x256xf32> to vector<2x64xf32>
    %248 = arith.mulf %245, %195 : vector<2x64xf32>
    %249 = arith.mulf %244, %246 : vector<2x64xf32>
    %250 = arith.addf %248, %249 : vector<2x64xf32>
    %251 = math.tanh %250 : vector<2x64xf32>
    %252 = arith.mulf %247, %251 : vector<2x64xf32>
    %253 = vector.extract_strided_slice %25 {offsets = [5, 0, 0], sizes = [1, 2, 256], strides = [1, 1, 1]} : vector<8x2x256xf32> to vector<1x2x256xf32>
    %254 = vector.shape_cast %253 : vector<1x2x256xf32> to vector<2x256xf32>
    %cst_51 = arith.constant dense<0.000000e+00> : vector<2x256xf32>
    %255 = tpu.matmul %216, %0, %cst_51 {dimension_numbers = #tpu.dot_dimension_numbers<[1], [0], [0], [1], [0, 0, 1, 1], [], []>} : vector<2x64xf32>, vector<64x256xf32>, vector<2x256xf32> -> vector<2x256xf32>
    %256 = arith.addf %254, %255 : vector<2x256xf32>
    %257 = arith.negf %256 : vector<2x256xf32>
    %258 = math.exp %257 : vector<2x256xf32>
    %cst_52 = arith.constant 1.000000e+00 : f32
    %259 = vector.broadcast %cst_52 : f32 to vector<2x256xf32>
    %260 = arith.addf %259, %258 : vector<2x256xf32>
    %261 = arith.divf %259, %260 : vector<2x256xf32>
    %262 = math.tanh %256 : vector<2x256xf32>
    %263 = vector.extract_strided_slice %261 {offsets = [0, 0], sizes = [2, 64], strides = [1, 1]} : vector<2x256xf32> to vector<2x64xf32>
    %264 = vector.extract_strided_slice %261 {offsets = [0, 64], sizes = [2, 64], strides = [1, 1]} : vector<2x256xf32> to vector<2x64xf32>
    %265 = vector.extract_strided_slice %262 {offsets = [0, 128], sizes = [2, 64], strides = [1, 1]} : vector<2x256xf32> to vector<2x64xf32>
    %266 = vector.extract_strided_slice %261 {offsets = [0, 192], sizes = [2, 64], strides = [1, 1]} : vector<2x256xf32> to vector<2x64xf32>
    %267 = arith.mulf %264, %214 : vector<2x64xf32>
    %268 = arith.mulf %263, %265 : vector<2x64xf32>
    %269 = arith.addf %267, %268 : vector<2x64xf32>
    %270 = math.tanh %269 : vector<2x64xf32>
    %271 = arith.mulf %266, %270 : vector<2x64xf32>
    %272 = tpu.concatenate %216, %234 in 1 : vector<2x64xf32>, vector<2x64xf32> -> vector<2x128xf32>
    %cst_53 = arith.constant dense<0.000000e+00> : vector<2x256xf32>
    %273 = tpu.matmul %272, %2, %cst_53 {dimension_numbers = #tpu.dot_dimension_numbers<[1], [0], [0], [1], [0, 0, 1, 1], [], []>} : vector<2x128xf32>, vector<128x256xf32>, vector<2x256xf32> -> vector<2x256xf32>
    %274 = arith.addf %273, %8 : vector<2x256xf32>
    %275 = arith.negf %274 : vector<2x256xf32>
    %276 = math.exp %275 : vector<2x256xf32>
    %cst_54 = arith.constant 1.000000e+00 : f32
    %277 = vector.broadcast %cst_54 : f32 to vector<2x256xf32>
    %278 = arith.addf %277, %276 : vector<2x256xf32>
    %279 = arith.divf %277, %278 : vector<2x256xf32>
    %280 = math.tanh %274 : vector<2x256xf32>
    %281 = vector.extract_strided_slice %279 {offsets = [0, 0], sizes = [2, 64], strides = [1, 1]} : vector<2x256xf32> to vector<2x64xf32>
    %282 = vector.extract_strided_slice %279 {offsets = [0, 64], sizes = [2, 64], strides = [1, 1]} : vector<2x256xf32> to vector<2x64xf32>
    %283 = vector.extract_strided_slice %280 {offsets = [0, 128], sizes = [2, 64], strides = [1, 1]} : vector<2x256xf32> to vector<2x64xf32>
    %284 = vector.extract_strided_slice %279 {offsets = [0, 192], sizes = [2, 64], strides = [1, 1]} : vector<2x256xf32> to vector<2x64xf32>
    %285 = arith.mulf %282, %232 : vector<2x64xf32>
    %286 = arith.mulf %281, %283 : vector<2x64xf32>
    %287 = arith.addf %285, %286 : vector<2x64xf32>
    %288 = math.tanh %287 : vector<2x64xf32>
    %289 = arith.mulf %284, %288 : vector<2x64xf32>
    %290 = tpu.concatenate %234, %252 in 1 : vector<2x64xf32>, vector<2x64xf32> -> vector<2x128xf32>
    %cst_55 = arith.constant dense<0.000000e+00> : vector<2x256xf32>
    %291 = tpu.matmul %290, %4, %cst_55 {dimension_numbers = #tpu.dot_dimension_numbers<[1], [0], [0], [1], [0, 0, 1, 1], [], []>} : vector<2x128xf32>, vector<128x256xf32>, vector<2x256xf32> -> vector<2x256xf32>
    %292 = arith.addf %291, %12 : vector<2x256xf32>
    %293 = arith.negf %292 : vector<2x256xf32>
    %294 = math.exp %293 : vector<2x256xf32>
    %cst_56 = arith.constant 1.000000e+00 : f32
    %295 = vector.broadcast %cst_56 : f32 to vector<2x256xf32>
    %296 = arith.addf %295, %294 : vector<2x256xf32>
    %297 = arith.divf %295, %296 : vector<2x256xf32>
    %298 = math.tanh %292 : vector<2x256xf32>
    %299 = vector.extract_strided_slice %297 {offsets = [0, 0], sizes = [2, 64], strides = [1, 1]} : vector<2x256xf32> to vector<2x64xf32>
    %300 = vector.extract_strided_slice %297 {offsets = [0, 64], sizes = [2, 64], strides = [1, 1]} : vector<2x256xf32> to vector<2x64xf32>
    %301 = vector.extract_strided_slice %298 {offsets = [0, 128], sizes = [2, 64], strides = [1, 1]} : vector<2x256xf32> to vector<2x64xf32>
    %302 = vector.extract_strided_slice %297 {offsets = [0, 192], sizes = [2, 64], strides = [1, 1]} : vector<2x256xf32> to vector<2x64xf32>
    %303 = arith.mulf %300, %250 : vector<2x64xf32>
    %304 = arith.mulf %299, %301 : vector<2x64xf32>
    %305 = arith.addf %303, %304 : vector<2x64xf32>
    %306 = math.tanh %305 : vector<2x64xf32>
    %307 = arith.mulf %302, %306 : vector<2x64xf32>
    %308 = vector.extract_strided_slice %25 {offsets = [6, 0, 0], sizes = [1, 2, 256], strides = [1, 1, 1]} : vector<8x2x256xf32> to vector<1x2x256xf32>
    %309 = vector.shape_cast %308 : vector<1x2x256xf32> to vector<2x256xf32>
    %cst_57 = arith.constant dense<0.000000e+00> : vector<2x256xf32>
    %310 = tpu.matmul %271, %0, %cst_57 {dimension_numbers = #tpu.dot_dimension_numbers<[1], [0], [0], [1], [0, 0, 1, 1], [], []>} : vector<2x64xf32>, vector<64x256xf32>, vector<2x256xf32> -> vector<2x256xf32>
    %311 = arith.addf %309, %310 : vector<2x256xf32>
    %312 = arith.negf %311 : vector<2x256xf32>
    %313 = math.exp %312 : vector<2x256xf32>
    %cst_58 = arith.constant 1.000000e+00 : f32
    %314 = vector.broadcast %cst_58 : f32 to vector<2x256xf32>
    %315 = arith.addf %314, %313 : vector<2x256xf32>
    %316 = arith.divf %314, %315 : vector<2x256xf32>
    %317 = math.tanh %311 : vector<2x256xf32>
    %318 = vector.extract_strided_slice %316 {offsets = [0, 0], sizes = [2, 64], strides = [1, 1]} : vector<2x256xf32> to vector<2x64xf32>
    %319 = vector.extract_strided_slice %316 {offsets = [0, 64], sizes = [2, 64], strides = [1, 1]} : vector<2x256xf32> to vector<2x64xf32>
    %320 = vector.extract_strided_slice %317 {offsets = [0, 128], sizes = [2, 64], strides = [1, 1]} : vector<2x256xf32> to vector<2x64xf32>
    %321 = vector.extract_strided_slice %316 {offsets = [0, 192], sizes = [2, 64], strides = [1, 1]} : vector<2x256xf32> to vector<2x64xf32>
    %322 = arith.mulf %319, %269 : vector<2x64xf32>
    %323 = arith.mulf %318, %320 : vector<2x64xf32>
    %324 = arith.addf %322, %323 : vector<2x64xf32>
    %325 = math.tanh %324 : vector<2x64xf32>
    %326 = arith.mulf %321, %325 : vector<2x64xf32>
    %327 = tpu.concatenate %271, %289 in 1 : vector<2x64xf32>, vector<2x64xf32> -> vector<2x128xf32>
    %cst_59 = arith.constant dense<0.000000e+00> : vector<2x256xf32>
    %328 = tpu.matmul %327, %2, %cst_59 {dimension_numbers = #tpu.dot_dimension_numbers<[1], [0], [0], [1], [0, 0, 1, 1], [], []>} : vector<2x128xf32>, vector<128x256xf32>, vector<2x256xf32> -> vector<2x256xf32>
    %329 = arith.addf %328, %8 : vector<2x256xf32>
    %330 = arith.negf %329 : vector<2x256xf32>
    %331 = math.exp %330 : vector<2x256xf32>
    %cst_60 = arith.constant 1.000000e+00 : f32
    %332 = vector.broadcast %cst_60 : f32 to vector<2x256xf32>
    %333 = arith.addf %332, %331 : vector<2x256xf32>
    %334 = arith.divf %332, %333 : vector<2x256xf32>
    %335 = math.tanh %329 : vector<2x256xf32>
    %336 = vector.extract_strided_slice %334 {offsets = [0, 0], sizes = [2, 64], strides = [1, 1]} : vector<2x256xf32> to vector<2x64xf32>
    %337 = vector.extract_strided_slice %334 {offsets = [0, 64], sizes = [2, 64], strides = [1, 1]} : vector<2x256xf32> to vector<2x64xf32>
    %338 = vector.extract_strided_slice %335 {offsets = [0, 128], sizes = [2, 64], strides = [1, 1]} : vector<2x256xf32> to vector<2x64xf32>
    %339 = vector.extract_strided_slice %334 {offsets = [0, 192], sizes = [2, 64], strides = [1, 1]} : vector<2x256xf32> to vector<2x64xf32>
    %340 = arith.mulf %337, %287 : vector<2x64xf32>
    %341 = arith.mulf %336, %338 : vector<2x64xf32>
    %342 = arith.addf %340, %341 : vector<2x64xf32>
    %343 = math.tanh %342 : vector<2x64xf32>
    %344 = arith.mulf %339, %343 : vector<2x64xf32>
    %345 = tpu.concatenate %289, %307 in 1 : vector<2x64xf32>, vector<2x64xf32> -> vector<2x128xf32>
    %cst_61 = arith.constant dense<0.000000e+00> : vector<2x256xf32>
    %346 = tpu.matmul %345, %4, %cst_61 {dimension_numbers = #tpu.dot_dimension_numbers<[1], [0], [0], [1], [0, 0, 1, 1], [], []>} : vector<2x128xf32>, vector<128x256xf32>, vector<2x256xf32> -> vector<2x256xf32>
    %347 = arith.addf %346, %12 : vector<2x256xf32>
    %348 = arith.negf %347 : vector<2x256xf32>
    %349 = math.exp %348 : vector<2x256xf32>
    %cst_62 = arith.constant 1.000000e+00 : f32
    %350 = vector.broadcast %cst_62 : f32 to vector<2x256xf32>
    %351 = arith.addf %350, %349 : vector<2x256xf32>
    %352 = arith.divf %350, %351 : vector<2x256xf32>
    %353 = math.tanh %347 : vector<2x256xf32>
    %354 = vector.extract_strided_slice %352 {offsets = [0, 0], sizes = [2, 64], strides = [1, 1]} : vector<2x256xf32> to vector<2x64xf32>
    %355 = vector.extract_strided_slice %352 {offsets = [0, 64], sizes = [2, 64], strides = [1, 1]} : vector<2x256xf32> to vector<2x64xf32>
    %356 = vector.extract_strided_slice %353 {offsets = [0, 128], sizes = [2, 64], strides = [1, 1]} : vector<2x256xf32> to vector<2x64xf32>
    %357 = vector.extract_strided_slice %352 {offsets = [0, 192], sizes = [2, 64], strides = [1, 1]} : vector<2x256xf32> to vector<2x64xf32>
    %358 = arith.mulf %355, %305 : vector<2x64xf32>
    %359 = arith.mulf %354, %356 : vector<2x64xf32>
    %360 = arith.addf %358, %359 : vector<2x64xf32>
    %361 = math.tanh %360 : vector<2x64xf32>
    %362 = arith.mulf %357, %361 : vector<2x64xf32>
    %363 = vector.extract_strided_slice %25 {offsets = [7, 0, 0], sizes = [1, 2, 256], strides = [1, 1, 1]} : vector<8x2x256xf32> to vector<1x2x256xf32>
    %364 = vector.shape_cast %363 : vector<1x2x256xf32> to vector<2x256xf32>
    %cst_63 = arith.constant dense<0.000000e+00> : vector<2x256xf32>
    %365 = tpu.matmul %326, %0, %cst_63 {dimension_numbers = #tpu.dot_dimension_numbers<[1], [0], [0], [1], [0, 0, 1, 1], [], []>} : vector<2x64xf32>, vector<64x256xf32>, vector<2x256xf32> -> vector<2x256xf32>
    %366 = arith.addf %364, %365 : vector<2x256xf32>
    %367 = arith.negf %366 : vector<2x256xf32>
    %368 = math.exp %367 : vector<2x256xf32>
    %cst_64 = arith.constant 1.000000e+00 : f32
    %369 = vector.broadcast %cst_64 : f32 to vector<2x256xf32>
    %370 = arith.addf %369, %368 : vector<2x256xf32>
    %371 = arith.divf %369, %370 : vector<2x256xf32>
    %372 = math.tanh %366 : vector<2x256xf32>
    %373 = vector.extract_strided_slice %371 {offsets = [0, 0], sizes = [2, 64], strides = [1, 1]} : vector<2x256xf32> to vector<2x64xf32>
    %374 = vector.extract_strided_slice %371 {offsets = [0, 64], sizes = [2, 64], strides = [1, 1]} : vector<2x256xf32> to vector<2x64xf32>
    %375 = vector.extract_strided_slice %372 {offsets = [0, 128], sizes = [2, 64], strides = [1, 1]} : vector<2x256xf32> to vector<2x64xf32>
    %376 = vector.extract_strided_slice %371 {offsets = [0, 192], sizes = [2, 64], strides = [1, 1]} : vector<2x256xf32> to vector<2x64xf32>
    %377 = arith.mulf %374, %324 : vector<2x64xf32>
    %378 = arith.mulf %373, %375 : vector<2x64xf32>
    %379 = arith.addf %377, %378 : vector<2x64xf32>
    %380 = math.tanh %379 : vector<2x64xf32>
    %381 = arith.mulf %376, %380 : vector<2x64xf32>
    %382 = tpu.concatenate %326, %344 in 1 : vector<2x64xf32>, vector<2x64xf32> -> vector<2x128xf32>
    %cst_65 = arith.constant dense<0.000000e+00> : vector<2x256xf32>
    %383 = tpu.matmul %382, %2, %cst_65 {dimension_numbers = #tpu.dot_dimension_numbers<[1], [0], [0], [1], [0, 0, 1, 1], [], []>} : vector<2x128xf32>, vector<128x256xf32>, vector<2x256xf32> -> vector<2x256xf32>
    %384 = arith.addf %383, %8 : vector<2x256xf32>
    %385 = arith.negf %384 : vector<2x256xf32>
    %386 = math.exp %385 : vector<2x256xf32>
    %cst_66 = arith.constant 1.000000e+00 : f32
    %387 = vector.broadcast %cst_66 : f32 to vector<2x256xf32>
    %388 = arith.addf %387, %386 : vector<2x256xf32>
    %389 = arith.divf %387, %388 : vector<2x256xf32>
    %390 = math.tanh %384 : vector<2x256xf32>
    %391 = vector.extract_strided_slice %389 {offsets = [0, 0], sizes = [2, 64], strides = [1, 1]} : vector<2x256xf32> to vector<2x64xf32>
    %392 = vector.extract_strided_slice %389 {offsets = [0, 64], sizes = [2, 64], strides = [1, 1]} : vector<2x256xf32> to vector<2x64xf32>
    %393 = vector.extract_strided_slice %390 {offsets = [0, 128], sizes = [2, 64], strides = [1, 1]} : vector<2x256xf32> to vector<2x64xf32>
    %394 = vector.extract_strided_slice %389 {offsets = [0, 192], sizes = [2, 64], strides = [1, 1]} : vector<2x256xf32> to vector<2x64xf32>
    %395 = arith.mulf %392, %342 : vector<2x64xf32>
    %396 = arith.mulf %391, %393 : vector<2x64xf32>
    %397 = arith.addf %395, %396 : vector<2x64xf32>
    %398 = math.tanh %397 : vector<2x64xf32>
    %399 = arith.mulf %394, %398 : vector<2x64xf32>
    %400 = tpu.concatenate %344, %362 in 1 : vector<2x64xf32>, vector<2x64xf32> -> vector<2x128xf32>
    %cst_67 = arith.constant dense<0.000000e+00> : vector<2x256xf32>
    %401 = tpu.matmul %400, %4, %cst_67 {dimension_numbers = #tpu.dot_dimension_numbers<[1], [0], [0], [1], [0, 0, 1, 1], [], []>} : vector<2x128xf32>, vector<128x256xf32>, vector<2x256xf32> -> vector<2x256xf32>
    %402 = arith.addf %401, %12 : vector<2x256xf32>
    %403 = arith.negf %402 : vector<2x256xf32>
    %404 = math.exp %403 : vector<2x256xf32>
    %cst_68 = arith.constant 1.000000e+00 : f32
    %405 = vector.broadcast %cst_68 : f32 to vector<2x256xf32>
    %406 = arith.addf %405, %404 : vector<2x256xf32>
    %407 = arith.divf %405, %406 : vector<2x256xf32>
    %408 = math.tanh %402 : vector<2x256xf32>
    %409 = vector.extract_strided_slice %407 {offsets = [0, 0], sizes = [2, 64], strides = [1, 1]} : vector<2x256xf32> to vector<2x64xf32>
    %410 = vector.extract_strided_slice %407 {offsets = [0, 64], sizes = [2, 64], strides = [1, 1]} : vector<2x256xf32> to vector<2x64xf32>
    %411 = vector.extract_strided_slice %408 {offsets = [0, 128], sizes = [2, 64], strides = [1, 1]} : vector<2x256xf32> to vector<2x64xf32>
    %412 = vector.extract_strided_slice %407 {offsets = [0, 192], sizes = [2, 64], strides = [1, 1]} : vector<2x256xf32> to vector<2x64xf32>
    %413 = arith.mulf %410, %360 : vector<2x64xf32>
    %414 = arith.mulf %409, %411 : vector<2x64xf32>
    %415 = arith.addf %413, %414 : vector<2x64xf32>
    %416 = math.tanh %415 : vector<2x64xf32>
    %417 = arith.mulf %412, %416 : vector<2x64xf32>
    %418 = tpu.concatenate %381, %399 in 1 : vector<2x64xf32>, vector<2x64xf32> -> vector<2x128xf32>
    %cst_69 = arith.constant dense<0.000000e+00> : vector<2x256xf32>
    %419 = tpu.matmul %418, %2, %cst_69 {dimension_numbers = #tpu.dot_dimension_numbers<[1], [0], [0], [1], [0, 0, 1, 1], [], []>} : vector<2x128xf32>, vector<128x256xf32>, vector<2x256xf32> -> vector<2x256xf32>
    %420 = arith.addf %419, %8 : vector<2x256xf32>
    %421 = arith.negf %420 : vector<2x256xf32>
    %422 = math.exp %421 : vector<2x256xf32>
    %cst_70 = arith.constant 1.000000e+00 : f32
    %423 = vector.broadcast %cst_70 : f32 to vector<2x256xf32>
    %424 = arith.addf %423, %422 : vector<2x256xf32>
    %425 = arith.divf %423, %424 : vector<2x256xf32>
    %426 = math.tanh %420 : vector<2x256xf32>
    %427 = vector.extract_strided_slice %425 {offsets = [0, 0], sizes = [2, 64], strides = [1, 1]} : vector<2x256xf32> to vector<2x64xf32>
    %428 = vector.extract_strided_slice %425 {offsets = [0, 64], sizes = [2, 64], strides = [1, 1]} : vector<2x256xf32> to vector<2x64xf32>
    %429 = vector.extract_strided_slice %426 {offsets = [0, 128], sizes = [2, 64], strides = [1, 1]} : vector<2x256xf32> to vector<2x64xf32>
    %430 = vector.extract_strided_slice %425 {offsets = [0, 192], sizes = [2, 64], strides = [1, 1]} : vector<2x256xf32> to vector<2x64xf32>
    %431 = arith.mulf %428, %397 : vector<2x64xf32>
    %432 = arith.mulf %427, %429 : vector<2x64xf32>
    %433 = arith.addf %431, %432 : vector<2x64xf32>
    %434 = math.tanh %433 : vector<2x64xf32>
    %435 = arith.mulf %430, %434 : vector<2x64xf32>
    %436 = tpu.concatenate %399, %417 in 1 : vector<2x64xf32>, vector<2x64xf32> -> vector<2x128xf32>
    %cst_71 = arith.constant dense<0.000000e+00> : vector<2x256xf32>
    %437 = tpu.matmul %436, %4, %cst_71 {dimension_numbers = #tpu.dot_dimension_numbers<[1], [0], [0], [1], [0, 0, 1, 1], [], []>} : vector<2x128xf32>, vector<128x256xf32>, vector<2x256xf32> -> vector<2x256xf32>
    %438 = arith.addf %437, %12 : vector<2x256xf32>
    %439 = arith.negf %438 : vector<2x256xf32>
    %440 = math.exp %439 : vector<2x256xf32>
    %cst_72 = arith.constant 1.000000e+00 : f32
    %441 = vector.broadcast %cst_72 : f32 to vector<2x256xf32>
    %442 = arith.addf %441, %440 : vector<2x256xf32>
    %443 = arith.divf %441, %442 : vector<2x256xf32>
    %444 = math.tanh %438 : vector<2x256xf32>
    %445 = vector.extract_strided_slice %443 {offsets = [0, 0], sizes = [2, 64], strides = [1, 1]} : vector<2x256xf32> to vector<2x64xf32>
    %446 = vector.extract_strided_slice %443 {offsets = [0, 64], sizes = [2, 64], strides = [1, 1]} : vector<2x256xf32> to vector<2x64xf32>
    %447 = vector.extract_strided_slice %444 {offsets = [0, 128], sizes = [2, 64], strides = [1, 1]} : vector<2x256xf32> to vector<2x64xf32>
    %448 = vector.extract_strided_slice %443 {offsets = [0, 192], sizes = [2, 64], strides = [1, 1]} : vector<2x256xf32> to vector<2x64xf32>
    %449 = arith.mulf %446, %415 : vector<2x64xf32>
    %450 = arith.mulf %445, %447 : vector<2x64xf32>
    %451 = arith.addf %449, %450 : vector<2x64xf32>
    %452 = math.tanh %451 : vector<2x64xf32>
    %453 = arith.mulf %448, %452 : vector<2x64xf32>
    %454 = tpu.concatenate %435, %453 in 1 : vector<2x64xf32>, vector<2x64xf32> -> vector<2x128xf32>
    %cst_73 = arith.constant dense<0.000000e+00> : vector<2x256xf32>
    %455 = tpu.matmul %454, %4, %cst_73 {dimension_numbers = #tpu.dot_dimension_numbers<[1], [0], [0], [1], [0, 0, 1, 1], [], []>} : vector<2x128xf32>, vector<128x256xf32>, vector<2x256xf32> -> vector<2x256xf32>
    %456 = arith.addf %455, %12 : vector<2x256xf32>
    %457 = arith.negf %456 : vector<2x256xf32>
    %458 = math.exp %457 : vector<2x256xf32>
    %cst_74 = arith.constant 1.000000e+00 : f32
    %459 = vector.broadcast %cst_74 : f32 to vector<2x256xf32>
    %460 = arith.addf %459, %458 : vector<2x256xf32>
    %461 = arith.divf %459, %460 : vector<2x256xf32>
    %462 = math.tanh %456 : vector<2x256xf32>
    %463 = vector.extract_strided_slice %461 {offsets = [0, 0], sizes = [2, 64], strides = [1, 1]} : vector<2x256xf32> to vector<2x64xf32>
    %464 = vector.extract_strided_slice %461 {offsets = [0, 64], sizes = [2, 64], strides = [1, 1]} : vector<2x256xf32> to vector<2x64xf32>
    %465 = vector.extract_strided_slice %462 {offsets = [0, 128], sizes = [2, 64], strides = [1, 1]} : vector<2x256xf32> to vector<2x64xf32>
    %466 = vector.extract_strided_slice %461 {offsets = [0, 192], sizes = [2, 64], strides = [1, 1]} : vector<2x256xf32> to vector<2x64xf32>
    %467 = arith.mulf %464, %451 : vector<2x64xf32>
    %468 = arith.mulf %463, %465 : vector<2x64xf32>
    %469 = arith.addf %467, %468 : vector<2x64xf32>
    %470 = math.tanh %469 : vector<2x64xf32>
    %471 = arith.mulf %466, %470 : vector<2x64xf32>
    %cst_75 = arith.constant dense<0.000000e+00> : vector<2x2xf32>
    %472 = tpu.matmul %471, %13, %cst_75 {dimension_numbers = #tpu.dot_dimension_numbers<[1], [0], [0], [1], [0, 0, 1, 1], [], []>} : vector<2x64xf32>, vector<64x2xf32>, vector<2x2xf32> -> vector<2x2xf32>
    %473 = vector.broadcast %14 : vector<1x2xf32> to vector<2x2xf32>
    %474 = arith.addf %472, %473 : vector<2x2xf32>
    %c0_76 = arith.constant 0 : index
    %c0_77 = arith.constant 0 : index
    %475 = vector.load %arg9[%c0_76, %c0_77] : memref<2x2xf32, #tpu.memory_space<vmem>>, vector<2x2xf32>
    tpu.vector_store %arg9[%c0_76, %c0_77], %474 {strides = array<i32>} : memref<2x2xf32, #tpu.memory_space<vmem>>, vector<2x2xf32>,
    return
  }
  func.func @transform_0(%arg0: i32) -> (i32, i32) {
    %c0_i32 = arith.constant 0 : i32
    %c0_i32_0 = arith.constant 0 : i32
    return %c0_i32, %arg0 : i32, i32
  }
  func.func @transform_1(%arg0: i32) -> (i32, i32) {
    %c0_i32 = arith.constant 0 : i32
    %c0_i32_0 = arith.constant 0 : i32
    %c0_i32_1 = arith.constant 0 : i32
    return %c0_i32, %c0_i32_0 : i32, i32
  }
  func.func @transform_2(%arg0: i32) -> (i32, i32) {
    %c0_i32 = arith.constant 0 : i32
    %c0_i32_0 = arith.constant 0 : i32
    %c0_i32_1 = arith.constant 0 : i32
    return %c0_i32, %c0_i32_0 : i32, i32
  }
  func.func @transform_3(%arg0: i32) -> (i32, i32, i32) {
    %c0_i32 = arith.constant 0 : i32
    %c0_i32_0 = arith.constant 0 : i32
    %c0_i32_1 = arith.constant 0 : i32
    %c0_i32_2 = arith.constant 0 : i32
    return %c0_i32, %c0_i32_0, %c0_i32_1 : i32, i32, i32
  }
  func.func @transform_4(%arg0: i32) -> (i32, i32) {
    %c0_i32 = arith.constant 0 : i32
    %c0_i32_0 = arith.constant 0 : i32
    %c0_i32_1 = arith.constant 0 : i32
    return %c0_i32, %c0_i32_0 : i32, i32
  }
  func.func @transform_5(%arg0: i32) -> (i32, i32, i32) {
    %c0_i32 = arith.constant 0 : i32
    %c0_i32_0 = arith.constant 0 : i32
    %c0_i32_1 = arith.constant 0 : i32
    %c0_i32_2 = arith.constant 0 : i32
    return %c0_i32, %c0_i32_0, %c0_i32_1 : i32, i32, i32
  }
  func.func @transform_6(%arg0: i32) -> (i32, i32) {
    %c0_i32 = arith.constant 0 : i32
    %c0_i32_0 = arith.constant 0 : i32
    %c0_i32_1 = arith.constant 0 : i32
    return %c0_i32, %c0_i32_0 : i32, i32
  }
  func.func @transform_7(%arg0: i32) -> (i32, i32) {
    %c0_i32 = arith.constant 0 : i32
    %c0_i32_0 = arith.constant 0 : i32
    %c0_i32_1 = arith.constant 0 : i32
    return %c0_i32, %c0_i32_0 : i32, i32
  }
  func.func @transform_8(%arg0: i32) -> (i32, i32) {
    %c0_i32 = arith.constant 0 : i32
    %c0_i32_0 = arith.constant 0 : i32
    return %arg0, %c0_i32 : i32, i32
  }
}

</mosaic_0001>

<llo_original>
// kernel: tpu_custom_call.1
$region0: #{tpu_custom_call.1}
  #allocation0 [shape = 'u32[]', space=smem, size = 0x4, offset = 0x4, fixed_abs, tag = 'smem constant byte address 0x4 - core index']
  #allocation1 [shape = 'u32[72,128]{1,0:T(1,128)}', space=vmem, size = 0x9000, scoped, tag = 'internal scratch']
  %s0 = inlined_call_operand.vmem [shape: f32[8,2], index: 0, kind: input, shape index: {}]
  %s1 = inlined_call_operand.vmem [shape: f32[1,256], index: 1, kind: input, shape index: {}]
  %s2 = inlined_call_operand.hbm [shape: f32[64,256], index: 2, kind: input, shape index: {}]
  %s3 = inlined_call_operand.hbm [shape: f32[2,128,256], index: 3, kind: input, shape index: {}]
  %s4 = inlined_call_operand.vmem [shape: f32[1,256], index: 4, kind: input, shape index: {}]
  %s5 = inlined_call_operand.vmem [shape: f32[2,1,256], index: 5, kind: input, shape index: {}]
  %s6 = inlined_call_operand.vmem [shape: f32[64,2], index: 6, kind: input, shape index: {}]
  %s7 = inlined_call_operand.vmem [shape: f32[1,2], index: 7, kind: input, shape index: {}]
  %s8 = inlined_call_operand.hbm [shape: f32[2,2], index: 8, kind: output, shape index: {}]
  %s9 = sld [smem:[#allocation0]]
  $region50: #{tpu_custom_call.1} parent=0
    _
  %s11 = ssub.s32 1, %s9
  %s12 = scalar_select 0, %s11, %s9
  $region1: #{tpu_custom_call.1} parent=0
    #allocation2 [shape = 'u8[65536]{0}', space=vmem, size = 0x10000, scoped, tag = 'input window, operand 2, single buffered']
    #allocation3 [shape = 's32[1]{0}', space=sflag, size = 0x4, scoped, tag = 'scoped memory for tpu_custom_call.1']
    #allocation4 [shape = 's32[1]{0}', space=sflag, size = 0x4, scoped, tag = 'scoped memory for tpu_custom_call.1']
    #allocation5 [shape = 'u8[262144]{0}', space=vmem, size = 0x40000, scoped, tag = 'input window, operand 3, single buffered']
    #allocation6 [shape = 's32[1]{0}', space=sflag, size = 0x4, scoped, tag = 'scoped memory for tpu_custom_call.1']
    #allocation7 [shape = 'u8[1024]{0}', space=vmem, size = 0x400, scoped, tag = 'output window, operand 0, single buffered']
    %13 = vsyncpa [#allocation3], 0
    %14 = vsyncpa [#allocation6], 0
    %15 = vsyncpa [#allocation4], 0
    // Predicated region
    $region2: #{tpu_custom_call.1} parent=1 // pred_check
      _
    $region3: #{tpu_custom_call.1} parent=1 // pred_check_branch
      %17 = sbr.rel (0) target = $region5
    $region4: #{tpu_custom_call.1} parent=1 // pred_region
      _
    $region5: #{tpu_custom_call.1} parent=1 // pred_fallthru
      _
    // Predicated region
    $region6: #{tpu_custom_call.1} parent=1 // pred_check
      _
    $region7: #{tpu_custom_call.1} parent=1 // pred_check_branch
      %19 = sbr.rel (0) target = $region9
    $region8: #{tpu_custom_call.1} parent=1 // pred_region
      _
    $region9: #{tpu_custom_call.1} parent=1 // pred_fallthru
      _
    // Predicated region
    $region10: #{tpu_custom_call.1} parent=1 // pred_check
      _
    $region11: #{tpu_custom_call.1} parent=1 // pred_check_branch
      %21 = sbr.rel (0) target = $region13
    $region12: #{tpu_custom_call.1} parent=1 // pred_region
      %23 = vsyncadd [#allocation3], 0
      %s24 = sshll.u32 %s2, 4
      %s25 = int_to_ptr.hbm [resolvable:$true] %s24
      %s26 = sshll.u32 [#allocation2], 4
      %s27 = int_to_ptr.vmem [resolvable:$true] %s26
      %32 = dma.hbm_to_vmem [thread:$0]  %s25, 2048, %s27, [#allocation3], 256, 256, 16
    $region13: #{tpu_custom_call.1} parent=1 // pred_fallthru
      _
    // Predicated region
    $region14: #{tpu_custom_call.1} parent=1 // pred_check
      _
    $region15: #{tpu_custom_call.1} parent=1 // pred_check_branch
      %34 = sbr.rel (0) target = $region17
    $region16: #{tpu_custom_call.1} parent=1 // pred_region
      %36 = vsyncadd [#allocation6], 0
      %s37 = sshll.u32 %s3, 4
      %s38 = int_to_ptr.hbm [resolvable:$true] %s37
      %s39 = sshll.u32 [#allocation5], 4
      %s40 = int_to_ptr.vmem [resolvable:$true] %s39
      %45 = dma.hbm_to_vmem [thread:$0]  %s38, 8192, %s40, [#allocation6], 256, 256, 16
    $region17: #{tpu_custom_call.1} parent=1 // pred_fallthru
      _
    // Predicated region
    $region18: #{tpu_custom_call.1} parent=1 // pred_check
      _
    $region19: #{tpu_custom_call.1} parent=1 // pred_check_branch
      %47 = sbr.rel (0) target = $region21
    $region20: #{tpu_custom_call.1} parent=1 // pred_region
      _
    $region21: #{tpu_custom_call.1} parent=1 // pred_fallthru
      _
    // Predicated region
    $region22: #{tpu_custom_call.1} parent=1 // pred_check
      _
    $region23: #{tpu_custom_call.1} parent=1 // pred_check_branch
      %49 = sbr.rel (0) target = $region25
    $region24: #{tpu_custom_call.1} parent=1 // pred_region
      _
    $region25: #{tpu_custom_call.1} parent=1 // pred_fallthru
      _
    // Predicated region
    $region26: #{tpu_custom_call.1} parent=1 // pred_check
      _
    $region27: #{tpu_custom_call.1} parent=1 // pred_check_branch
      %51 = sbr.rel (0) target = $region29
    $region28: #{tpu_custom_call.1} parent=1 // pred_region
      _
    $region29: #{tpu_custom_call.1} parent=1 // pred_fallthru
      _
    // Predicated region
    $region30: #{tpu_custom_call.1} parent=1 // pred_check
      _
    $region31: #{tpu_custom_call.1} parent=1 // pred_check_branch
      %53 = sbr.rel (0) target = $region33
    $region32: #{tpu_custom_call.1} parent=1 // pred_region
      _
    $region33: #{tpu_custom_call.1} parent=1 // pred_fallthru
      _
    // Predicated region
    $region34: #{tpu_custom_call.1} parent=1 // pred_check
      _
    $region35: #{tpu_custom_call.1} parent=1 // pred_check_branch
      %55 = sbr.rel (0) target = $region37
    $region36: #{tpu_custom_call.1} parent=1 // pred_region
      %57 = dma.done [#allocation3], 2048
    $region37: #{tpu_custom_call.1} parent=1 // pred_fallthru
      _
    // Predicated region
    $region38: #{tpu_custom_call.1} parent=1 // pred_check
      _
    $region39: #{tpu_custom_call.1} parent=1 // pred_check_branch
      %59 = sbr.rel (0) target = $region41
    $region40: #{tpu_custom_call.1} parent=1 // pred_region
      %61 = dma.done [#allocation6], 8192
    $region41: #{tpu_custom_call.1} parent=1 // pred_fallthru
      _
    %v62 = vld [vmem:[#allocation2] sm:$0xff]
    %v63 = vld [vmem:[#allocation2 + $0x8] sm:$0xff]
    %v64 = vld [vmem:[#allocation2 + $0x10] sm:$0xff]
    %v65 = vld [vmem:[#allocation2 + $0x18] sm:$0xff]
    %v66 = vld [vmem:[#allocation2 + $0x20] sm:$0xff]
    %v67 = vld [vmem:[#allocation2 + $0x28] sm:$0xff]
    %v68 = vld [vmem:[#allocation2 + $0x30] sm:$0xff]
    %v69 = vld [vmem:[#allocation2 + $0x38] sm:$0xff]
    %v70 = vld [vmem:[#allocation2 + $0x40] sm:$0xff]
    %v71 = vld [vmem:[#allocation2 + $0x48] sm:$0xff]
    %v72 = vld [vmem:[#allocation2 + $0x50] sm:$0xff]
    %v73 = vld [vmem:[#allocation2 + $0x58] sm:$0xff]
    %v74 = vld [vmem:[#allocation2 + $0x60] sm:$0xff]
    %v75 = vld [vmem:[#allocation2 + $0x68] sm:$0xff]
    %v76 = vld [vmem:[#allocation2 + $0x70] sm:$0xff]
    %v77 = vld [vmem:[#allocation2 + $0x78] sm:$0xff]
    %v78 = vld [vmem:[#allocation5] sm:$0xff]
    %v79 = vld [vmem:[#allocation5 + $0x8] sm:$0xff]
    %v80 = vld [vmem:[#allocation5 + $0x10] sm:$0xff]
    %v81 = vld [vmem:[#allocation5 + $0x18] sm:$0xff]
    %v82 = vld [vmem:[#allocation5 + $0x20] sm:$0xff]
    %v83 = vld [vmem:[#allocation5 + $0x28] sm:$0xff]
    %v84 = vld [vmem:[#allocation5 + $0x30] sm:$0xff]
    %v85 = vld [vmem:[#allocation5 + $0x38] sm:$0xff]
    %v86 = vld [vmem:[#allocation5 + $0x40] sm:$0xff]
    %v87 = vld [vmem:[#allocation5 + $0x48] sm:$0xff]
    %v88 = vld [vmem:[#allocation5 + $0x50] sm:$0xff]
    %v89 = vld [vmem:[#allocation5 + $0x58] sm:$0xff]
    %v90 = vld [vmem:[#allocation5 + $0x60] sm:$0xff]
    %v91 = vld [vmem:[#allocation5 + $0x68] sm:$0xff]
    %v92 = vld [vmem:[#allocation5 + $0x70] sm:$0xff]
    %v93 = vld [vmem:[#allocation5 + $0x78] sm:$0xff]
    %v94 = vld [vmem:[#allocation5 + $0x80] sm:$0xff]
    %v95 = vld [vmem:[#allocation5 + $0x88] sm:$0xff]
    %v96 = vld [vmem:[#allocation5 + $0x90] sm:$0xff]
    %v97 = vld [vmem:[#allocation5 + $0x98] sm:$0xff]
    %v98 = vld [vmem:[#allocation5 + $0xa0] sm:$0xff]
    %v99 = vld [vmem:[#allocation5 + $0xa8] sm:$0xff]
    %v100 = vld [vmem:[#allocation5 + $0xb0] sm:$0xff]
    %v101 = vld [vmem:[#allocation5 + $0xb8] sm:$0xff]
    %v102 = vld [vmem:[#allocation5 + $0xc0] sm:$0xff]
    %v103 = vld [vmem:[#allocation5 + $0xc8] sm:$0xff]
    %v104 = vld [vmem:[#allocation5 + $0xd0] sm:$0xff]
    %v105 = vld [vmem:[#allocation5 + $0xd8] sm:$0xff]
    %v106 = vld [vmem:[#allocation5 + $0xe0] sm:$0xff]
    %v107 = vld [vmem:[#allocation5 + $0xe8] sm:$0xff]
    %v108 = vld [vmem:[#allocation5 + $0xf0] sm:$0xff]
    %v109 = vld [vmem:[#allocation5 + $0xf8] sm:$0xff]
    %s110 = scalar_lea.vmem [#allocation5], 256
    %v111 = vld [vmem:[%s110] sm:$0xff]
    %v112 = vld [vmem:[%s110 + $0x8] sm:$0xff]
    %v113 = vld [vmem:[%s110 + $0x10] sm:$0xff]
    %v114 = vld [vmem:[%s110 + $0x18] sm:$0xff]
    %v115 = vld [vmem:[%s110 + $0x20] sm:$0xff]
    %v116 = vld [vmem:[%s110 + $0x28] sm:$0xff]
    %v117 = vld [vmem:[%s110 + $0x30] sm:$0xff]
    %v118 = vld [vmem:[%s110 + $0x38] sm:$0xff]
    %v119 = vld [vmem:[%s110 + $0x40] sm:$0xff]
    %v120 = vld [vmem:[%s110 + $0x48] sm:$0xff]
    %v121 = vld [vmem:[%s110 + $0x50] sm:$0xff]
    %v122 = vld [vmem:[%s110 + $0x58] sm:$0xff]
    %v123 = vld [vmem:[%s110 + $0x60] sm:$0xff]
    %v124 = vld [vmem:[%s110 + $0x68] sm:$0xff]
    %v125 = vld [vmem:[%s110 + $0x70] sm:$0xff]
    %v126 = vld [vmem:[%s110 + $0x78] sm:$0xff]
    %v127 = vld [vmem:[%s110 + $0x80] sm:$0xff]
    %v128 = vld [vmem:[%s110 + $0x88] sm:$0xff]
    %v129 = vld [vmem:[%s110 + $0x90] sm:$0xff]
    %v130 = vld [vmem:[%s110 + $0x98] sm:$0xff]
    %v131 = vld [vmem:[%s110 + $0xa0] sm:$0xff]
    %v132 = vld [vmem:[%s110 + $0xa8] sm:$0xff]
    %v133 = vld [vmem:[%s110 + $0xb0] sm:$0xff]
    %v134 = vld [vmem:[%s110 + $0xb8] sm:$0xff]
    %v135 = vld [vmem:[%s110 + $0xc0] sm:$0xff]
    %v136 = vld [vmem:[%s110 + $0xc8] sm:$0xff]
    %v137 = vld [vmem:[%s110 + $0xd0] sm:$0xff]
    %v138 = vld [vmem:[%s110 + $0xd8] sm:$0xff]
    %v139 = vld [vmem:[%s110 + $0xe0] sm:$0xff]
    %v140 = vld [vmem:[%s110 + $0xe8] sm:$0xff]
    %v141 = vld [vmem:[%s110 + $0xf0] sm:$0xff]
    %v142 = vld [vmem:[%s110 + $0xf8] sm:$0xff]
    %v143 = vld [vmem:[%s5] sm:$0x3]
    %v145 = vperm.slane %v143, 0
    %v146 = vperm.slane %v143, 1
    %s149 = scalar_lea.vmem %s5, 2
    %v150 = vld [vmem:[%s149] sm:$0x3]
    %v152 = vperm.slane %v150, 0
    %v153 = vperm.slane %v150, 1
    %v156 = vld [vmem:[%s6] sm:$0xff]
    %v157 = vld [vmem:[%s6 + $0x8] sm:$0xff]
    %v158 = vld [vmem:[%s6 + $0x10] sm:$0xff]
    %v159 = vld [vmem:[%s6 + $0x18] sm:$0xff]
    %v160 = vld [vmem:[%s6 + $0x20] sm:$0xff]
    %v161 = vld [vmem:[%s6 + $0x28] sm:$0xff]
    %v162 = vld [vmem:[%s6 + $0x30] sm:$0xff]
    %v163 = vld [vmem:[%s6 + $0x38] sm:$0xff]
    %v164 = vld [vmem:[%s7] sm:$0x1]
    %v165 = vld [vmem:[%s0] sm:$0xff]
    %v166 = vperm.slane %v165, 0
    %v167 = vlaneseq
    %v168 = vshrl.u32 %v167, 7
    %170 = vset.pattern.permute.xlu0 %v168
    %171 = vperm.xlu0 %170, %v166
    %v172 = vpop.permute.xlu0 %171
    %v173 = vperm.slane %v165, 1
    %v174 = vlaneseq
    %v175 = vshrl.u32 %v174, 7
    %177 = vset.pattern.permute.xlu0 %v175
    %178 = vperm.xlu0 %177, %v173
    %v179 = vpop.permute.xlu0 %178
    %v180 = vperm.slane %v165, 2
    %v181 = vlaneseq
    %v182 = vshrl.u32 %v181, 7
    %184 = vset.pattern.permute.xlu0 %v182
    %185 = vperm.xlu0 %184, %v180
    %v186 = vpop.permute.xlu0 %185
    %v187 = vperm.slane %v165, 3
    %v188 = vlaneseq
    %v189 = vshrl.u32 %v188, 7
    %191 = vset.pattern.permute.xlu0 %v189
    %192 = vperm.xlu0 %191, %v187
    %v193 = vpop.permute.xlu0 %192
    %v194 = vperm.slane %v165, 4
    %v195 = vlaneseq
    %v196 = vshrl.u32 %v195, 7
    %198 = vset.pattern.permute.xlu0 %v196
    %199 = vperm.xlu0 %198, %v194
    %v200 = vpop.permute.xlu0 %199
    %v201 = vperm.slane %v165, 5
    %v202 = vlaneseq
    %v203 = vshrl.u32 %v202, 7
    %205 = vset.pattern.permute.xlu0 %v203
    %206 = vperm.xlu0 %205, %v201
    %v207 = vpop.permute.xlu0 %206
    %v208 = vperm.slane %v165, 6
    %v209 = vlaneseq
    %v210 = vshrl.u32 %v209, 7
    %212 = vset.pattern.permute.xlu0 %v210
    %213 = vperm.xlu0 %212, %v208
    %v214 = vpop.permute.xlu0 %213
    %v215 = vperm.slane %v165, 7
    %v216 = vlaneseq
    %v217 = vshrl.u32 %v216, 7
    %219 = vset.pattern.permute.xlu0 %v217
    %220 = vperm.xlu0 %219, %v215
    %v221 = vpop.permute.xlu0 %220
    %v222 = vld [vmem:[%s1] sm:$0x3]
    %v224 = vperm.slane %v222, 0
    %v225 = vperm.slane %v222, 1
    %v228 = vmul.f32 %v172, %v224
    %v229 = vmul.f32 %v172, %v225
    %v230 = vmul.f32 %v179, %v224
    %v231 = vmul.f32 %v179, %v225
    %v232 = vmul.f32 %v186, %v224
    %v233 = vmul.f32 %v186, %v225
    %v234 = vmul.f32 %v193, %v224
    %v235 = vmul.f32 %v193, %v225
    %v236 = vmul.f32 %v200, %v224
    %v237 = vmul.f32 %v200, %v225
    %v238 = vmul.f32 %v207, %v224
    %v239 = vmul.f32 %v207, %v225
    %v240 = vmul.f32 %v214, %v224
    %v241 = vmul.f32 %v214, %v225
    %v242 = vmul.f32 %v221, %v224
    %v243 = vmul.f32 %v221, %v225
    %v244 = vld [vmem:[%s4] sm:$0x3]
    %v246 = vperm.slane %v244, 0
    %v247 = vperm.slane %v244, 1
    %v250 = vadd.f32 %v228, %v246
    %v251 = vadd.f32 %v229, %v247
    %v252 = vadd.f32 %v230, %v246
    %v253 = vadd.f32 %v231, %v247
    %v254 = vadd.f32 %v232, %v246
    %v255 = vadd.f32 %v233, %v247
    %v256 = vadd.f32 %v234, %v246
    %v257 = vadd.f32 %v235, %v247
    %v258 = vadd.f32 %v236, %v246
    %v259 = vadd.f32 %v237, %v247
    %v260 = vadd.f32 %v238, %v246
    %v261 = vadd.f32 %v239, %v247
    %v262 = vadd.f32 %v240, %v246
    %v263 = vadd.f32 %v241, %v247
    %v264 = vadd.f32 %v242, %v246
    %v265 = vadd.f32 %v243, %v247
    %vm266 = vcmask 523264
    %v268 = vsel %vm266, 0.0, 0
    %270 = vmatpush.msra.mxu0 0.0
    %271 = vmatpush.msra.mxu0 0.0
    %272 = vmatpush.msra.mxu0 0.0
    %273 = vmatpush.msra.mxu0 0.0
    %274 = vmatpush.msra.mxu0 0.0
    %275 = vmatpush.msra.mxu0 0.0
    %276 = vmatpush.msra.mxu0 0.0
    %277 = vmatpush.msra.mxu0 0.0
    %278 = vmatpush.msra.mxu0 %v76
    %279 = vmatpush.msra.mxu0 %v74
    %280 = vmatpush.msra.mxu0 %v72
    %281 = vmatpush.msra.mxu0 %v70
    %282 = vmatpush.msra.mxu0 %v68
    %283 = vmatpush.msra.mxu0 %v66
    %284 = vmatpush.msra.mxu0 %v64
    %285 = vmatpush.msra.mxu0 %v62
    %286 = vmatmul.f32.gmra.mxu0 %v268
    %v287 = vpop.f32.mrf.mxu0
    %v288 = vadd.f32 0.0, %v287
    %289 = vdwg.mxu0
    %290 = vmatpush.msra.mxu0 0.0
    %291 = vmatpush.msra.mxu0 0.0
    %292 = vmatpush.msra.mxu0 0.0
    %293 = vmatpush.msra.mxu0 0.0
    %294 = vmatpush.msra.mxu0 0.0
    %295 = vmatpush.msra.mxu0 0.0
    %296 = vmatpush.msra.mxu0 0.0
    %297 = vmatpush.msra.mxu0 0.0
    %298 = vmatpush.msra.mxu0 %v77
    %299 = vmatpush.msra.mxu0 %v75
    %300 = vmatpush.msra.mxu0 %v73
    %301 = vmatpush.msra.mxu0 %v71
    %302 = vmatpush.msra.mxu0 %v69
    %303 = vmatpush.msra.mxu0 %v67
    %304 = vmatpush.msra.mxu0 %v65
    %305 = vmatpush.msra.mxu0 %v63
    %306 = vmatmul.f32.gmra.mxu0 %v268
    %v307 = vpop.f32.mrf.mxu0
    %v308 = vadd.f32 0.0, %v307
    %309 = vdwg.mxu0
    %v310 = vadd.f32 %v250, %v288
    %v311 = vadd.f32 %v251, %v308
    %v312 = vxor.u32 %v310, 2147483648
    %v313 = vxor.u32 %v311, 2147483648
    %v314 = vmul.f32 %v312, 1.442695
    %v315 = vpow.pop %v314
    %v316 = vmul.f32 %v313, 1.442695
    %v317 = vpow.pop %v316
    %v318 = vadd.f32 %v315, 1.0
    %v319 = vadd.f32 %v317, 1.0
    %v320 = vrcp.pop %v318
    %v321 = vmul.f32 %v318, %v320
    %v322 = vsub.f32 1.0, %v321
    %v323 = vmul.f32 %v320, %v322
    %v324 = vadd.f32 %v320, %v323
    %vm325 = vweird.f32 %v318
    %vm326 = vweird.f32 %v320
    %vm327 = vmor %vm325, %vm326
    %v328 = vsel %vm327, %v320, %v324
    %v329 = vand.u32 2147483647, %v318
    %vm330 = vcmp.eq.f32.partialorder %v329, 8.507059e+37
    %v331 = vand.u32 %v318, 2147483648
    %v332 = vor.u32 1.1754944e-38, %v331
    %v333 = vsel %vm330, %v332, %v328
    %v334 = vmul.f32 1.0, %v333
    %v335 = vrcp.pop %v319
    %v336 = vmul.f32 %v319, %v335
    %v337 = vsub.f32 1.0, %v336
    %v338 = vmul.f32 %v335, %v337
    %v339 = vadd.f32 %v335, %v338
    %vm340 = vweird.f32 %v319
    %vm341 = vweird.f32 %v335
    %vm342 = vmor %vm340, %vm341
    %v343 = vsel %vm342, %v335, %v339
    %v344 = vand.u32 2147483647, %v319
    %vm345 = vcmp.eq.f32.partialorder %v344, 8.507059e+37
    %v346 = vand.u32 %v319, 2147483648
    %v347 = vor.u32 1.1754944e-38, %v346
    %v348 = vsel %vm345, %v347, %v343
    %v349 = vmul.f32 1.0, %v348
    %v350 = vtanh.pop %v311
    %v351 = vmul.f32 %v334, 0.0
    %v352 = vmul.f32 %v334, %v350
    %354 = vrot.lane.b32.xlu0 %v352, 64
    %v355 = vpop.permute.xlu0 %354
    %v357 = vadd.f32 %v351, %v355
    %v358 = vtanh.pop %v357
    %v359 = vmul.f32 %v349, %v358
    %361 = vrot.lane.b32.xlu0 %v359, 64
    %v362 = vpop.permute.xlu0 %361
    %v363 = vsel %vm266, %v362, 0
    %365 = vmatpush.msra.mxu0 0.0
    %366 = vmatpush.msra.mxu0 0.0
    %367 = vmatpush.msra.mxu0 0.0
    %368 = vmatpush.msra.mxu0 0.0
    %369 = vmatpush.msra.mxu0 0.0
    %370 = vmatpush.msra.mxu0 0.0
    %371 = vmatpush.msra.mxu0 0.0
    %372 = vmatpush.msra.mxu0 0.0
    %373 = vmatpush.msra.mxu0 %v76
    %374 = vmatpush.msra.mxu0 %v74
    %375 = vmatpush.msra.mxu0 %v72
    %376 = vmatpush.msra.mxu0 %v70
    %377 = vmatpush.msra.mxu0 %v68
    %378 = vmatpush.msra.mxu0 %v66
    %379 = vmatpush.msra.mxu0 %v64
    %380 = vmatpush.msra.mxu0 %v62
    %381 = vmatmul.f32.gmra.mxu0 %v363
    %v382 = vpop.f32.mrf.mxu0
    %v383 = vadd.f32 0.0, %v382
    %384 = vdwg.mxu0
    %385 = vmatpush.msra.mxu0 0.0
    %386 = vmatpush.msra.mxu0 0.0
    %387 = vmatpush.msra.mxu0 0.0
    %388 = vmatpush.msra.mxu0 0.0
    %389 = vmatpush.msra.mxu0 0.0
    %390 = vmatpush.msra.mxu0 0.0
    %391 = vmatpush.msra.mxu0 0.0
    %392 = vmatpush.msra.mxu0 0.0
    %393 = vmatpush.msra.mxu0 %v77
    %394 = vmatpush.msra.mxu0 %v75
    %395 = vmatpush.msra.mxu0 %v73
    %396 = vmatpush.msra.mxu0 %v71
    %397 = vmatpush.msra.mxu0 %v69
    %398 = vmatpush.msra.mxu0 %v67
    %399 = vmatpush.msra.mxu0 %v65
    %400 = vmatpush.msra.mxu0 %v63
    %401 = vmatmul.f32.gmra.mxu0 %v363
    %v402 = vpop.f32.mrf.mxu0
    %v403 = vadd.f32 0.0, %v402
    %404 = vdwg.mxu0
    %v405 = vadd.f32 %v252, %v383
    %v406 = vadd.f32 %v253, %v403
    %v407 = vxor.u32 %v405, 2147483648
    %v408 = vxor.u32 %v406, 2147483648
    %v409 = vmul.f32 %v407, 1.442695
    %v410 = vpow.pop %v409
    %v411 = vmul.f32 %v408, 1.442695
    %v412 = vpow.pop %v411
    %v413 = vadd.f32 %v410, 1.0
    %v414 = vadd.f32 %v412, 1.0
    %v415 = vrcp.pop %v413
    %v416 = vmul.f32 %v413, %v415
    %v417 = vsub.f32 1.0, %v416
    %v418 = vmul.f32 %v415, %v417
    %v419 = vadd.f32 %v415, %v418
    %vm420 = vweird.f32 %v413
    %vm421 = vweird.f32 %v415
    %vm422 = vmor %vm420, %vm421
    %v423 = vsel %vm422, %v415, %v419
    %v424 = vand.u32 2147483647, %v413
    %vm425 = vcmp.eq.f32.partialorder %v424, 8.507059e+37
    %v426 = vand.u32 %v413, 2147483648
    %v427 = vor.u32 1.1754944e-38, %v426
    %v428 = vsel %vm425, %v427, %v423
    %v429 = vmul.f32 1.0, %v428
    %v430 = vrcp.pop %v414
    %v431 = vmul.f32 %v414, %v430
    %v432 = vsub.f32 1.0, %v431
    %v433 = vmul.f32 %v430, %v432
    %v434 = vadd.f32 %v430, %v433
    %vm435 = vweird.f32 %v414
    %vm436 = vweird.f32 %v430
    %vm437 = vmor %vm435, %vm436
    %v438 = vsel %vm437, %v430, %v434
    %v439 = vand.u32 2147483647, %v414
    %vm440 = vcmp.eq.f32.partialorder %v439, 8.507059e+37
    %v441 = vand.u32 %v414, 2147483648
    %v442 = vor.u32 1.1754944e-38, %v441
    %v443 = vsel %vm440, %v442, %v438
    %v444 = vmul.f32 1.0, %v443
    %v445 = vtanh.pop %v406
    %v446 = vmul.f32 %v429, %v357
    %v447 = vmul.f32 %v429, %v445
    %449 = vrot.lane.b32.xlu0 %v447, 64
    %v450 = vpop.permute.xlu0 %449
    %v452 = vadd.f32 %v446, %v450
    %v453 = vtanh.pop %v452
    %v454 = vmul.f32 %v444, %v453
    %v456 = vsel %vm266, %v362, 0.0
    %457 = vmatpush.msra.mxu0 %v108
    %458 = vmatpush.msra.mxu0 %v106
    %459 = vmatpush.msra.mxu0 %v104
    %460 = vmatpush.msra.mxu0 %v102
    %461 = vmatpush.msra.mxu0 %v100
    %462 = vmatpush.msra.mxu0 %v98
    %463 = vmatpush.msra.mxu0 %v96
    %464 = vmatpush.msra.mxu0 %v94
    %465 = vmatpush.msra.mxu0 %v92
    %466 = vmatpush.msra.mxu0 %v90
    %467 = vmatpush.msra.mxu0 %v88
    %468 = vmatpush.msra.mxu0 %v86
    %469 = vmatpush.msra.mxu0 %v84
    %470 = vmatpush.msra.mxu0 %v82
    %471 = vmatpush.msra.mxu0 %v80
    %472 = vmatpush.msra.mxu0 %v78
    %473 = vmatmul.f32.gmra.mxu0 %v456
    %v474 = vpop.f32.mrf.mxu0
    %v475 = vadd.f32 %v145, %v474
    %476 = vdwg.mxu0
    %477 = vmatpush.msra.mxu0 %v109
    %478 = vmatpush.msra.mxu0 %v107
    %479 = vmatpush.msra.mxu0 %v105
    %480 = vmatpush.msra.mxu0 %v103
    %481 = vmatpush.msra.mxu0 %v101
    %482 = vmatpush.msra.mxu0 %v99
    %483 = vmatpush.msra.mxu0 %v97
    %484 = vmatpush.msra.mxu0 %v95
    %485 = vmatpush.msra.mxu0 %v93
    %486 = vmatpush.msra.mxu0 %v91
    %487 = vmatpush.msra.mxu0 %v89
    %488 = vmatpush.msra.mxu0 %v87
    %489 = vmatpush.msra.mxu0 %v85
    %490 = vmatpush.msra.mxu0 %v83
    %491 = vmatpush.msra.mxu0 %v81
    %492 = vmatpush.msra.mxu0 %v79
    %493 = vmatmul.f32.gmra.mxu0 %v456
    %v494 = vpop.f32.mrf.mxu0
    %v495 = vadd.f32 %v146, %v494
    %496 = vdwg.mxu0
    %v497 = vxor.u32 %v475, 2147483648
    %v498 = vxor.u32 %v495, 2147483648
    %v499 = vmul.f32 %v497, 1.442695
    %v500 = vpow.pop %v499
    %v501 = vmul.f32 %v498, 1.442695
    %v502 = vpow.pop %v501
    %v503 = vadd.f32 %v500, 1.0
    %v504 = vadd.f32 %v502, 1.0
    %v505 = vrcp.pop %v503
    %v506 = vmul.f32 %v503, %v505
    %v507 = vsub.f32 1.0, %v506
    %v508 = vmul.f32 %v505, %v507
    %v509 = vadd.f32 %v505, %v508
    %vm510 = vweird.f32 %v503
    %vm511 = vweird.f32 %v505
    %vm512 = vmor %vm510, %vm511
    %v513 = vsel %vm512, %v505, %v509
    %v514 = vand.u32 2147483647, %v503
    %vm515 = vcmp.eq.f32.partialorder %v514, 8.507059e+37
    %v516 = vand.u32 %v503, 2147483648
    %v517 = vor.u32 1.1754944e-38, %v516
    %v518 = vsel %vm515, %v517, %v513
    %v519 = vmul.f32 1.0, %v518
    %v520 = vrcp.pop %v504
    %v521 = vmul.f32 %v504, %v520
    %v522 = vsub.f32 1.0, %v521
    %v523 = vmul.f32 %v520, %v522
    %v524 = vadd.f32 %v520, %v523
    %vm525 = vweird.f32 %v504
    %vm526 = vweird.f32 %v520
    %vm527 = vmor %vm525, %vm526
    %v528 = vsel %vm527, %v520, %v524
    %v529 = vand.u32 2147483647, %v504
    %vm530 = vcmp.eq.f32.partialorder %v529, 8.507059e+37
    %v531 = vand.u32 %v504, 2147483648
    %v532 = vor.u32 1.1754944e-38, %v531
    %v533 = vsel %vm530, %v532, %v528
    %v534 = vmul.f32 1.0, %v533
    %v535 = vtanh.pop %v495
    %v536 = vmul.f32 %v519, 0.0
    %v537 = vmul.f32 %v519, %v535
    %539 = vrot.lane.b32.xlu0 %v537, 64
    %v540 = vpop.permute.xlu0 %539
    %v542 = vadd.f32 %v536, %v540
    %v543 = vtanh.pop %v542
    %v544 = vmul.f32 %v534, %v543
    %546 = vrot.lane.b32.xlu0 %v454, 64
    %v547 = vpop.permute.xlu0 %546
    %v548 = vsel %vm266, %v547, 0
    %550 = vmatpush.msra.mxu0 0.0
    %551 = vmatpush.msra.mxu0 0.0
    %552 = vmatpush.msra.mxu0 0.0
    %553 = vmatpush.msra.mxu0 0.0
    %554 = vmatpush.msra.mxu0 0.0
    %555 = vmatpush.msra.mxu0 0.0
    %556 = vmatpush.msra.mxu0 0.0
    %557 = vmatpush.msra.mxu0 0.0
    %558 = vmatpush.msra.mxu0 %v76
    %559 = vmatpush.msra.mxu0 %v74
    %560 = vmatpush.msra.mxu0 %v72
    %561 = vmatpush.msra.mxu0 %v70
    %562 = vmatpush.msra.mxu0 %v68
    %563 = vmatpush.msra.mxu0 %v66
    %564 = vmatpush.msra.mxu0 %v64
    %565 = vmatpush.msra.mxu0 %v62
    %566 = vmatmul.f32.gmra.mxu0 %v548
    %v567 = vpop.f32.mrf.mxu0
    %v568 = vadd.f32 0.0, %v567
    %569 = vdwg.mxu0
    %570 = vmatpush.msra.mxu0 0.0
    %571 = vmatpush.msra.mxu0 0.0
    %572 = vmatpush.msra.mxu0 0.0
    %573 = vmatpush.msra.mxu0 0.0
    %574 = vmatpush.msra.mxu0 0.0
    %575 = vmatpush.msra.mxu0 0.0
    %576 = vmatpush.msra.mxu0 0.0
    %577 = vmatpush.msra.mxu0 0.0
    %578 = vmatpush.msra.mxu0 %v77
    %579 = vmatpush.msra.mxu0 %v75
    %580 = vmatpush.msra.mxu0 %v73
    %581 = vmatpush.msra.mxu0 %v71
    %582 = vmatpush.msra.mxu0 %v69
    %583 = vmatpush.msra.mxu0 %v67
    %584 = vmatpush.msra.mxu0 %v65
    %585 = vmatpush.msra.mxu0 %v63
    %586 = vmatmul.f32.gmra.mxu0 %v548
    %v587 = vpop.f32.mrf.mxu0
    %v588 = vadd.f32 0.0, %v587
    %589 = vdwg.mxu0
    %v590 = vadd.f32 %v254, %v568
    %v591 = vadd.f32 %v255, %v588
    %v592 = vxor.u32 %v590, 2147483648
    %v593 = vxor.u32 %v591, 2147483648
    %v594 = vmul.f32 %v592, 1.442695
    %v595 = vpow.pop %v594
    %v596 = vmul.f32 %v593, 1.442695
    %v597 = vpow.pop %v596
    %v598 = vadd.f32 %v595, 1.0
    %v599 = vadd.f32 %v597, 1.0
    %v600 = vrcp.pop %v598
    %v601 = vmul.f32 %v598, %v600
    %v602 = vsub.f32 1.0, %v601
    %v603 = vmul.f32 %v600, %v602
    %v604 = vadd.f32 %v600, %v603
    %vm605 = vweird.f32 %v598
    %vm606 = vweird.f32 %v600
    %vm607 = vmor %vm605, %vm606
    %v608 = vsel %vm607, %v600, %v604
    %v609 = vand.u32 2147483647, %v598
    %vm610 = vcmp.eq.f32.partialorder %v609, 8.507059e+37
    %v611 = vand.u32 %v598, 2147483648
    %v612 = vor.u32 1.1754944e-38, %v611
    %v613 = vsel %vm610, %v612, %v608
    %v614 = vmul.f32 1.0, %v613
    %v615 = vrcp.pop %v599
    %v616 = vmul.f32 %v599, %v615
    %v617 = vsub.f32 1.0, %v616
    %v618 = vmul.f32 %v615, %v617
    %v619 = vadd.f32 %v615, %v618
    %vm620 = vweird.f32 %v599
    %vm621 = vweird.f32 %v615
    %vm622 = vmor %vm620, %vm621
    %v623 = vsel %vm622, %v615, %v619
    %v624 = vand.u32 2147483647, %v599
    %vm625 = vcmp.eq.f32.partialorder %v624, 8.507059e+37
    %v626 = vand.u32 %v599, 2147483648
    %v627 = vor.u32 1.1754944e-38, %v626
    %v628 = vsel %vm625, %v627, %v623
    %v629 = vmul.f32 1.0, %v628
    %v630 = vtanh.pop %v591
    %v631 = vmul.f32 %v614, %v452
    %v632 = vmul.f32 %v614, %v630
    %634 = vrot.lane.b32.xlu0 %v632, 64
    %v635 = vpop.permute.xlu0 %634
    %v637 = vadd.f32 %v631, %v635
    %v638 = vtanh.pop %v637
    %v639 = vmul.f32 %v629, %v638
    %v641 = vsel %vm266, %v547, %v544
    %642 = vmatpush.msra.mxu0 %v108
    %643 = vmatpush.msra.mxu0 %v106
    %644 = vmatpush.msra.mxu0 %v104
    %645 = vmatpush.msra.mxu0 %v102
    %646 = vmatpush.msra.mxu0 %v100
    %647 = vmatpush.msra.mxu0 %v98
    %648 = vmatpush.msra.mxu0 %v96
    %649 = vmatpush.msra.mxu0 %v94
    %650 = vmatpush.msra.mxu0 %v92
    %651 = vmatpush.msra.mxu0 %v90
    %652 = vmatpush.msra.mxu0 %v88
    %653 = vmatpush.msra.mxu0 %v86
    %654 = vmatpush.msra.mxu0 %v84
    %655 = vmatpush.msra.mxu0 %v82
    %656 = vmatpush.msra.mxu0 %v80
    %657 = vmatpush.msra.mxu0 %v78
    %658 = vmatmul.f32.gmra.mxu0 %v641
    %v659 = vpop.f32.mrf.mxu0
    %v660 = vadd.f32 %v145, %v659
    %661 = vdwg.mxu0
    %662 = vmatpush.msra.mxu0 %v109
    %663 = vmatpush.msra.mxu0 %v107
    %664 = vmatpush.msra.mxu0 %v105
    %665 = vmatpush.msra.mxu0 %v103
    %666 = vmatpush.msra.mxu0 %v101
    %667 = vmatpush.msra.mxu0 %v99
    %668 = vmatpush.msra.mxu0 %v97
    %669 = vmatpush.msra.mxu0 %v95
    %670 = vmatpush.msra.mxu0 %v93
    %671 = vmatpush.msra.mxu0 %v91
    %672 = vmatpush.msra.mxu0 %v89
    %673 = vmatpush.msra.mxu0 %v87
    %674 = vmatpush.msra.mxu0 %v85
    %675 = vmatpush.msra.mxu0 %v83
    %676 = vmatpush.msra.mxu0 %v81
    %677 = vmatpush.msra.mxu0 %v79
    %678 = vmatmul.f32.gmra.mxu0 %v641
    %v679 = vpop.f32.mrf.mxu0
    %v680 = vadd.f32 %v146, %v679
    %681 = vdwg.mxu0
    %v682 = vxor.u32 %v660, 2147483648
    %v683 = vxor.u32 %v680, 2147483648
    %v684 = vmul.f32 %v682, 1.442695
    %v685 = vpow.pop %v684
    %v686 = vmul.f32 %v683, 1.442695
    %v687 = vpow.pop %v686
    %v688 = vadd.f32 %v685, 1.0
    %v689 = vadd.f32 %v687, 1.0
    %v690 = vrcp.pop %v688
    %v691 = vmul.f32 %v688, %v690
    %v692 = vsub.f32 1.0, %v691
    %v693 = vmul.f32 %v690, %v692
    %v694 = vadd.f32 %v690, %v693
    %vm695 = vweird.f32 %v688
    %vm696 = vweird.f32 %v690
    %vm697 = vmor %vm695, %vm696
    %v698 = vsel %vm697, %v690, %v694
    %v699 = vand.u32 2147483647, %v688
    %vm700 = vcmp.eq.f32.partialorder %v699, 8.507059e+37
    %v701 = vand.u32 %v688, 2147483648
    %v702 = vor.u32 1.1754944e-38, %v701
    %v703 = vsel %vm700, %v702, %v698
    %v704 = vmul.f32 1.0, %v703
    %v705 = vrcp.pop %v689
    %v706 = vmul.f32 %v689, %v705
    %v707 = vsub.f32 1.0, %v706
    %v708 = vmul.f32 %v705, %v707
    %v709 = vadd.f32 %v705, %v708
    %vm710 = vweird.f32 %v689
    %vm711 = vweird.f32 %v705
    %vm712 = vmor %vm710, %vm711
    %v713 = vsel %vm712, %v705, %v709
    %v714 = vand.u32 2147483647, %v689
    %vm715 = vcmp.eq.f32.partialorder %v714, 8.507059e+37
    %v716 = vand.u32 %v689, 2147483648
    %v717 = vor.u32 1.1754944e-38, %v716
    %v718 = vsel %vm715, %v717, %v713
    %v719 = vmul.f32 1.0, %v718
    %v720 = vtanh.pop %v680
    %v721 = vmul.f32 %v704, %v542
    %v722 = vmul.f32 %v704, %v720
    %724 = vrot.lane.b32.xlu0 %v722, 64
    %v725 = vpop.permute.xlu0 %724
    %v727 = vadd.f32 %v721, %v725
    %v728 = vtanh.pop %v727
    %v729 = vmul.f32 %v719, %v728
    %731 = vrot.lane.b32.xlu0 %v544, 64
    %v732 = vpop.permute.xlu0 %731
    %v734 = vsel %vm266, %v732, 0.0
    %735 = vmatpush.msra.mxu0 %v141
    %736 = vmatpush.msra.mxu0 %v139
    %737 = vmatpush.msra.mxu0 %v137
    %738 = vmatpush.msra.mxu0 %v135
    %739 = vmatpush.msra.mxu0 %v133
    %740 = vmatpush.msra.mxu0 %v131
    %741 = vmatpush.msra.mxu0 %v129
    %742 = vmatpush.msra.mxu0 %v127
    %743 = vmatpush.msra.mxu0 %v125
    %744 = vmatpush.msra.mxu0 %v123
    %745 = vmatpush.msra.mxu0 %v121
    %746 = vmatpush.msra.mxu0 %v119
    %747 = vmatpush.msra.mxu0 %v117
    %748 = vmatpush.msra.mxu0 %v115
    %749 = vmatpush.msra.mxu0 %v113
    %750 = vmatpush.msra.mxu0 %v111
    %751 = vmatmul.f32.gmra.mxu0 %v734
    %v752 = vpop.f32.mrf.mxu0
    %v753 = vadd.f32 %v152, %v752
    %754 = vdwg.mxu0
    %755 = vmatpush.msra.mxu0 %v142
    %756 = vmatpush.msra.mxu0 %v140
    %757 = vmatpush.msra.mxu0 %v138
    %758 = vmatpush.msra.mxu0 %v136
    %759 = vmatpush.msra.mxu0 %v134
    %760 = vmatpush.msra.mxu0 %v132
    %761 = vmatpush.msra.mxu0 %v130
    %762 = vmatpush.msra.mxu0 %v128
    %763 = vmatpush.msra.mxu0 %v126
    %764 = vmatpush.msra.mxu0 %v124
    %765 = vmatpush.msra.mxu0 %v122
    %766 = vmatpush.msra.mxu0 %v120
    %767 = vmatpush.msra.mxu0 %v118
    %768 = vmatpush.msra.mxu0 %v116
    %769 = vmatpush.msra.mxu0 %v114
    %770 = vmatpush.msra.mxu0 %v112
    %771 = vmatmul.f32.gmra.mxu0 %v734
    %v772 = vpop.f32.mrf.mxu0
    %v773 = vadd.f32 %v153, %v772
    %774 = vdwg.mxu0
    %v775 = vxor.u32 %v753, 2147483648
    %v776 = vxor.u32 %v773, 2147483648
    %v777 = vmul.f32 %v775, 1.442695
    %v778 = vpow.pop %v777
    %v779 = vmul.f32 %v776, 1.442695
    %v780 = vpow.pop %v779
    %v781 = vadd.f32 %v778, 1.0
    %v782 = vadd.f32 %v780, 1.0
    %v783 = vrcp.pop %v781
    %v784 = vmul.f32 %v781, %v783
    %v785 = vsub.f32 1.0, %v784
    %v786 = vmul.f32 %v783, %v785
    %v787 = vadd.f32 %v783, %v786
    %vm788 = vweird.f32 %v781
    %vm789 = vweird.f32 %v783
    %vm790 = vmor %vm788, %vm789
    %v791 = vsel %vm790, %v783, %v787
    %v792 = vand.u32 2147483647, %v781
    %vm793 = vcmp.eq.f32.partialorder %v792, 8.507059e+37
    %v794 = vand.u32 %v781, 2147483648
    %v795 = vor.u32 1.1754944e-38, %v794
    %v796 = vsel %vm793, %v795, %v791
    %v797 = vmul.f32 1.0, %v796
    %v798 = vrcp.pop %v782
    %v799 = vmul.f32 %v782, %v798
    %v800 = vsub.f32 1.0, %v799
    %v801 = vmul.f32 %v798, %v800
    %v802 = vadd.f32 %v798, %v801
    %vm803 = vweird.f32 %v782
    %vm804 = vweird.f32 %v798
    %vm805 = vmor %vm803, %vm804
    %v806 = vsel %vm805, %v798, %v802
    %v807 = vand.u32 2147483647, %v782
    %vm808 = vcmp.eq.f32.partialorder %v807, 8.507059e+37
    %v809 = vand.u32 %v782, 2147483648
    %v810 = vor.u32 1.1754944e-38, %v809
    %v811 = vsel %vm808, %v810, %v806
    %v812 = vmul.f32 1.0, %v811
    %v813 = vtanh.pop %v773
    %v814 = vmul.f32 %v797, 0.0
    %v815 = vmul.f32 %v797, %v813
    %817 = vrot.lane.b32.xlu0 %v815, 64
    %v818 = vpop.permute.xlu0 %817
    %v820 = vadd.f32 %v814, %v818
    %v821 = vtanh.pop %v820
    %v822 = vmul.f32 %v812, %v821
    %824 = vrot.lane.b32.xlu0 %v639, 64
    %v825 = vpop.permute.xlu0 %824
    %v826 = vsel %vm266, %v825, 0
    %828 = vmatpush.msra.mxu0 0.0
    %829 = vmatpush.msra.mxu0 0.0
    %830 = vmatpush.msra.mxu0 0.0
    %831 = vmatpush.msra.mxu0 0.0
    %832 = vmatpush.msra.mxu0 0.0
    %833 = vmatpush.msra.mxu0 0.0
    %834 = vmatpush.msra.mxu0 0.0
    %835 = vmatpush.msra.mxu0 0.0
    %836 = vmatpush.msra.mxu0 %v76
    %837 = vmatpush.msra.mxu0 %v74
    %838 = vmatpush.msra.mxu0 %v72
    %839 = vmatpush.msra.mxu0 %v70
    %840 = vmatpush.msra.mxu0 %v68
    %841 = vmatpush.msra.mxu0 %v66
    %842 = vmatpush.msra.mxu0 %v64
    %843 = vmatpush.msra.mxu0 %v62
    %844 = vmatmul.f32.gmra.mxu0 %v826
    %v845 = vpop.f32.mrf.mxu0
    %v846 = vadd.f32 0.0, %v845
    %847 = vdwg.mxu0
    %848 = vmatpush.msra.mxu0 0.0
    %849 = vmatpush.msra.mxu0 0.0
    %850 = vmatpush.msra.mxu0 0.0
    %851 = vmatpush.msra.mxu0 0.0
    %852 = vmatpush.msra.mxu0 0.0
    %853 = vmatpush.msra.mxu0 0.0
    %854 = vmatpush.msra.mxu0 0.0
    %855 = vmatpush.msra.mxu0 0.0
    %856 = vmatpush.msra.mxu0 %v77
    %857 = vmatpush.msra.mxu0 %v75
    %858 = vmatpush.msra.mxu0 %v73
    %859 = vmatpush.msra.mxu0 %v71
    %860 = vmatpush.msra.mxu0 %v69
    %861 = vmatpush.msra.mxu0 %v67
    %862 = vmatpush.msra.mxu0 %v65
    %863 = vmatpush.msra.mxu0 %v63
    %864 = vmatmul.f32.gmra.mxu0 %v826
    %v865 = vpop.f32.mrf.mxu0
    %v866 = vadd.f32 0.0, %v865
    %867 = vdwg.mxu0
    %v868 = vadd.f32 %v256, %v846
    %v869 = vadd.f32 %v257, %v866
    %v870 = vxor.u32 %v868, 2147483648
    %v871 = vxor.u32 %v869, 2147483648
    %v872 = vmul.f32 %v870, 1.442695
    %v873 = vpow.pop %v872
    %v874 = vmul.f32 %v871, 1.442695
    %v875 = vpow.pop %v874
    %v876 = vadd.f32 %v873, 1.0
    %v877 = vadd.f32 %v875, 1.0
    %v878 = vrcp.pop %v876
    %v879 = vmul.f32 %v876, %v878
    %v880 = vsub.f32 1.0, %v879
    %v881 = vmul.f32 %v878, %v880
    %v882 = vadd.f32 %v878, %v881
    %vm883 = vweird.f32 %v876
    %vm884 = vweird.f32 %v878
    %vm885 = vmor %vm883, %vm884
    %v886 = vsel %vm885, %v878, %v882
    %v887 = vand.u32 2147483647, %v876
    %vm888 = vcmp.eq.f32.partialorder %v887, 8.507059e+37
    %v889 = vand.u32 %v876, 2147483648
    %v890 = vor.u32 1.1754944e-38, %v889
    %v891 = vsel %vm888, %v890, %v886
    %v892 = vmul.f32 1.0, %v891
    %v893 = vrcp.pop %v877
    %v894 = vmul.f32 %v877, %v893
    %v895 = vsub.f32 1.0, %v894
    %v896 = vmul.f32 %v893, %v895
    %v897 = vadd.f32 %v893, %v896
    %vm898 = vweird.f32 %v877
    %vm899 = vweird.f32 %v893
    %vm900 = vmor %vm898, %vm899
    %v901 = vsel %vm900, %v893, %v897
    %v902 = vand.u32 2147483647, %v877
    %vm903 = vcmp.eq.f32.partialorder %v902, 8.507059e+37
    %v904 = vand.u32 %v877, 2147483648
    %v905 = vor.u32 1.1754944e-38, %v904
    %v906 = vsel %vm903, %v905, %v901
    %v907 = vmul.f32 1.0, %v906
    %v908 = vtanh.pop %v869
    %v909 = vmul.f32 %v892, %v637
    %v910 = vmul.f32 %v892, %v908
    %912 = vrot.lane.b32.xlu0 %v910, 64
    %v913 = vpop.permute.xlu0 %912
    %v915 = vadd.f32 %v909, %v913
    %v916 = vtanh.pop %v915
    %v917 = vmul.f32 %v907, %v916
    %v919 = vsel %vm266, %v825, %v729
    %920 = vmatpush.msra.mxu0 %v108
    %921 = vmatpush.msra.mxu0 %v106
    %922 = vmatpush.msra.mxu0 %v104
    %923 = vmatpush.msra.mxu0 %v102
    %924 = vmatpush.msra.mxu0 %v100
    %925 = vmatpush.msra.mxu0 %v98
    %926 = vmatpush.msra.mxu0 %v96
    %927 = vmatpush.msra.mxu0 %v94
    %928 = vmatpush.msra.mxu0 %v92
    %929 = vmatpush.msra.mxu0 %v90
    %930 = vmatpush.msra.mxu0 %v88
    %931 = vmatpush.msra.mxu0 %v86
    %932 = vmatpush.msra.mxu0 %v84
    %933 = vmatpush.msra.mxu0 %v82
    %934 = vmatpush.msra.mxu0 %v80
    %935 = vmatpush.msra.mxu0 %v78
    %936 = vmatmul.f32.gmra.mxu0 %v919
    %v937 = vpop.f32.mrf.mxu0
    %v938 = vadd.f32 %v145, %v937
    %939 = vdwg.mxu0
    %940 = vmatpush.msra.mxu0 %v109
    %941 = vmatpush.msra.mxu0 %v107
    %942 = vmatpush.msra.mxu0 %v105
    %943 = vmatpush.msra.mxu0 %v103
    %944 = vmatpush.msra.mxu0 %v101
    %945 = vmatpush.msra.mxu0 %v99
    %946 = vmatpush.msra.mxu0 %v97
    %947 = vmatpush.msra.mxu0 %v95
    %948 = vmatpush.msra.mxu0 %v93
    %949 = vmatpush.msra.mxu0 %v91
    %950 = vmatpush.msra.mxu0 %v89
    %951 = vmatpush.msra.mxu0 %v87
    %952 = vmatpush.msra.mxu0 %v85
    %953 = vmatpush.msra.mxu0 %v83
    %954 = vmatpush.msra.mxu0 %v81
    %955 = vmatpush.msra.mxu0 %v79
    %956 = vmatmul.f32.gmra.mxu0 %v919
    %v957 = vpop.f32.mrf.mxu0
    %v958 = vadd.f32 %v146, %v957
    %959 = vdwg.mxu0
    %v960 = vxor.u32 %v938, 2147483648
    %v961 = vxor.u32 %v958, 2147483648
    %v962 = vmul.f32 %v960, 1.442695
    %v963 = vpow.pop %v962
    %v964 = vmul.f32 %v961, 1.442695
    %v965 = vpow.pop %v964
    %v966 = vadd.f32 %v963, 1.0
    %v967 = vadd.f32 %v965, 1.0
    %v968 = vrcp.pop %v966
    %v969 = vmul.f32 %v966, %v968
    %v970 = vsub.f32 1.0, %v969
    %v971 = vmul.f32 %v968, %v970
    %v972 = vadd.f32 %v968, %v971
    %vm973 = vweird.f32 %v966
    %vm974 = vweird.f32 %v968
    %vm975 = vmor %vm973, %vm974
    %v976 = vsel %vm975, %v968, %v972
    %v977 = vand.u32 2147483647, %v966
    %vm978 = vcmp.eq.f32.partialorder %v977, 8.507059e+37
    %v979 = vand.u32 %v966, 2147483648
    %v980 = vor.u32 1.1754944e-38, %v979
    %v981 = vsel %vm978, %v980, %v976
    %v982 = vmul.f32 1.0, %v981
    %v983 = vrcp.pop %v967
    %v984 = vmul.f32 %v967, %v983
    %v985 = vsub.f32 1.0, %v984
    %v986 = vmul.f32 %v983, %v985
    %v987 = vadd.f32 %v983, %v986
    %vm988 = vweird.f32 %v967
    %vm989 = vweird.f32 %v983
    %vm990 = vmor %vm988, %vm989
    %v991 = vsel %vm990, %v983, %v987
    %v992 = vand.u32 2147483647, %v967
    %vm993 = vcmp.eq.f32.partialorder %v992, 8.507059e+37
    %v994 = vand.u32 %v967, 2147483648
    %v995 = vor.u32 1.1754944e-38, %v994
    %v996 = vsel %vm993, %v995, %v991
    %v997 = vmul.f32 1.0, %v996
    %v998 = vtanh.pop %v958
    %v999 = vmul.f32 %v982, %v727
    %v1000 = vmul.f32 %v982, %v998
    %1002 = vrot.lane.b32.xlu0 %v1000, 64
    %v1003 = vpop.permute.xlu0 %1002
    %v1005 = vadd.f32 %v999, %v1003
    %v1006 = vtanh.pop %v1005
    %v1007 = vmul.f32 %v997, %v1006
    %1009 = vrot.lane.b32.xlu0 %v729, 64
    %v1010 = vpop.permute.xlu0 %1009
    %v1012 = vsel %vm266, %v1010, %v822
    %1013 = vmatpush.msra.mxu0 %v141
    %1014 = vmatpush.msra.mxu0 %v139
    %1015 = vmatpush.msra.mxu0 %v137
    %1016 = vmatpush.msra.mxu0 %v135
    %1017 = vmatpush.msra.mxu0 %v133
    %1018 = vmatpush.msra.mxu0 %v131
    %1019 = vmatpush.msra.mxu0 %v129
    %1020 = vmatpush.msra.mxu0 %v127
    %1021 = vmatpush.msra.mxu0 %v125
    %1022 = vmatpush.msra.mxu0 %v123
    %1023 = vmatpush.msra.mxu0 %v121
    %1024 = vmatpush.msra.mxu0 %v119
    %1025 = vmatpush.msra.mxu0 %v117
    %1026 = vmatpush.msra.mxu0 %v115
    %1027 = vmatpush.msra.mxu0 %v113
    %1028 = vmatpush.msra.mxu0 %v111
    %1029 = vmatmul.f32.gmra.mxu0 %v1012
    %v1030 = vpop.f32.mrf.mxu0
    %v1031 = vadd.f32 %v152, %v1030
    %1032 = vdwg.mxu0
    %1033 = vmatpush.msra.mxu0 %v142
    %1034 = vmatpush.msra.mxu0 %v140
    %1035 = vmatpush.msra.mxu0 %v138
    %1036 = vmatpush.msra.mxu0 %v136
    %1037 = vmatpush.msra.mxu0 %v134
    %1038 = vmatpush.msra.mxu0 %v132
    %1039 = vmatpush.msra.mxu0 %v130
    %1040 = vmatpush.msra.mxu0 %v128
    %1041 = vmatpush.msra.mxu0 %v126
    %1042 = vmatpush.msra.mxu0 %v124
    %1043 = vmatpush.msra.mxu0 %v122
    %1044 = vmatpush.msra.mxu0 %v120
    %1045 = vmatpush.msra.mxu0 %v118
    %1046 = vmatpush.msra.mxu0 %v116
    %1047 = vmatpush.msra.mxu0 %v114
    %1048 = vmatpush.msra.mxu0 %v112
    %1049 = vmatmul.f32.gmra.mxu0 %v1012
    %v1050 = vpop.f32.mrf.mxu0
    %v1051 = vadd.f32 %v153, %v1050
    %1052 = vdwg.mxu0
    %v1053 = vxor.u32 %v1031, 2147483648
    %v1054 = vxor.u32 %v1051, 2147483648
    %v1055 = vmul.f32 %v1053, 1.442695
    %v1056 = vpow.pop %v1055
    %v1057 = vmul.f32 %v1054, 1.442695
    %v1058 = vpow.pop %v1057
    %v1059 = vadd.f32 %v1056, 1.0
    %v1060 = vadd.f32 %v1058, 1.0
    %v1061 = vrcp.pop %v1059
    %v1062 = vmul.f32 %v1059, %v1061
    %v1063 = vsub.f32 1.0, %v1062
    %v1064 = vmul.f32 %v1061, %v1063
    %v1065 = vadd.f32 %v1061, %v1064
    %vm1066 = vweird.f32 %v1059
    %vm1067 = vweird.f32 %v1061
    %vm1068 = vmor %vm1066, %vm1067
    %v1069 = vsel %vm1068, %v1061, %v1065
    %v1070 = vand.u32 2147483647, %v1059
    %vm1071 = vcmp.eq.f32.partialorder %v1070, 8.507059e+37
    %v1072 = vand.u32 %v1059, 2147483648
    %v1073 = vor.u32 1.1754944e-38, %v1072
    %v1074 = vsel %vm1071, %v1073, %v1069
    %v1075 = vmul.f32 1.0, %v1074
    %v1076 = vrcp.pop %v1060
    %v1077 = vmul.f32 %v1060, %v1076
    %v1078 = vsub.f32 1.0, %v1077
    %v1079 = vmul.f32 %v1076, %v1078
    %v1080 = vadd.f32 %v1076, %v1079
    %vm1081 = vweird.f32 %v1060
    %vm1082 = vweird.f32 %v1076
    %vm1083 = vmor %vm1081, %vm1082
    %v1084 = vsel %vm1083, %v1076, %v1080
    %v1085 = vand.u32 2147483647, %v1060
    %vm1086 = vcmp.eq.f32.partialorder %v1085, 8.507059e+37
    %v1087 = vand.u32 %v1060, 2147483648
    %v1088 = vor.u32 1.1754944e-38, %v1087
    %v1089 = vsel %vm1086, %v1088, %v1084
    %v1090 = vmul.f32 1.0, %v1089
    %v1091 = vtanh.pop %v1051
    %v1092 = vmul.f32 %v1075, %v820
    %v1093 = vmul.f32 %v1075, %v1091
    %1095 = vrot.lane.b32.xlu0 %v1093, 64
    %v1096 = vpop.permute.xlu0 %1095
    %v1098 = vadd.f32 %v1092, %v1096
    %v1099 = vtanh.pop %v1098
    %v1100 = vmul.f32 %v1090, %v1099
    %1102 = vrot.lane.b32.xlu0 %v917, 64
    %v1103 = vpop.permute.xlu0 %1102
    %v1104 = vsel %vm266, %v1103, 0
    %1106 = vmatpush.msra.mxu0 0.0
    %1107 = vmatpush.msra.mxu0 0.0
    %1108 = vmatpush.msra.mxu0 0.0
    %1109 = vmatpush.msra.mxu0 0.0
    %1110 = vmatpush.msra.mxu0 0.0
    %1111 = vmatpush.msra.mxu0 0.0
    %1112 = vmatpush.msra.mxu0 0.0
    %1113 = vmatpush.msra.mxu0 0.0
    %1114 = vmatpush.msra.mxu0 %v76
    %1115 = vmatpush.msra.mxu0 %v74
    %1116 = vmatpush.msra.mxu0 %v72
    %1117 = vmatpush.msra.mxu0 %v70
    %1118 = vmatpush.msra.mxu0 %v68
    %1119 = vmatpush.msra.mxu0 %v66
    %1120 = vmatpush.msra.mxu0 %v64
    %1121 = vmatpush.msra.mxu0 %v62
    %1122 = vmatmul.f32.gmra.mxu0 %v1104
    %v1123 = vpop.f32.mrf.mxu0
    %v1124 = vadd.f32 0.0, %v1123
    %1125 = vdwg.mxu0
    %1126 = vmatpush.msra.mxu0 0.0
    %1127 = vmatpush.msra.mxu0 0.0
    %1128 = vmatpush.msra.mxu0 0.0
    %1129 = vmatpush.msra.mxu0 0.0
    %1130 = vmatpush.msra.mxu0 0.0
    %1131 = vmatpush.msra.mxu0 0.0
    %1132 = vmatpush.msra.mxu0 0.0
    %1133 = vmatpush.msra.mxu0 0.0
    %1134 = vmatpush.msra.mxu0 %v77
    %1135 = vmatpush.msra.mxu0 %v75
    %1136 = vmatpush.msra.mxu0 %v73
    %1137 = vmatpush.msra.mxu0 %v71
    %1138 = vmatpush.msra.mxu0 %v69
    %1139 = vmatpush.msra.mxu0 %v67
    %1140 = vmatpush.msra.mxu0 %v65
    %1141 = vmatpush.msra.mxu0 %v63
    %1142 = vmatmul.f32.gmra.mxu0 %v1104
    %v1143 = vpop.f32.mrf.mxu0
    %v1144 = vadd.f32 0.0, %v1143
    %1145 = vdwg.mxu0
    %v1146 = vadd.f32 %v258, %v1124
    %v1147 = vadd.f32 %v259, %v1144
    %v1148 = vxor.u32 %v1146, 2147483648
    %v1149 = vxor.u32 %v1147, 2147483648
    %v1150 = vmul.f32 %v1148, 1.442695
    %v1151 = vpow.pop %v1150
    %v1152 = vmul.f32 %v1149, 1.442695
    %v1153 = vpow.pop %v1152
    %v1154 = vadd.f32 %v1151, 1.0
    %v1155 = vadd.f32 %v1153, 1.0
    %v1156 = vrcp.pop %v1154
    %v1157 = vmul.f32 %v1154, %v1156
    %v1158 = vsub.f32 1.0, %v1157
    %v1159 = vmul.f32 %v1156, %v1158
    %v1160 = vadd.f32 %v1156, %v1159
    %vm1161 = vweird.f32 %v1154
    %vm1162 = vweird.f32 %v1156
    %vm1163 = vmor %vm1161, %vm1162
    %v1164 = vsel %vm1163, %v1156, %v1160
    %v1165 = vand.u32 2147483647, %v1154
    %vm1166 = vcmp.eq.f32.partialorder %v1165, 8.507059e+37
    %v1167 = vand.u32 %v1154, 2147483648
    %v1168 = vor.u32 1.1754944e-38, %v1167
    %v1169 = vsel %vm1166, %v1168, %v1164
    %v1170 = vmul.f32 1.0, %v1169
    %v1171 = vrcp.pop %v1155
    %v1172 = vmul.f32 %v1155, %v1171
    %v1173 = vsub.f32 1.0, %v1172
    %v1174 = vmul.f32 %v1171, %v1173
    %v1175 = vadd.f32 %v1171, %v1174
    %vm1176 = vweird.f32 %v1155
    %vm1177 = vweird.f32 %v1171
    %vm1178 = vmor %vm1176, %vm1177
    %v1179 = vsel %vm1178, %v1171, %v1175
    %v1180 = vand.u32 2147483647, %v1155
    %vm1181 = vcmp.eq.f32.partialorder %v1180, 8.507059e+37
    %v1182 = vand.u32 %v1155, 2147483648
    %v1183 = vor.u32 1.1754944e-38, %v1182
    %v1184 = vsel %vm1181, %v1183, %v1179
    %v1185 = vmul.f32 1.0, %v1184
    %v1186 = vtanh.pop %v1147
    %v1187 = vmul.f32 %v1170, %v915
    %v1188 = vmul.f32 %v1170, %v1186
    %1190 = vrot.lane.b32.xlu0 %v1188, 64
    %v1191 = vpop.permute.xlu0 %1190
    %v1193 = vadd.f32 %v1187, %v1191
    %v1194 = vtanh.pop %v1193
    %v1195 = vmul.f32 %v1185, %v1194
    %v1197 = vsel %vm266, %v1103, %v1007
    %1198 = vmatpush.msra.mxu0 %v108
    %1199 = vmatpush.msra.mxu0 %v106
    %1200 = vmatpush.msra.mxu0 %v104
    %1201 = vmatpush.msra.mxu0 %v102
    %1202 = vmatpush.msra.mxu0 %v100
    %1203 = vmatpush.msra.mxu0 %v98
    %1204 = vmatpush.msra.mxu0 %v96
    %1205 = vmatpush.msra.mxu0 %v94
    %1206 = vmatpush.msra.mxu0 %v92
    %1207 = vmatpush.msra.mxu0 %v90
    %1208 = vmatpush.msra.mxu0 %v88
    %1209 = vmatpush.msra.mxu0 %v86
    %1210 = vmatpush.msra.mxu0 %v84
    %1211 = vmatpush.msra.mxu0 %v82
    %1212 = vmatpush.msra.mxu0 %v80
    %1213 = vmatpush.msra.mxu0 %v78
    %1214 = vmatmul.f32.gmra.mxu0 %v1197
    %v1215 = vpop.f32.mrf.mxu0
    %v1216 = vadd.f32 %v145, %v1215
    %1217 = vdwg.mxu0
    %1218 = vmatpush.msra.mxu0 %v109
    %1219 = vmatpush.msra.mxu0 %v107
    %1220 = vmatpush.msra.mxu0 %v105
    %1221 = vmatpush.msra.mxu0 %v103
    %1222 = vmatpush.msra.mxu0 %v101
    %1223 = vmatpush.msra.mxu0 %v99
    %1224 = vmatpush.msra.mxu0 %v97
    %1225 = vmatpush.msra.mxu0 %v95
    %1226 = vmatpush.msra.mxu0 %v93
    %1227 = vmatpush.msra.mxu0 %v91
    %1228 = vmatpush.msra.mxu0 %v89
    %1229 = vmatpush.msra.mxu0 %v87
    %1230 = vmatpush.msra.mxu0 %v85
    %1231 = vmatpush.msra.mxu0 %v83
    %1232 = vmatpush.msra.mxu0 %v81
    %1233 = vmatpush.msra.mxu0 %v79
    %1234 = vmatmul.f32.gmra.mxu0 %v1197
    %v1235 = vpop.f32.mrf.mxu0
    %v1236 = vadd.f32 %v146, %v1235
    %1237 = vdwg.mxu0
    %v1238 = vxor.u32 %v1216, 2147483648
    %v1239 = vxor.u32 %v1236, 2147483648
    %v1240 = vmul.f32 %v1238, 1.442695
    %v1241 = vpow.pop %v1240
    %v1242 = vmul.f32 %v1239, 1.442695
    %v1243 = vpow.pop %v1242
    %v1244 = vadd.f32 %v1241, 1.0
    %v1245 = vadd.f32 %v1243, 1.0
    %v1246 = vrcp.pop %v1244
    %v1247 = vmul.f32 %v1244, %v1246
    %v1248 = vsub.f32 1.0, %v1247
    %v1249 = vmul.f32 %v1246, %v1248
    %v1250 = vadd.f32 %v1246, %v1249
    %vm1251 = vweird.f32 %v1244
    %vm1252 = vweird.f32 %v1246
    %vm1253 = vmor %vm1251, %vm1252
    %v1254 = vsel %vm1253, %v1246, %v1250
    %v1255 = vand.u32 2147483647, %v1244
    %vm1256 = vcmp.eq.f32.partialorder %v1255, 8.507059e+37
    %v1257 = vand.u32 %v1244, 2147483648
    %v1258 = vor.u32 1.1754944e-38, %v1257
    %v1259 = vsel %vm1256, %v1258, %v1254
    %v1260 = vmul.f32 1.0, %v1259
    %v1261 = vrcp.pop %v1245
    %v1262 = vmul.f32 %v1245, %v1261
    %v1263 = vsub.f32 1.0, %v1262
    %v1264 = vmul.f32 %v1261, %v1263
    %v1265 = vadd.f32 %v1261, %v1264
    %vm1266 = vweird.f32 %v1245
    %vm1267 = vweird.f32 %v1261
    %vm1268 = vmor %vm1266, %vm1267
    %v1269 = vsel %vm1268, %v1261, %v1265
    %v1270 = vand.u32 2147483647, %v1245
    %vm1271 = vcmp.eq.f32.partialorder %v1270, 8.507059e+37
    %v1272 = vand.u32 %v1245, 2147483648
    %v1273 = vor.u32 1.1754944e-38, %v1272
    %v1274 = vsel %vm1271, %v1273, %v1269
    %v1275 = vmul.f32 1.0, %v1274
    %v1276 = vtanh.pop %v1236
    %v1277 = vmul.f32 %v1260, %v1005
    %v1278 = vmul.f32 %v1260, %v1276
    %1280 = vrot.lane.b32.xlu0 %v1278, 64
    %v1281 = vpop.permute.xlu0 %1280
    %v1283 = vadd.f32 %v1277, %v1281
    %v1284 = vtanh.pop %v1283
    %v1285 = vmul.f32 %v1275, %v1284
    %1287 = vrot.lane.b32.xlu0 %v1007, 64
    %v1288 = vpop.permute.xlu0 %1287
    %v1290 = vsel %vm266, %v1288, %v1100
    %1291 = vmatpush.msra.mxu0 %v141
    %1292 = vmatpush.msra.mxu0 %v139
    %1293 = vmatpush.msra.mxu0 %v137
    %1294 = vmatpush.msra.mxu0 %v135
    %1295 = vmatpush.msra.mxu0 %v133
    %1296 = vmatpush.msra.mxu0 %v131
    %1297 = vmatpush.msra.mxu0 %v129
    %1298 = vmatpush.msra.mxu0 %v127
    %1299 = vmatpush.msra.mxu0 %v125
    %1300 = vmatpush.msra.mxu0 %v123
    %1301 = vmatpush.msra.mxu0 %v121
    %1302 = vmatpush.msra.mxu0 %v119
    %1303 = vmatpush.msra.mxu0 %v117
    %1304 = vmatpush.msra.mxu0 %v115
    %1305 = vmatpush.msra.mxu0 %v113
    %1306 = vmatpush.msra.mxu0 %v111
    %1307 = vmatmul.f32.gmra.mxu0 %v1290
    %v1308 = vpop.f32.mrf.mxu0
    %v1309 = vadd.f32 %v152, %v1308
    %1310 = vdwg.mxu0
    %1311 = vmatpush.msra.mxu0 %v142
    %1312 = vmatpush.msra.mxu0 %v140
    %1313 = vmatpush.msra.mxu0 %v138
    %1314 = vmatpush.msra.mxu0 %v136
    %1315 = vmatpush.msra.mxu0 %v134
    %1316 = vmatpush.msra.mxu0 %v132
    %1317 = vmatpush.msra.mxu0 %v130
    %1318 = vmatpush.msra.mxu0 %v128
    %1319 = vmatpush.msra.mxu0 %v126
    %1320 = vmatpush.msra.mxu0 %v124
    %1321 = vmatpush.msra.mxu0 %v122
    %1322 = vmatpush.msra.mxu0 %v120
    %1323 = vmatpush.msra.mxu0 %v118
    %1324 = vmatpush.msra.mxu0 %v116
    %1325 = vmatpush.msra.mxu0 %v114
    %1326 = vmatpush.msra.mxu0 %v112
    %1327 = vmatmul.f32.gmra.mxu0 %v1290
    %v1328 = vpop.f32.mrf.mxu0
    %v1329 = vadd.f32 %v153, %v1328
    %1330 = vdwg.mxu0
    %v1331 = vxor.u32 %v1309, 2147483648
    %v1332 = vxor.u32 %v1329, 2147483648
    %v1333 = vmul.f32 %v1331, 1.442695
    %v1334 = vpow.pop %v1333
    %v1335 = vmul.f32 %v1332, 1.442695
    %v1336 = vpow.pop %v1335
    %v1337 = vadd.f32 %v1334, 1.0
    %v1338 = vadd.f32 %v1336, 1.0
    %v1339 = vrcp.pop %v1337
    %v1340 = vmul.f32 %v1337, %v1339
    %v1341 = vsub.f32 1.0, %v1340
    %v1342 = vmul.f32 %v1339, %v1341
    %v1343 = vadd.f32 %v1339, %v1342
    %vm1344 = vweird.f32 %v1337
    %vm1345 = vweird.f32 %v1339
    %vm1346 = vmor %vm1344, %vm1345
    %v1347 = vsel %vm1346, %v1339, %v1343
    %v1348 = vand.u32 2147483647, %v1337
    %vm1349 = vcmp.eq.f32.partialorder %v1348, 8.507059e+37
    %v1350 = vand.u32 %v1337, 2147483648
    %v1351 = vor.u32 1.1754944e-38, %v1350
    %v1352 = vsel %vm1349, %v1351, %v1347
    %v1353 = vmul.f32 1.0, %v1352
    %v1354 = vrcp.pop %v1338
    %v1355 = vmul.f32 %v1338, %v1354
    %v1356 = vsub.f32 1.0, %v1355
    %v1357 = vmul.f32 %v1354, %v1356
    %v1358 = vadd.f32 %v1354, %v1357
    %vm1359 = vweird.f32 %v1338
    %vm1360 = vweird.f32 %v1354
    %vm1361 = vmor %vm1359, %vm1360
    %v1362 = vsel %vm1361, %v1354, %v1358
    %v1363 = vand.u32 2147483647, %v1338
    %vm1364 = vcmp.eq.f32.partialorder %v1363, 8.507059e+37
    %v1365 = vand.u32 %v1338, 2147483648
    %v1366 = vor.u32 1.1754944e-38, %v1365
    %v1367 = vsel %vm1364, %v1366, %v1362
    %v1368 = vmul.f32 1.0, %v1367
    %v1369 = vtanh.pop %v1329
    %v1370 = vmul.f32 %v1353, %v1098
    %v1371 = vmul.f32 %v1353, %v1369
    %1373 = vrot.lane.b32.xlu0 %v1371, 64
    %v1374 = vpop.permute.xlu0 %1373
    %v1376 = vadd.f32 %v1370, %v1374
    %v1377 = vtanh.pop %v1376
    %v1378 = vmul.f32 %v1368, %v1377
    %1380 = vrot.lane.b32.xlu0 %v1195, 64
    %v1381 = vpop.permute.xlu0 %1380
    %v1382 = vsel %vm266, %v1381, 0
    %1384 = vmatpush.msra.mxu0 0.0
    %1385 = vmatpush.msra.mxu0 0.0
    %1386 = vmatpush.msra.mxu0 0.0
    %1387 = vmatpush.msra.mxu0 0.0
    %1388 = vmatpush.msra.mxu0 0.0
    %1389 = vmatpush.msra.mxu0 0.0
    %1390 = vmatpush.msra.mxu0 0.0
    %1391 = vmatpush.msra.mxu0 0.0
    %1392 = vmatpush.msra.mxu0 %v76
    %1393 = vmatpush.msra.mxu0 %v74
    %1394 = vmatpush.msra.mxu0 %v72
    %1395 = vmatpush.msra.mxu0 %v70
    %1396 = vmatpush.msra.mxu0 %v68
    %1397 = vmatpush.msra.mxu0 %v66
    %1398 = vmatpush.msra.mxu0 %v64
    %1399 = vmatpush.msra.mxu0 %v62
    %1400 = vmatmul.f32.gmra.mxu0 %v1382
    %v1401 = vpop.f32.mrf.mxu0
    %v1402 = vadd.f32 0.0, %v1401
    %1403 = vdwg.mxu0
    %1404 = vmatpush.msra.mxu0 0.0
    %1405 = vmatpush.msra.mxu0 0.0
    %1406 = vmatpush.msra.mxu0 0.0
    %1407 = vmatpush.msra.mxu0 0.0
    %1408 = vmatpush.msra.mxu0 0.0
    %1409 = vmatpush.msra.mxu0 0.0
    %1410 = vmatpush.msra.mxu0 0.0
    %1411 = vmatpush.msra.mxu0 0.0
    %1412 = vmatpush.msra.mxu0 %v77
    %1413 = vmatpush.msra.mxu0 %v75
    %1414 = vmatpush.msra.mxu0 %v73
    %1415 = vmatpush.msra.mxu0 %v71
    %1416 = vmatpush.msra.mxu0 %v69
    %1417 = vmatpush.msra.mxu0 %v67
    %1418 = vmatpush.msra.mxu0 %v65
    %1419 = vmatpush.msra.mxu0 %v63
    %1420 = vmatmul.f32.gmra.mxu0 %v1382
    %v1421 = vpop.f32.mrf.mxu0
    %v1422 = vadd.f32 0.0, %v1421
    %1423 = vdwg.mxu0
    %v1424 = vadd.f32 %v260, %v1402
    %v1425 = vadd.f32 %v261, %v1422
    %v1426 = vxor.u32 %v1424, 2147483648
    %v1427 = vxor.u32 %v1425, 2147483648
    %v1428 = vmul.f32 %v1426, 1.442695
    %v1429 = vpow.pop %v1428
    %v1430 = vmul.f32 %v1427, 1.442695
    %v1431 = vpow.pop %v1430
    %v1432 = vadd.f32 %v1429, 1.0
    %v1433 = vadd.f32 %v1431, 1.0
    %v1434 = vrcp.pop %v1432
    %v1435 = vmul.f32 %v1432, %v1434
    %v1436 = vsub.f32 1.0, %v1435
    %v1437 = vmul.f32 %v1434, %v1436
    %v1438 = vadd.f32 %v1434, %v1437
    %vm1439 = vweird.f32 %v1432
    %vm1440 = vweird.f32 %v1434
    %vm1441 = vmor %vm1439, %vm1440
    %v1442 = vsel %vm1441, %v1434, %v1438
    %v1443 = vand.u32 2147483647, %v1432
    %vm1444 = vcmp.eq.f32.partialorder %v1443, 8.507059e+37
    %v1445 = vand.u32 %v1432, 2147483648
    %v1446 = vor.u32 1.1754944e-38, %v1445
    %v1447 = vsel %vm1444, %v1446, %v1442
    %v1448 = vmul.f32 1.0, %v1447
    %v1449 = vrcp.pop %v1433
    %v1450 = vmul.f32 %v1433, %v1449
    %v1451 = vsub.f32 1.0, %v1450
    %v1452 = vmul.f32 %v1449, %v1451
    %v1453 = vadd.f32 %v1449, %v1452
    %vm1454 = vweird.f32 %v1433
    %vm1455 = vweird.f32 %v1449
    %vm1456 = vmor %vm1454, %vm1455
    %v1457 = vsel %vm1456, %v1449, %v1453
    %v1458 = vand.u32 2147483647, %v1433
    %vm1459 = vcmp.eq.f32.partialorder %v1458, 8.507059e+37
    %v1460 = vand.u32 %v1433, 2147483648
    %v1461 = vor.u32 1.1754944e-38, %v1460
    %v1462 = vsel %vm1459, %v1461, %v1457
    %v1463 = vmul.f32 1.0, %v1462
    %v1464 = vtanh.pop %v1425
    %v1465 = vmul.f32 %v1448, %v1193
    %v1466 = vmul.f32 %v1448, %v1464
    %1468 = vrot.lane.b32.xlu0 %v1466, 64
    %v1469 = vpop.permute.xlu0 %1468
    %v1471 = vadd.f32 %v1465, %v1469
    %v1472 = vtanh.pop %v1471
    %v1473 = vmul.f32 %v1463, %v1472
    %v1475 = vsel %vm266, %v1381, %v1285
    %1476 = vmatpush.msra.mxu0 %v108
    %1477 = vmatpush.msra.mxu0 %v106
    %1478 = vmatpush.msra.mxu0 %v104
    %1479 = vmatpush.msra.mxu0 %v102
    %1480 = vmatpush.msra.mxu0 %v100
    %1481 = vmatpush.msra.mxu0 %v98
    %1482 = vmatpush.msra.mxu0 %v96
    %1483 = vmatpush.msra.mxu0 %v94
    %1484 = vmatpush.msra.mxu0 %v92
    %1485 = vmatpush.msra.mxu0 %v90
    %1486 = vmatpush.msra.mxu0 %v88
    %1487 = vmatpush.msra.mxu0 %v86
    %1488 = vmatpush.msra.mxu0 %v84
    %1489 = vmatpush.msra.mxu0 %v82
    %1490 = vmatpush.msra.mxu0 %v80
    %1491 = vmatpush.msra.mxu0 %v78
    %1492 = vmatmul.f32.gmra.mxu0 %v1475
    %v1493 = vpop.f32.mrf.mxu0
    %v1494 = vadd.f32 %v145, %v1493
    %1495 = vdwg.mxu0
    %1496 = vmatpush.msra.mxu0 %v109
    %1497 = vmatpush.msra.mxu0 %v107
    %1498 = vmatpush.msra.mxu0 %v105
    %1499 = vmatpush.msra.mxu0 %v103
    %1500 = vmatpush.msra.mxu0 %v101
    %1501 = vmatpush.msra.mxu0 %v99
    %1502 = vmatpush.msra.mxu0 %v97
    %1503 = vmatpush.msra.mxu0 %v95
    %1504 = vmatpush.msra.mxu0 %v93
    %1505 = vmatpush.msra.mxu0 %v91
    %1506 = vmatpush.msra.mxu0 %v89
    %1507 = vmatpush.msra.mxu0 %v87
    %1508 = vmatpush.msra.mxu0 %v85
    %1509 = vmatpush.msra.mxu0 %v83
    %1510 = vmatpush.msra.mxu0 %v81
    %1511 = vmatpush.msra.mxu0 %v79
    %1512 = vmatmul.f32.gmra.mxu0 %v1475
    %v1513 = vpop.f32.mrf.mxu0
    %v1514 = vadd.f32 %v146, %v1513
    %1515 = vdwg.mxu0
    %v1516 = vxor.u32 %v1494, 2147483648
    %v1517 = vxor.u32 %v1514, 2147483648
    %v1518 = vmul.f32 %v1516, 1.442695
    %v1519 = vpow.pop %v1518
    %v1520 = vmul.f32 %v1517, 1.442695
    %v1521 = vpow.pop %v1520
    %v1522 = vadd.f32 %v1519, 1.0
    %v1523 = vadd.f32 %v1521, 1.0
    %v1524 = vrcp.pop %v1522
    %v1525 = vmul.f32 %v1522, %v1524
    %v1526 = vsub.f32 1.0, %v1525
    %v1527 = vmul.f32 %v1524, %v1526
    %v1528 = vadd.f32 %v1524, %v1527
    %vm1529 = vweird.f32 %v1522
    %vm1530 = vweird.f32 %v1524
    %vm1531 = vmor %vm1529, %vm1530
    %v1532 = vsel %vm1531, %v1524, %v1528
    %v1533 = vand.u32 2147483647, %v1522
    %vm1534 = vcmp.eq.f32.partialorder %v1533, 8.507059e+37
    %v1535 = vand.u32 %v1522, 2147483648
    %v1536 = vor.u32 1.1754944e-38, %v1535
    %v1537 = vsel %vm1534, %v1536, %v1532
    %v1538 = vmul.f32 1.0, %v1537
    %v1539 = vrcp.pop %v1523
    %v1540 = vmul.f32 %v1523, %v1539
    %v1541 = vsub.f32 1.0, %v1540
    %v1542 = vmul.f32 %v1539, %v1541
    %v1543 = vadd.f32 %v1539, %v1542
    %vm1544 = vweird.f32 %v1523
    %vm1545 = vweird.f32 %v1539
    %vm1546 = vmor %vm1544, %vm1545
    %v1547 = vsel %vm1546, %v1539, %v1543
    %v1548 = vand.u32 2147483647, %v1523
    %vm1549 = vcmp.eq.f32.partialorder %v1548, 8.507059e+37
    %v1550 = vand.u32 %v1523, 2147483648
    %v1551 = vor.u32 1.1754944e-38, %v1550
    %v1552 = vsel %vm1549, %v1551, %v1547
    %v1553 = vmul.f32 1.0, %v1552
    %v1554 = vtanh.pop %v1514
    %v1555 = vmul.f32 %v1538, %v1283
    %v1556 = vmul.f32 %v1538, %v1554
    %1558 = vrot.lane.b32.xlu0 %v1556, 64
    %v1559 = vpop.permute.xlu0 %1558
    %v1561 = vadd.f32 %v1555, %v1559
    %v1562 = vtanh.pop %v1561
    %v1563 = vmul.f32 %v1553, %v1562
    %1565 = vrot.lane.b32.xlu0 %v1285, 64
    %v1566 = vpop.permute.xlu0 %1565
    %v1568 = vsel %vm266, %v1566, %v1378
    %1569 = vmatpush.msra.mxu0 %v141
    %1570 = vmatpush.msra.mxu0 %v139
    %1571 = vmatpush.msra.mxu0 %v137
    %1572 = vmatpush.msra.mxu0 %v135
    %1573 = vmatpush.msra.mxu0 %v133
    %1574 = vmatpush.msra.mxu0 %v131
    %1575 = vmatpush.msra.mxu0 %v129
    %1576 = vmatpush.msra.mxu0 %v127
    %1577 = vmatpush.msra.mxu0 %v125
    %1578 = vmatpush.msra.mxu0 %v123
    %1579 = vmatpush.msra.mxu0 %v121
    %1580 = vmatpush.msra.mxu0 %v119
    %1581 = vmatpush.msra.mxu0 %v117
    %1582 = vmatpush.msra.mxu0 %v115
    %1583 = vmatpush.msra.mxu0 %v113
    %1584 = vmatpush.msra.mxu0 %v111
    %1585 = vmatmul.f32.gmra.mxu0 %v1568
    %v1586 = vpop.f32.mrf.mxu0
    %v1587 = vadd.f32 %v152, %v1586
    %1588 = vdwg.mxu0
    %1589 = vmatpush.msra.mxu0 %v142
    %1590 = vmatpush.msra.mxu0 %v140
    %1591 = vmatpush.msra.mxu0 %v138
    %1592 = vmatpush.msra.mxu0 %v136
    %1593 = vmatpush.msra.mxu0 %v134
    %1594 = vmatpush.msra.mxu0 %v132
    %1595 = vmatpush.msra.mxu0 %v130
    %1596 = vmatpush.msra.mxu0 %v128
    %1597 = vmatpush.msra.mxu0 %v126
    %1598 = vmatpush.msra.mxu0 %v124
    %1599 = vmatpush.msra.mxu0 %v122
    %1600 = vmatpush.msra.mxu0 %v120
    %1601 = vmatpush.msra.mxu0 %v118
    %1602 = vmatpush.msra.mxu0 %v116
    %1603 = vmatpush.msra.mxu0 %v114
    %1604 = vmatpush.msra.mxu0 %v112
    %1605 = vmatmul.f32.gmra.mxu0 %v1568
    %v1606 = vpop.f32.mrf.mxu0
    %v1607 = vadd.f32 %v153, %v1606
    %1608 = vdwg.mxu0
    %v1609 = vxor.u32 %v1587, 2147483648
    %v1610 = vxor.u32 %v1607, 2147483648
    %v1611 = vmul.f32 %v1609, 1.442695
    %v1612 = vpow.pop %v1611
    %v1613 = vmul.f32 %v1610, 1.442695
    %v1614 = vpow.pop %v1613
    %v1615 = vadd.f32 %v1612, 1.0
    %v1616 = vadd.f32 %v1614, 1.0
    %v1617 = vrcp.pop %v1615
    %v1618 = vmul.f32 %v1615, %v1617
    %v1619 = vsub.f32 1.0, %v1618
    %v1620 = vmul.f32 %v1617, %v1619
    %v1621 = vadd.f32 %v1617, %v1620
    %vm1622 = vweird.f32 %v1615
    %vm1623 = vweird.f32 %v1617
    %vm1624 = vmor %vm1622, %vm1623
    %v1625 = vsel %vm1624, %v1617, %v1621
    %v1626 = vand.u32 2147483647, %v1615
    %vm1627 = vcmp.eq.f32.partialorder %v1626, 8.507059e+37
    %v1628 = vand.u32 %v1615, 2147483648
    %v1629 = vor.u32 1.1754944e-38, %v1628
    %v1630 = vsel %vm1627, %v1629, %v1625
    %v1631 = vmul.f32 1.0, %v1630
    %v1632 = vrcp.pop %v1616
    %v1633 = vmul.f32 %v1616, %v1632
    %v1634 = vsub.f32 1.0, %v1633
    %v1635 = vmul.f32 %v1632, %v1634
    %v1636 = vadd.f32 %v1632, %v1635
    %vm1637 = vweird.f32 %v1616
    %vm1638 = vweird.f32 %v1632
    %vm1639 = vmor %vm1637, %vm1638
    %v1640 = vsel %vm1639, %v1632, %v1636
    %v1641 = vand.u32 2147483647, %v1616
    %vm1642 = vcmp.eq.f32.partialorder %v1641, 8.507059e+37
    %v1643 = vand.u32 %v1616, 2147483648
    %v1644 = vor.u32 1.1754944e-38, %v1643
    %v1645 = vsel %vm1642, %v1644, %v1640
    %v1646 = vmul.f32 1.0, %v1645
    %v1647 = vtanh.pop %v1607
    %v1648 = vmul.f32 %v1631, %v1376
    %v1649 = vmul.f32 %v1631, %v1647
    %1651 = vrot.lane.b32.xlu0 %v1649, 64
    %v1652 = vpop.permute.xlu0 %1651
    %v1654 = vadd.f32 %v1648, %v1652
    %v1655 = vtanh.pop %v1654
    %v1656 = vmul.f32 %v1646, %v1655
    %1658 = vrot.lane.b32.xlu0 %v1473, 64
    %v1659 = vpop.permute.xlu0 %1658
    %v1660 = vsel %vm266, %v1659, 0
    %1662 = vmatpush.msra.mxu0 0.0
    %1663 = vmatpush.msra.mxu0 0.0
    %1664 = vmatpush.msra.mxu0 0.0
    %1665 = vmatpush.msra.mxu0 0.0
    %1666 = vmatpush.msra.mxu0 0.0
    %1667 = vmatpush.msra.mxu0 0.0
    %1668 = vmatpush.msra.mxu0 0.0
    %1669 = vmatpush.msra.mxu0 0.0
    %1670 = vmatpush.msra.mxu0 %v76
    %1671 = vmatpush.msra.mxu0 %v74
    %1672 = vmatpush.msra.mxu0 %v72
    %1673 = vmatpush.msra.mxu0 %v70
    %1674 = vmatpush.msra.mxu0 %v68
    %1675 = vmatpush.msra.mxu0 %v66
    %1676 = vmatpush.msra.mxu0 %v64
    %1677 = vmatpush.msra.mxu0 %v62
    %1678 = vmatmul.f32.gmra.mxu0 %v1660
    %v1679 = vpop.f32.mrf.mxu0
    %v1680 = vadd.f32 0.0, %v1679
    %1681 = vdwg.mxu0
    %1682 = vmatpush.msra.mxu0 0.0
    %1683 = vmatpush.msra.mxu0 0.0
    %1684 = vmatpush.msra.mxu0 0.0
    %1685 = vmatpush.msra.mxu0 0.0
    %1686 = vmatpush.msra.mxu0 0.0
    %1687 = vmatpush.msra.mxu0 0.0
    %1688 = vmatpush.msra.mxu0 0.0
    %1689 = vmatpush.msra.mxu0 0.0
    %1690 = vmatpush.msra.mxu0 %v77
    %1691 = vmatpush.msra.mxu0 %v75
    %1692 = vmatpush.msra.mxu0 %v73
    %1693 = vmatpush.msra.mxu0 %v71
    %1694 = vmatpush.msra.mxu0 %v69
    %1695 = vmatpush.msra.mxu0 %v67
    %1696 = vmatpush.msra.mxu0 %v65
    %1697 = vmatpush.msra.mxu0 %v63
    %1698 = vmatmul.f32.gmra.mxu0 %v1660
    %v1699 = vpop.f32.mrf.mxu0
    %v1700 = vadd.f32 0.0, %v1699
    %1701 = vdwg.mxu0
    %v1702 = vadd.f32 %v262, %v1680
    %v1703 = vadd.f32 %v263, %v1700
    %v1704 = vxor.u32 %v1702, 2147483648
    %v1705 = vxor.u32 %v1703, 2147483648
    %v1706 = vmul.f32 %v1704, 1.442695
    %v1707 = vpow.pop %v1706
    %v1708 = vmul.f32 %v1705, 1.442695
    %v1709 = vpow.pop %v1708
    %v1710 = vadd.f32 %v1707, 1.0
    %v1711 = vadd.f32 %v1709, 1.0
    %v1712 = vrcp.pop %v1710
    %v1713 = vmul.f32 %v1710, %v1712
    %v1714 = vsub.f32 1.0, %v1713
    %v1715 = vmul.f32 %v1712, %v1714
    %v1716 = vadd.f32 %v1712, %v1715
    %vm1717 = vweird.f32 %v1710
    %vm1718 = vweird.f32 %v1712
    %vm1719 = vmor %vm1717, %vm1718
    %v1720 = vsel %vm1719, %v1712, %v1716
    %v1721 = vand.u32 2147483647, %v1710
    %vm1722 = vcmp.eq.f32.partialorder %v1721, 8.507059e+37
    %v1723 = vand.u32 %v1710, 2147483648
    %v1724 = vor.u32 1.1754944e-38, %v1723
    %v1725 = vsel %vm1722, %v1724, %v1720
    %v1726 = vmul.f32 1.0, %v1725
    %v1727 = vrcp.pop %v1711
    %v1728 = vmul.f32 %v1711, %v1727
    %v1729 = vsub.f32 1.0, %v1728
    %v1730 = vmul.f32 %v1727, %v1729
    %v1731 = vadd.f32 %v1727, %v1730
    %vm1732 = vweird.f32 %v1711
    %vm1733 = vweird.f32 %v1727
    %vm1734 = vmor %vm1732, %vm1733
    %v1735 = vsel %vm1734, %v1727, %v1731
    %v1736 = vand.u32 2147483647, %v1711
    %vm1737 = vcmp.eq.f32.partialorder %v1736, 8.507059e+37
    %v1738 = vand.u32 %v1711, 2147483648
    %v1739 = vor.u32 1.1754944e-38, %v1738
    %v1740 = vsel %vm1737, %v1739, %v1735
    %v1741 = vmul.f32 1.0, %v1740
    %v1742 = vtanh.pop %v1703
    %v1743 = vmul.f32 %v1726, %v1471
    %v1744 = vmul.f32 %v1726, %v1742
    %1746 = vrot.lane.b32.xlu0 %v1744, 64
    %v1747 = vpop.permute.xlu0 %1746
    %v1749 = vadd.f32 %v1743, %v1747
    %v1750 = vtanh.pop %v1749
    %v1751 = vmul.f32 %v1741, %v1750
    %v1753 = vsel %vm266, %v1659, %v1563
    %1754 = vmatpush.msra.mxu0 %v108
    %1755 = vmatpush.msra.mxu0 %v106
    %1756 = vmatpush.msra.mxu0 %v104
    %1757 = vmatpush.msra.mxu0 %v102
    %1758 = vmatpush.msra.mxu0 %v100
    %1759 = vmatpush.msra.mxu0 %v98
    %1760 = vmatpush.msra.mxu0 %v96
    %1761 = vmatpush.msra.mxu0 %v94
    %1762 = vmatpush.msra.mxu0 %v92
    %1763 = vmatpush.msra.mxu0 %v90
    %1764 = vmatpush.msra.mxu0 %v88
    %1765 = vmatpush.msra.mxu0 %v86
    %1766 = vmatpush.msra.mxu0 %v84
    %1767 = vmatpush.msra.mxu0 %v82
    %1768 = vmatpush.msra.mxu0 %v80
    %1769 = vmatpush.msra.mxu0 %v78
    %1770 = vmatmul.f32.gmra.mxu0 %v1753
    %v1771 = vpop.f32.mrf.mxu0
    %v1772 = vadd.f32 %v145, %v1771
    %1773 = vdwg.mxu0
    %1774 = vmatpush.msra.mxu0 %v109
    %1775 = vmatpush.msra.mxu0 %v107
    %1776 = vmatpush.msra.mxu0 %v105
    %1777 = vmatpush.msra.mxu0 %v103
    %1778 = vmatpush.msra.mxu0 %v101
    %1779 = vmatpush.msra.mxu0 %v99
    %1780 = vmatpush.msra.mxu0 %v97
    %1781 = vmatpush.msra.mxu0 %v95
    %1782 = vmatpush.msra.mxu0 %v93
    %1783 = vmatpush.msra.mxu0 %v91
    %1784 = vmatpush.msra.mxu0 %v89
    %1785 = vmatpush.msra.mxu0 %v87
    %1786 = vmatpush.msra.mxu0 %v85
    %1787 = vmatpush.msra.mxu0 %v83
    %1788 = vmatpush.msra.mxu0 %v81
    %1789 = vmatpush.msra.mxu0 %v79
    %1790 = vmatmul.f32.gmra.mxu0 %v1753
    %v1791 = vpop.f32.mrf.mxu0
    %v1792 = vadd.f32 %v146, %v1791
    %1793 = vdwg.mxu0
    %v1794 = vxor.u32 %v1772, 2147483648
    %v1795 = vxor.u32 %v1792, 2147483648
    %v1796 = vmul.f32 %v1794, 1.442695
    %v1797 = vpow.pop %v1796
    %v1798 = vmul.f32 %v1795, 1.442695
    %v1799 = vpow.pop %v1798
    %v1800 = vadd.f32 %v1797, 1.0
    %v1801 = vadd.f32 %v1799, 1.0
    %v1802 = vrcp.pop %v1800
    %v1803 = vmul.f32 %v1800, %v1802
    %v1804 = vsub.f32 1.0, %v1803
    %v1805 = vmul.f32 %v1802, %v1804
    %v1806 = vadd.f32 %v1802, %v1805
    %vm1807 = vweird.f32 %v1800
    %vm1808 = vweird.f32 %v1802
    %vm1809 = vmor %vm1807, %vm1808
    %v1810 = vsel %vm1809, %v1802, %v1806
    %v1811 = vand.u32 2147483647, %v1800
    %vm1812 = vcmp.eq.f32.partialorder %v1811, 8.507059e+37
    %v1813 = vand.u32 %v1800, 2147483648
    %v1814 = vor.u32 1.1754944e-38, %v1813
    %v1815 = vsel %vm1812, %v1814, %v1810
    %v1816 = vmul.f32 1.0, %v1815
    %v1817 = vrcp.pop %v1801
    %v1818 = vmul.f32 %v1801, %v1817
    %v1819 = vsub.f32 1.0, %v1818
    %v1820 = vmul.f32 %v1817, %v1819
    %v1821 = vadd.f32 %v1817, %v1820
    %vm1822 = vweird.f32 %v1801
    %vm1823 = vweird.f32 %v1817
    %vm1824 = vmor %vm1822, %vm1823
    %v1825 = vsel %vm1824, %v1817, %v1821
    %v1826 = vand.u32 2147483647, %v1801
    %vm1827 = vcmp.eq.f32.partialorder %v1826, 8.507059e+37
    %v1828 = vand.u32 %v1801, 2147483648
    %v1829 = vor.u32 1.1754944e-38, %v1828
    %v1830 = vsel %vm1827, %v1829, %v1825
    %v1831 = vmul.f32 1.0, %v1830
    %v1832 = vtanh.pop %v1792
    %v1833 = vmul.f32 %v1816, %v1561
    %v1834 = vmul.f32 %v1816, %v1832
    %1836 = vrot.lane.b32.xlu0 %v1834, 64
    %v1837 = vpop.permute.xlu0 %1836
    %v1839 = vadd.f32 %v1833, %v1837
    %v1840 = vtanh.pop %v1839
    %v1841 = vmul.f32 %v1831, %v1840
    %1843 = vrot.lane.b32.xlu0 %v1563, 64
    %v1844 = vpop.permute.xlu0 %1843
    %v1846 = vsel %vm266, %v1844, %v1656
    %1847 = vmatpush.msra.mxu0 %v141
    %1848 = vmatpush.msra.mxu0 %v139
    %1849 = vmatpush.msra.mxu0 %v137
    %1850 = vmatpush.msra.mxu0 %v135
    %1851 = vmatpush.msra.mxu0 %v133
    %1852 = vmatpush.msra.mxu0 %v131
    %1853 = vmatpush.msra.mxu0 %v129
    %1854 = vmatpush.msra.mxu0 %v127
    %1855 = vmatpush.msra.mxu0 %v125
    %1856 = vmatpush.msra.mxu0 %v123
    %1857 = vmatpush.msra.mxu0 %v121
    %1858 = vmatpush.msra.mxu0 %v119
    %1859 = vmatpush.msra.mxu0 %v117
    %1860 = vmatpush.msra.mxu0 %v115
    %1861 = vmatpush.msra.mxu0 %v113
    %1862 = vmatpush.msra.mxu0 %v111
    %1863 = vmatmul.f32.gmra.mxu0 %v1846
    %v1864 = vpop.f32.mrf.mxu0
    %v1865 = vadd.f32 %v152, %v1864
    %1866 = vdwg.mxu0
    %1867 = vmatpush.msra.mxu0 %v142
    %1868 = vmatpush.msra.mxu0 %v140
    %1869 = vmatpush.msra.mxu0 %v138
    %1870 = vmatpush.msra.mxu0 %v136
    %1871 = vmatpush.msra.mxu0 %v134
    %1872 = vmatpush.msra.mxu0 %v132
    %1873 = vmatpush.msra.mxu0 %v130
    %1874 = vmatpush.msra.mxu0 %v128
    %1875 = vmatpush.msra.mxu0 %v126
    %1876 = vmatpush.msra.mxu0 %v124
    %1877 = vmatpush.msra.mxu0 %v122
    %1878 = vmatpush.msra.mxu0 %v120
    %1879 = vmatpush.msra.mxu0 %v118
    %1880 = vmatpush.msra.mxu0 %v116
    %1881 = vmatpush.msra.mxu0 %v114
    %1882 = vmatpush.msra.mxu0 %v112
    %1883 = vmatmul.f32.gmra.mxu0 %v1846
    %v1884 = vpop.f32.mrf.mxu0
    %v1885 = vadd.f32 %v153, %v1884
    %1886 = vdwg.mxu0
    %v1887 = vxor.u32 %v1865, 2147483648
    %v1888 = vxor.u32 %v1885, 2147483648
    %v1889 = vmul.f32 %v1887, 1.442695
    %v1890 = vpow.pop %v1889
    %v1891 = vmul.f32 %v1888, 1.442695
    %v1892 = vpow.pop %v1891
    %v1893 = vadd.f32 %v1890, 1.0
    %v1894 = vadd.f32 %v1892, 1.0
    %v1895 = vrcp.pop %v1893
    %v1896 = vmul.f32 %v1893, %v1895
    %v1897 = vsub.f32 1.0, %v1896
    %v1898 = vmul.f32 %v1895, %v1897
    %v1899 = vadd.f32 %v1895, %v1898
    %vm1900 = vweird.f32 %v1893
    %vm1901 = vweird.f32 %v1895
    %vm1902 = vmor %vm1900, %vm1901
    %v1903 = vsel %vm1902, %v1895, %v1899
    %v1904 = vand.u32 2147483647, %v1893
    %vm1905 = vcmp.eq.f32.partialorder %v1904, 8.507059e+37
    %v1906 = vand.u32 %v1893, 2147483648
    %v1907 = vor.u32 1.1754944e-38, %v1906
    %v1908 = vsel %vm1905, %v1907, %v1903
    %v1909 = vmul.f32 1.0, %v1908
    %v1910 = vrcp.pop %v1894
    %v1911 = vmul.f32 %v1894, %v1910
    %v1912 = vsub.f32 1.0, %v1911
    %v1913 = vmul.f32 %v1910, %v1912
    %v1914 = vadd.f32 %v1910, %v1913
    %vm1915 = vweird.f32 %v1894
    %vm1916 = vweird.f32 %v1910
    %vm1917 = vmor %vm1915, %vm1916
    %v1918 = vsel %vm1917, %v1910, %v1914
    %v1919 = vand.u32 2147483647, %v1894
    %vm1920 = vcmp.eq.f32.partialorder %v1919, 8.507059e+37
    %v1921 = vand.u32 %v1894, 2147483648
    %v1922 = vor.u32 1.1754944e-38, %v1921
    %v1923 = vsel %vm1920, %v1922, %v1918
    %v1924 = vmul.f32 1.0, %v1923
    %v1925 = vtanh.pop %v1885
    %v1926 = vmul.f32 %v1909, %v1654
    %v1927 = vmul.f32 %v1909, %v1925
    %1929 = vrot.lane.b32.xlu0 %v1927, 64
    %v1930 = vpop.permute.xlu0 %1929
    %v1932 = vadd.f32 %v1926, %v1930
    %v1933 = vtanh.pop %v1932
    %v1934 = vmul.f32 %v1924, %v1933
    %1936 = vrot.lane.b32.xlu0 %v1751, 64
    %v1937 = vpop.permute.xlu0 %1936
    %v1938 = vsel %vm266, %v1937, 0
    %1940 = vmatpush.msra.mxu0 0.0
    %1941 = vmatpush.msra.mxu0 0.0
    %1942 = vmatpush.msra.mxu0 0.0
    %1943 = vmatpush.msra.mxu0 0.0
    %1944 = vmatpush.msra.mxu0 0.0
    %1945 = vmatpush.msra.mxu0 0.0
    %1946 = vmatpush.msra.mxu0 0.0
    %1947 = vmatpush.msra.mxu0 0.0
    %1948 = vmatpush.msra.mxu0 %v76
    %1949 = vmatpush.msra.mxu0 %v74
    %1950 = vmatpush.msra.mxu0 %v72
    %1951 = vmatpush.msra.mxu0 %v70
    %1952 = vmatpush.msra.mxu0 %v68
    %1953 = vmatpush.msra.mxu0 %v66
    %1954 = vmatpush.msra.mxu0 %v64
    %1955 = vmatpush.msra.mxu0 %v62
    %1956 = vmatmul.f32.gmra.mxu0 %v1938
    %v1957 = vpop.f32.mrf.mxu0
    %v1958 = vadd.f32 0.0, %v1957
    %1959 = vdwg.mxu0
    %1960 = vmatpush.msra.mxu0 0.0
    %1961 = vmatpush.msra.mxu0 0.0
    %1962 = vmatpush.msra.mxu0 0.0
    %1963 = vmatpush.msra.mxu0 0.0
    %1964 = vmatpush.msra.mxu0 0.0
    %1965 = vmatpush.msra.mxu0 0.0
    %1966 = vmatpush.msra.mxu0 0.0
    %1967 = vmatpush.msra.mxu0 0.0
    %1968 = vmatpush.msra.mxu0 %v77
    %1969 = vmatpush.msra.mxu0 %v75
    %1970 = vmatpush.msra.mxu0 %v73
    %1971 = vmatpush.msra.mxu0 %v71
    %1972 = vmatpush.msra.mxu0 %v69
    %1973 = vmatpush.msra.mxu0 %v67
    %1974 = vmatpush.msra.mxu0 %v65
    %1975 = vmatpush.msra.mxu0 %v63
    %1976 = vmatmul.f32.gmra.mxu0 %v1938
    %v1977 = vpop.f32.mrf.mxu0
    %v1978 = vadd.f32 0.0, %v1977
    %1979 = vdwg.mxu0
    %v1980 = vadd.f32 %v264, %v1958
    %v1981 = vadd.f32 %v265, %v1978
    %v1982 = vxor.u32 %v1980, 2147483648
    %v1983 = vxor.u32 %v1981, 2147483648
    %v1984 = vmul.f32 %v1982, 1.442695
    %v1985 = vpow.pop %v1984
    %v1986 = vmul.f32 %v1983, 1.442695
    %v1987 = vpow.pop %v1986
    %v1988 = vadd.f32 %v1985, 1.0
    %v1989 = vadd.f32 %v1987, 1.0
    %v1990 = vrcp.pop %v1988
    %v1991 = vmul.f32 %v1988, %v1990
    %v1992 = vsub.f32 1.0, %v1991
    %v1993 = vmul.f32 %v1990, %v1992
    %v1994 = vadd.f32 %v1990, %v1993
    %vm1995 = vweird.f32 %v1988
    %vm1996 = vweird.f32 %v1990
    %vm1997 = vmor %vm1995, %vm1996
    %v1998 = vsel %vm1997, %v1990, %v1994
    %v1999 = vand.u32 2147483647, %v1988
    %vm2000 = vcmp.eq.f32.partialorder %v1999, 8.507059e+37
    %v2001 = vand.u32 %v1988, 2147483648
    %v2002 = vor.u32 1.1754944e-38, %v2001
    %v2003 = vsel %vm2000, %v2002, %v1998
    %v2004 = vmul.f32 1.0, %v2003
    %v2005 = vrcp.pop %v1989
    %v2006 = vmul.f32 %v1989, %v2005
    %v2007 = vsub.f32 1.0, %v2006
    %v2008 = vmul.f32 %v2005, %v2007
    %v2009 = vadd.f32 %v2005, %v2008
    %vm2010 = vweird.f32 %v1989
    %vm2011 = vweird.f32 %v2005
    %vm2012 = vmor %vm2010, %vm2011
    %v2013 = vsel %vm2012, %v2005, %v2009
    %v2014 = vand.u32 2147483647, %v1989
    %vm2015 = vcmp.eq.f32.partialorder %v2014, 8.507059e+37
    %v2016 = vand.u32 %v1989, 2147483648
    %v2017 = vor.u32 1.1754944e-38, %v2016
    %v2018 = vsel %vm2015, %v2017, %v2013
    %v2019 = vmul.f32 1.0, %v2018
    %v2020 = vtanh.pop %v1981
    %v2021 = vmul.f32 %v2004, %v1749
    %v2022 = vmul.f32 %v2004, %v2020
    %2024 = vrot.lane.b32.xlu0 %v2022, 64
    %v2025 = vpop.permute.xlu0 %2024
    %v2027 = vadd.f32 %v2021, %v2025
    %v2028 = vtanh.pop %v2027
    %v2029 = vmul.f32 %v2019, %v2028
    %v2031 = vsel %vm266, %v1937, %v1841
    %2032 = vmatpush.msra.mxu0 %v108
    %2033 = vmatpush.msra.mxu0 %v106
    %2034 = vmatpush.msra.mxu0 %v104
    %2035 = vmatpush.msra.mxu0 %v102
    %2036 = vmatpush.msra.mxu0 %v100
    %2037 = vmatpush.msra.mxu0 %v98
    %2038 = vmatpush.msra.mxu0 %v96
    %2039 = vmatpush.msra.mxu0 %v94
    %2040 = vmatpush.msra.mxu0 %v92
    %2041 = vmatpush.msra.mxu0 %v90
    %2042 = vmatpush.msra.mxu0 %v88
    %2043 = vmatpush.msra.mxu0 %v86
    %2044 = vmatpush.msra.mxu0 %v84
    %2045 = vmatpush.msra.mxu0 %v82
    %2046 = vmatpush.msra.mxu0 %v80
    %2047 = vmatpush.msra.mxu0 %v78
    %2048 = vmatmul.f32.gmra.mxu0 %v2031
    %v2049 = vpop.f32.mrf.mxu0
    %v2050 = vadd.f32 %v145, %v2049
    %2051 = vdwg.mxu0
    %2052 = vmatpush.msra.mxu0 %v109
    %2053 = vmatpush.msra.mxu0 %v107
    %2054 = vmatpush.msra.mxu0 %v105
    %2055 = vmatpush.msra.mxu0 %v103
    %2056 = vmatpush.msra.mxu0 %v101
    %2057 = vmatpush.msra.mxu0 %v99
    %2058 = vmatpush.msra.mxu0 %v97
    %2059 = vmatpush.msra.mxu0 %v95
    %2060 = vmatpush.msra.mxu0 %v93
    %2061 = vmatpush.msra.mxu0 %v91
    %2062 = vmatpush.msra.mxu0 %v89
    %2063 = vmatpush.msra.mxu0 %v87
    %2064 = vmatpush.msra.mxu0 %v85
    %2065 = vmatpush.msra.mxu0 %v83
    %2066 = vmatpush.msra.mxu0 %v81
    %2067 = vmatpush.msra.mxu0 %v79
    %2068 = vmatmul.f32.gmra.mxu0 %v2031
    %v2069 = vpop.f32.mrf.mxu0
    %v2070 = vadd.f32 %v146, %v2069
    %2071 = vdwg.mxu0
    %v2072 = vxor.u32 %v2050, 2147483648
    %v2073 = vxor.u32 %v2070, 2147483648
    %v2074 = vmul.f32 %v2072, 1.442695
    %v2075 = vpow.pop %v2074
    %v2076 = vmul.f32 %v2073, 1.442695
    %v2077 = vpow.pop %v2076
    %v2078 = vadd.f32 %v2075, 1.0
    %v2079 = vadd.f32 %v2077, 1.0
    %v2080 = vrcp.pop %v2078
    %v2081 = vmul.f32 %v2078, %v2080
    %v2082 = vsub.f32 1.0, %v2081
    %v2083 = vmul.f32 %v2080, %v2082
    %v2084 = vadd.f32 %v2080, %v2083
    %vm2085 = vweird.f32 %v2078
    %vm2086 = vweird.f32 %v2080
    %vm2087 = vmor %vm2085, %vm2086
    %v2088 = vsel %vm2087, %v2080, %v2084
    %v2089 = vand.u32 2147483647, %v2078
    %vm2090 = vcmp.eq.f32.partialorder %v2089, 8.507059e+37
    %v2091 = vand.u32 %v2078, 2147483648
    %v2092 = vor.u32 1.1754944e-38, %v2091
    %v2093 = vsel %vm2090, %v2092, %v2088
    %v2094 = vmul.f32 1.0, %v2093
    %v2095 = vrcp.pop %v2079
    %v2096 = vmul.f32 %v2079, %v2095
    %v2097 = vsub.f32 1.0, %v2096
    %v2098 = vmul.f32 %v2095, %v2097
    %v2099 = vadd.f32 %v2095, %v2098
    %vm2100 = vweird.f32 %v2079
    %vm2101 = vweird.f32 %v2095
    %vm2102 = vmor %vm2100, %vm2101
    %v2103 = vsel %vm2102, %v2095, %v2099
    %v2104 = vand.u32 2147483647, %v2079
    %vm2105 = vcmp.eq.f32.partialorder %v2104, 8.507059e+37
    %v2106 = vand.u32 %v2079, 2147483648
    %v2107 = vor.u32 1.1754944e-38, %v2106
    %v2108 = vsel %vm2105, %v2107, %v2103
    %v2109 = vmul.f32 1.0, %v2108
    %v2110 = vtanh.pop %v2070
    %v2111 = vmul.f32 %v2094, %v1839
    %v2112 = vmul.f32 %v2094, %v2110
    %2114 = vrot.lane.b32.xlu0 %v2112, 64
    %v2115 = vpop.permute.xlu0 %2114
    %v2117 = vadd.f32 %v2111, %v2115
    %v2118 = vtanh.pop %v2117
    %v2119 = vmul.f32 %v2109, %v2118
    %2121 = vrot.lane.b32.xlu0 %v1841, 64
    %v2122 = vpop.permute.xlu0 %2121
    %v2124 = vsel %vm266, %v2122, %v1934
    %2125 = vmatpush.msra.mxu0 %v141
    %2126 = vmatpush.msra.mxu0 %v139
    %2127 = vmatpush.msra.mxu0 %v137
    %2128 = vmatpush.msra.mxu0 %v135
    %2129 = vmatpush.msra.mxu0 %v133
    %2130 = vmatpush.msra.mxu0 %v131
    %2131 = vmatpush.msra.mxu0 %v129
    %2132 = vmatpush.msra.mxu0 %v127
    %2133 = vmatpush.msra.mxu0 %v125
    %2134 = vmatpush.msra.mxu0 %v123
    %2135 = vmatpush.msra.mxu0 %v121
    %2136 = vmatpush.msra.mxu0 %v119
    %2137 = vmatpush.msra.mxu0 %v117
    %2138 = vmatpush.msra.mxu0 %v115
    %2139 = vmatpush.msra.mxu0 %v113
    %2140 = vmatpush.msra.mxu0 %v111
    %2141 = vmatmul.f32.gmra.mxu0 %v2124
    %v2142 = vpop.f32.mrf.mxu0
    %v2143 = vadd.f32 %v152, %v2142
    %2144 = vdwg.mxu0
    %2145 = vmatpush.msra.mxu0 %v142
    %2146 = vmatpush.msra.mxu0 %v140
    %2147 = vmatpush.msra.mxu0 %v138
    %2148 = vmatpush.msra.mxu0 %v136
    %2149 = vmatpush.msra.mxu0 %v134
    %2150 = vmatpush.msra.mxu0 %v132
    %2151 = vmatpush.msra.mxu0 %v130
    %2152 = vmatpush.msra.mxu0 %v128
    %2153 = vmatpush.msra.mxu0 %v126
    %2154 = vmatpush.msra.mxu0 %v124
    %2155 = vmatpush.msra.mxu0 %v122
    %2156 = vmatpush.msra.mxu0 %v120
    %2157 = vmatpush.msra.mxu0 %v118
    %2158 = vmatpush.msra.mxu0 %v116
    %2159 = vmatpush.msra.mxu0 %v114
    %2160 = vmatpush.msra.mxu0 %v112
    %2161 = vmatmul.f32.gmra.mxu0 %v2124
    %v2162 = vpop.f32.mrf.mxu0
    %v2163 = vadd.f32 %v153, %v2162
    %2164 = vdwg.mxu0
    %v2165 = vxor.u32 %v2143, 2147483648
    %v2166 = vxor.u32 %v2163, 2147483648
    %v2167 = vmul.f32 %v2165, 1.442695
    %v2168 = vpow.pop %v2167
    %v2169 = vmul.f32 %v2166, 1.442695
    %v2170 = vpow.pop %v2169
    %v2171 = vadd.f32 %v2168, 1.0
    %v2172 = vadd.f32 %v2170, 1.0
    %v2173 = vrcp.pop %v2171
    %v2174 = vmul.f32 %v2171, %v2173
    %v2175 = vsub.f32 1.0, %v2174
    %v2176 = vmul.f32 %v2173, %v2175
    %v2177 = vadd.f32 %v2173, %v2176
    %vm2178 = vweird.f32 %v2171
    %vm2179 = vweird.f32 %v2173
    %vm2180 = vmor %vm2178, %vm2179
    %v2181 = vsel %vm2180, %v2173, %v2177
    %v2182 = vand.u32 2147483647, %v2171
    %vm2183 = vcmp.eq.f32.partialorder %v2182, 8.507059e+37
    %v2184 = vand.u32 %v2171, 2147483648
    %v2185 = vor.u32 1.1754944e-38, %v2184
    %v2186 = vsel %vm2183, %v2185, %v2181
    %v2187 = vmul.f32 1.0, %v2186
    %v2188 = vrcp.pop %v2172
    %v2189 = vmul.f32 %v2172, %v2188
    %v2190 = vsub.f32 1.0, %v2189
    %v2191 = vmul.f32 %v2188, %v2190
    %v2192 = vadd.f32 %v2188, %v2191
    %vm2193 = vweird.f32 %v2172
    %vm2194 = vweird.f32 %v2188
    %vm2195 = vmor %vm2193, %vm2194
    %v2196 = vsel %vm2195, %v2188, %v2192
    %v2197 = vand.u32 2147483647, %v2172
    %vm2198 = vcmp.eq.f32.partialorder %v2197, 8.507059e+37
    %v2199 = vand.u32 %v2172, 2147483648
    %v2200 = vor.u32 1.1754944e-38, %v2199
    %v2201 = vsel %vm2198, %v2200, %v2196
    %v2202 = vmul.f32 1.0, %v2201
    %v2203 = vtanh.pop %v2163
    %v2204 = vmul.f32 %v2187, %v1932
    %v2205 = vmul.f32 %v2187, %v2203
    %2207 = vrot.lane.b32.xlu0 %v2205, 64
    %v2208 = vpop.permute.xlu0 %2207
    %v2210 = vadd.f32 %v2204, %v2208
    %v2211 = vtanh.pop %v2210
    %v2212 = vmul.f32 %v2202, %v2211
    %2214 = vrot.lane.b32.xlu0 %v2029, 64
    %v2215 = vpop.permute.xlu0 %2214
    %v2217 = vsel %vm266, %v2215, %v2119
    %2218 = vmatpush.msra.mxu0 %v108
    %2219 = vmatpush.msra.mxu0 %v106
    %2220 = vmatpush.msra.mxu0 %v104
    %2221 = vmatpush.msra.mxu0 %v102
    %2222 = vmatpush.msra.mxu0 %v100
    %2223 = vmatpush.msra.mxu0 %v98
    %2224 = vmatpush.msra.mxu0 %v96
    %2225 = vmatpush.msra.mxu0 %v94
    %2226 = vmatpush.msra.mxu0 %v92
    %2227 = vmatpush.msra.mxu0 %v90
    %2228 = vmatpush.msra.mxu0 %v88
    %2229 = vmatpush.msra.mxu0 %v86
    %2230 = vmatpush.msra.mxu0 %v84
    %2231 = vmatpush.msra.mxu0 %v82
    %2232 = vmatpush.msra.mxu0 %v80
    %2233 = vmatpush.msra.mxu0 %v78
    %2234 = vmatmul.f32.gmra.mxu0 %v2217
    %v2235 = vpop.f32.mrf.mxu0
    %v2236 = vadd.f32 %v145, %v2235
    %2237 = vdwg.mxu0
    %2238 = vmatpush.msra.mxu0 %v109
    %2239 = vmatpush.msra.mxu0 %v107
    %2240 = vmatpush.msra.mxu0 %v105
    %2241 = vmatpush.msra.mxu0 %v103
    %2242 = vmatpush.msra.mxu0 %v101
    %2243 = vmatpush.msra.mxu0 %v99
    %2244 = vmatpush.msra.mxu0 %v97
    %2245 = vmatpush.msra.mxu0 %v95
    %2246 = vmatpush.msra.mxu0 %v93
    %2247 = vmatpush.msra.mxu0 %v91
    %2248 = vmatpush.msra.mxu0 %v89
    %2249 = vmatpush.msra.mxu0 %v87
    %2250 = vmatpush.msra.mxu0 %v85
    %2251 = vmatpush.msra.mxu0 %v83
    %2252 = vmatpush.msra.mxu0 %v81
    %2253 = vmatpush.msra.mxu0 %v79
    %2254 = vmatmul.f32.gmra.mxu0 %v2217
    %v2255 = vpop.f32.mrf.mxu0
    %v2256 = vadd.f32 %v146, %v2255
    %2257 = vdwg.mxu0
    %v2258 = vxor.u32 %v2236, 2147483648
    %v2259 = vxor.u32 %v2256, 2147483648
    %v2260 = vmul.f32 %v2258, 1.442695
    %v2261 = vpow.pop %v2260
    %v2262 = vmul.f32 %v2259, 1.442695
    %v2263 = vpow.pop %v2262
    %v2264 = vadd.f32 %v2261, 1.0
    %v2265 = vadd.f32 %v2263, 1.0
    %v2266 = vrcp.pop %v2264
    %v2267 = vmul.f32 %v2264, %v2266
    %v2268 = vsub.f32 1.0, %v2267
    %v2269 = vmul.f32 %v2266, %v2268
    %v2270 = vadd.f32 %v2266, %v2269
    %vm2271 = vweird.f32 %v2264
    %vm2272 = vweird.f32 %v2266
    %vm2273 = vmor %vm2271, %vm2272
    %v2274 = vsel %vm2273, %v2266, %v2270
    %v2275 = vand.u32 2147483647, %v2264
    %vm2276 = vcmp.eq.f32.partialorder %v2275, 8.507059e+37
    %v2277 = vand.u32 %v2264, 2147483648
    %v2278 = vor.u32 1.1754944e-38, %v2277
    %v2279 = vsel %vm2276, %v2278, %v2274
    %v2280 = vmul.f32 1.0, %v2279
    %v2281 = vrcp.pop %v2265
    %v2282 = vmul.f32 %v2265, %v2281
    %v2283 = vsub.f32 1.0, %v2282
    %v2284 = vmul.f32 %v2281, %v2283
    %v2285 = vadd.f32 %v2281, %v2284
    %vm2286 = vweird.f32 %v2265
    %vm2287 = vweird.f32 %v2281
    %vm2288 = vmor %vm2286, %vm2287
    %v2289 = vsel %vm2288, %v2281, %v2285
    %v2290 = vand.u32 2147483647, %v2265
    %vm2291 = vcmp.eq.f32.partialorder %v2290, 8.507059e+37
    %v2292 = vand.u32 %v2265, 2147483648
    %v2293 = vor.u32 1.1754944e-38, %v2292
    %v2294 = vsel %vm2291, %v2293, %v2289
    %v2295 = vmul.f32 1.0, %v2294
    %v2296 = vtanh.pop %v2256
    %v2297 = vmul.f32 %v2280, %v2117
    %v2298 = vmul.f32 %v2280, %v2296
    %2300 = vrot.lane.b32.xlu0 %v2298, 64
    %v2301 = vpop.permute.xlu0 %2300
    %v2303 = vadd.f32 %v2297, %v2301
    %v2304 = vtanh.pop %v2303
    %v2305 = vmul.f32 %v2295, %v2304
    %2307 = vrot.lane.b32.xlu0 %v2119, 64
    %v2308 = vpop.permute.xlu0 %2307
    %v2310 = vsel %vm266, %v2308, %v2212
    %2311 = vmatpush.msra.mxu0 %v141
    %2312 = vmatpush.msra.mxu0 %v139
    %2313 = vmatpush.msra.mxu0 %v137
    %2314 = vmatpush.msra.mxu0 %v135
    %2315 = vmatpush.msra.mxu0 %v133
    %2316 = vmatpush.msra.mxu0 %v131
    %2317 = vmatpush.msra.mxu0 %v129
    %2318 = vmatpush.msra.mxu0 %v127
    %2319 = vmatpush.msra.mxu0 %v125
    %2320 = vmatpush.msra.mxu0 %v123
    %2321 = vmatpush.msra.mxu0 %v121
    %2322 = vmatpush.msra.mxu0 %v119
    %2323 = vmatpush.msra.mxu0 %v117
    %2324 = vmatpush.msra.mxu0 %v115
    %2325 = vmatpush.msra.mxu0 %v113
    %2326 = vmatpush.msra.mxu0 %v111
    %2327 = vmatmul.f32.gmra.mxu0 %v2310
    %v2328 = vpop.f32.mrf.mxu0
    %v2329 = vadd.f32 %v152, %v2328
    %2330 = vdwg.mxu0
    %2331 = vmatpush.msra.mxu0 %v142
    %2332 = vmatpush.msra.mxu0 %v140
    %2333 = vmatpush.msra.mxu0 %v138
    %2334 = vmatpush.msra.mxu0 %v136
    %2335 = vmatpush.msra.mxu0 %v134
    %2336 = vmatpush.msra.mxu0 %v132
    %2337 = vmatpush.msra.mxu0 %v130
    %2338 = vmatpush.msra.mxu0 %v128
    %2339 = vmatpush.msra.mxu0 %v126
    %2340 = vmatpush.msra.mxu0 %v124
    %2341 = vmatpush.msra.mxu0 %v122
    %2342 = vmatpush.msra.mxu0 %v120
    %2343 = vmatpush.msra.mxu0 %v118
    %2344 = vmatpush.msra.mxu0 %v116
    %2345 = vmatpush.msra.mxu0 %v114
    %2346 = vmatpush.msra.mxu0 %v112
    %2347 = vmatmul.f32.gmra.mxu0 %v2310
    %v2348 = vpop.f32.mrf.mxu0
    %v2349 = vadd.f32 %v153, %v2348
    %2350 = vdwg.mxu0
    %v2351 = vxor.u32 %v2329, 2147483648
    %v2352 = vxor.u32 %v2349, 2147483648
    %v2353 = vmul.f32 %v2351, 1.442695
    %v2354 = vpow.pop %v2353
    %v2355 = vmul.f32 %v2352, 1.442695
    %v2356 = vpow.pop %v2355
    %v2357 = vadd.f32 %v2354, 1.0
    %v2358 = vadd.f32 %v2356, 1.0
    %v2359 = vrcp.pop %v2357
    %v2360 = vmul.f32 %v2357, %v2359
    %v2361 = vsub.f32 1.0, %v2360
    %v2362 = vmul.f32 %v2359, %v2361
    %v2363 = vadd.f32 %v2359, %v2362
    %vm2364 = vweird.f32 %v2357
    %vm2365 = vweird.f32 %v2359
    %vm2366 = vmor %vm2364, %vm2365
    %v2367 = vsel %vm2366, %v2359, %v2363
    %v2368 = vand.u32 2147483647, %v2357
    %vm2369 = vcmp.eq.f32.partialorder %v2368, 8.507059e+37
    %v2370 = vand.u32 %v2357, 2147483648
    %v2371 = vor.u32 1.1754944e-38, %v2370
    %v2372 = vsel %vm2369, %v2371, %v2367
    %v2373 = vmul.f32 1.0, %v2372
    %v2374 = vrcp.pop %v2358
    %v2375 = vmul.f32 %v2358, %v2374
    %v2376 = vsub.f32 1.0, %v2375
    %v2377 = vmul.f32 %v2374, %v2376
    %v2378 = vadd.f32 %v2374, %v2377
    %vm2379 = vweird.f32 %v2358
    %vm2380 = vweird.f32 %v2374
    %vm2381 = vmor %vm2379, %vm2380
    %v2382 = vsel %vm2381, %v2374, %v2378
    %v2383 = vand.u32 2147483647, %v2358
    %vm2384 = vcmp.eq.f32.partialorder %v2383, 8.507059e+37
    %v2385 = vand.u32 %v2358, 2147483648
    %v2386 = vor.u32 1.1754944e-38, %v2385
    %v2387 = vsel %vm2384, %v2386, %v2382
    %v2388 = vmul.f32 1.0, %v2387
    %v2389 = vtanh.pop %v2349
    %v2390 = vmul.f32 %v2373, %v2210
    %v2391 = vmul.f32 %v2373, %v2389
    %2393 = vrot.lane.b32.xlu0 %v2391, 64
    %v2394 = vpop.permute.xlu0 %2393
    %v2396 = vadd.f32 %v2390, %v2394
    %v2397 = vtanh.pop %v2396
    %v2398 = vmul.f32 %v2388, %v2397
    %2400 = vrot.lane.b32.xlu0 %v2305, 64
    %v2401 = vpop.permute.xlu0 %2400
    %v2403 = vsel %vm266, %v2401, %v2398
    %2404 = vmatpush.msra.mxu0 %v141
    %2405 = vmatpush.msra.mxu0 %v139
    %2406 = vmatpush.msra.mxu0 %v137
    %2407 = vmatpush.msra.mxu0 %v135
    %2408 = vmatpush.msra.mxu0 %v133
    %2409 = vmatpush.msra.mxu0 %v131
    %2410 = vmatpush.msra.mxu0 %v129
    %2411 = vmatpush.msra.mxu0 %v127
    %2412 = vmatpush.msra.mxu0 %v125
    %2413 = vmatpush.msra.mxu0 %v123
    %2414 = vmatpush.msra.mxu0 %v121
    %2415 = vmatpush.msra.mxu0 %v119
    %2416 = vmatpush.msra.mxu0 %v117
    %2417 = vmatpush.msra.mxu0 %v115
    %2418 = vmatpush.msra.mxu0 %v113
    %2419 = vmatpush.msra.mxu0 %v111
    %2420 = vmatmul.f32.gmra.mxu0 %v2403
    %v2421 = vpop.f32.mrf.mxu0
    %v2422 = vadd.f32 %v152, %v2421
    %2423 = vdwg.mxu0
    %2424 = vmatpush.msra.mxu0 %v142
    %2425 = vmatpush.msra.mxu0 %v140
    %2426 = vmatpush.msra.mxu0 %v138
    %2427 = vmatpush.msra.mxu0 %v136
    %2428 = vmatpush.msra.mxu0 %v134
    %2429 = vmatpush.msra.mxu0 %v132
    %2430 = vmatpush.msra.mxu0 %v130
    %2431 = vmatpush.msra.mxu0 %v128
    %2432 = vmatpush.msra.mxu0 %v126
    %2433 = vmatpush.msra.mxu0 %v124
    %2434 = vmatpush.msra.mxu0 %v122
    %2435 = vmatpush.msra.mxu0 %v120
    %2436 = vmatpush.msra.mxu0 %v118
    %2437 = vmatpush.msra.mxu0 %v116
    %2438 = vmatpush.msra.mxu0 %v114
    %2439 = vmatpush.msra.mxu0 %v112
    %2440 = vmatmul.f32.gmra.mxu0 %v2403
    %v2441 = vpop.f32.mrf.mxu0
    %v2442 = vadd.f32 %v153, %v2441
    %2443 = vdwg.mxu0
    %v2444 = vxor.u32 %v2422, 2147483648
    %v2445 = vxor.u32 %v2442, 2147483648
    %v2446 = vmul.f32 %v2444, 1.442695
    %v2447 = vpow.pop %v2446
    %v2448 = vmul.f32 %v2445, 1.442695
    %v2449 = vpow.pop %v2448
    %v2450 = vadd.f32 %v2447, 1.0
    %v2451 = vadd.f32 %v2449, 1.0
    %v2452 = vrcp.pop %v2450
    %v2453 = vmul.f32 %v2450, %v2452
    %v2454 = vsub.f32 1.0, %v2453
    %v2455 = vmul.f32 %v2452, %v2454
    %v2456 = vadd.f32 %v2452, %v2455
    %vm2457 = vweird.f32 %v2450
    %vm2458 = vweird.f32 %v2452
    %vm2459 = vmor %vm2457, %vm2458
    %v2460 = vsel %vm2459, %v2452, %v2456
    %v2461 = vand.u32 2147483647, %v2450
    %vm2462 = vcmp.eq.f32.partialorder %v2461, 8.507059e+37
    %v2463 = vand.u32 %v2450, 2147483648
    %v2464 = vor.u32 1.1754944e-38, %v2463
    %v2465 = vsel %vm2462, %v2464, %v2460
    %v2466 = vmul.f32 1.0, %v2465
    %v2467 = vrcp.pop %v2451
    %v2468 = vmul.f32 %v2451, %v2467
    %v2469 = vsub.f32 1.0, %v2468
    %v2470 = vmul.f32 %v2467, %v2469
    %v2471 = vadd.f32 %v2467, %v2470
    %vm2472 = vweird.f32 %v2451
    %vm2473 = vweird.f32 %v2467
    %vm2474 = vmor %vm2472, %vm2473
    %v2475 = vsel %vm2474, %v2467, %v2471
    %v2476 = vand.u32 2147483647, %v2451
    %vm2477 = vcmp.eq.f32.partialorder %v2476, 8.507059e+37
    %v2478 = vand.u32 %v2451, 2147483648
    %v2479 = vor.u32 1.1754944e-38, %v2478
    %v2480 = vsel %vm2477, %v2479, %v2475
    %v2481 = vmul.f32 1.0, %v2480
    %v2482 = vtanh.pop %v2442
    %v2483 = vmul.f32 %v2466, %v2396
    %v2484 = vmul.f32 %v2466, %v2482
    %2486 = vrot.lane.b32.xlu0 %v2484, 64
    %v2487 = vpop.permute.xlu0 %2486
    %v2489 = vadd.f32 %v2483, %v2487
    %v2490 = vtanh.pop %v2489
    %v2491 = vmul.f32 %v2481, %v2490
    %v2493 = vperm.slane %v164, 0
    %2496 = vrot.lane.b32.xlu0 %v2491, 64
    %v2497 = vpop.permute.xlu0 %2496
    %v2498 = vsel %vm266, %v2497, 0
    %2500 = vmatpush.msra.mxu0 0.0
    %2501 = vmatpush.msra.mxu0 0.0
    %2502 = vmatpush.msra.mxu0 0.0
    %2503 = vmatpush.msra.mxu0 0.0
    %2504 = vmatpush.msra.mxu0 0.0
    %2505 = vmatpush.msra.mxu0 0.0
    %2506 = vmatpush.msra.mxu0 0.0
    %2507 = vmatpush.msra.mxu0 0.0
    %2508 = vmatpush.msra.mxu0 %v163
    %2509 = vmatpush.msra.mxu0 %v162
    %2510 = vmatpush.msra.mxu0 %v161
    %2511 = vmatpush.msra.mxu0 %v160
    %2512 = vmatpush.msra.mxu0 %v159
    %2513 = vmatpush.msra.mxu0 %v158
    %2514 = vmatpush.msra.mxu0 %v157
    %2515 = vmatpush.msra.mxu0 %v156
    %2516 = vmatmul.f32.gmra.mxu0 %v2498
    %v2517 = vpop.f32.mrf.mxu0
    %v2518 = vadd.f32 %v2493, %v2517
    %2519 = vdwg.mxu0
    %vm2520 = vcmask 9216
    %2521 = vst.msk [vmem:[#allocation7] sm:$0x3] %vm2520, %v2518
    // Predicated region
    $region42: #{tpu_custom_call.1} parent=1 // pred_check
      _
    $region43: #{tpu_custom_call.1} parent=1 // pred_check_branch
      %2523 = sbr.rel (0) target = $region45
    $region44: #{tpu_custom_call.1} parent=1 // pred_region
      %2525 = vsyncadd [#allocation4], 0
      %s2527 = sshll.u32 [#allocation7], 4
      %s2528 = int_to_ptr.vmem [resolvable:$true] %s2527
      %s2529 = sshll.u32 %s8, 4
      %s2530 = int_to_ptr.hbm [resolvable:$true] %s2529
      %2532 = dma.vmem_to_hbm [thread:$0]  %s2528, 32, %s2530, [#allocation4]
    $region45: #{tpu_custom_call.1} parent=1 // pred_fallthru
      _
    // Predicated region
    $region46: #{tpu_custom_call.1} parent=1 // pred_check
      _
    $region47: #{tpu_custom_call.1} parent=1 // pred_check_branch
      %2534 = sbr.rel (0) target = $region49
    $region48: #{tpu_custom_call.1} parent=1 // pred_region
      %2536 = dma.done [#allocation4], 32
    $region49: #{tpu_custom_call.1} parent=1 // pred_fallthru
      _
    %2537 = vsyncpa [#allocation3], 1
    %2538 = vsyncpa [#allocation6], 1
    %2539 = vsyncpa [#allocation4], 1

</llo_original>
